<compile_context>
chip_gen: v7x
topology: tpu7x:2x2x1
jax: 0.10.0
libtpu: 0.0.40
codegen_flags: <defaults>
</compile_context>

<pallas_src>
import math
import functools

import jax
import jax.numpy as jnp
from jax.experimental import pallas as pl
from jax.experimental.pallas import tpu as pltpu

LN_EPS = 1e-5  # PyTorch nn.LayerNorm default


# ----------------------------------------------------------------------------
# Fused decoder kernel (whole stack in one pallas_call, activation in VMEM)
# ----------------------------------------------------------------------------
def _decoder_kernel(tok_ref, enc_ref, smask_ref, cmask_ref, emb_ref, pe_ref,
                    wq_s, wk_s, wv_s, bq_s, bk_s, bv_s,
                    wq_c, wk_c, wv_c, bq_c, bk_c, bv_c,
                    ln1_g, ln1_b, ln2_g, ln2_b, ln3_g, ln3_b,
                    w1, b1, w2, b2,
                    lnf_g, lnf_b, wout, bout,
                    out_ref, *, num_layers, B, T, S, D, vocab):
    smask = smask_ref[...]        # (B*T, B*T) additive mask (0 / -1e9)
    cmask = cmask_ref[...]        # (B*T, B*S) additive mask (0 / -1e9)
    encf = enc_ref[...]           # (B*S, D)

    def layer_norm(y, g, b):
        mu = jnp.mean(y, axis=-1, keepdims=True)
        var = jnp.mean(jnp.square(y - mu), axis=-1, keepdims=True)
        return (y - mu) * jax.lax.rsqrt(var + LN_EPS) * g + b

    def softmax(s):
        m = jnp.max(s, axis=-1, keepdims=True)
        p = jnp.exp(s - m)
        # exact reciprocal (EUP) for numerical parity with the reference softmax
        return p * pl.reciprocal(jnp.sum(p, axis=-1, keepdims=True), approx=False)

    def attend(q, k, v, add_mask):
        # scores = q @ k.T as one MXU dot (contract last dims of both operands)
        s = jax.lax.dot_general(q, k, (((1,), (1,)), ((), ())),
                                preferred_element_type=jnp.float32) + add_mask
        return jnp.dot(softmax(s), v, preferred_element_type=jnp.float32)

    # --- token embedding gather (one-hot MXU matmul) + sqrt(D) + pos-encoding ---
    ids = tok_ref[...]                                         # (B*T, 1) int32
    onehot = (jax.lax.broadcasted_iota(jnp.int32, (B * T, vocab), 1) == ids
              ).astype(jnp.float32)                            # (B*T, vocab)
    xf = jnp.dot(onehot, emb_ref[...], preferred_element_type=jnp.float32)
    pe_slab = jnp.concatenate([pe_ref[0:T, :]] * B, axis=0)    # (B*T, D), hoisted
    xf = xf * jnp.float32(math.sqrt(D)) + pe_slab

    # Static (unrolled) loop over layers; weight refs are indexed with static `l`
    # which is a zero-cost view into the stacked VMEM-resident parameter arrays.
    for l in range(num_layers):
        # ---------- self attention (flat block-diagonal over B*T rows) ----------
        # 1/sqrt(D) softmax scale is already folded into wq_s / bq_s.
        q = jnp.dot(xf, wq_s[l], preferred_element_type=jnp.float32) + bq_s[l]
        k = jnp.dot(xf, wk_s[l], preferred_element_type=jnp.float32) + bk_s[l]
        v = jnp.dot(xf, wv_s[l], preferred_element_type=jnp.float32) + bv_s[l]
        xf = layer_norm(xf + attend(q, k, v, smask), ln1_g[l], ln1_b[l])

        # ---------- cross attention (flat block-diagonal vs encoder rows) -------
        q = jnp.dot(xf, wq_c[l], preferred_element_type=jnp.float32) + bq_c[l]
        k = jnp.dot(encf, wk_c[l], preferred_element_type=jnp.float32) + bk_c[l]
        v = jnp.dot(encf, wv_c[l], preferred_element_type=jnp.float32) + bv_c[l]
        xf = layer_norm(xf + attend(q, k, v, cmask), ln2_g[l], ln2_b[l])

        # ---------- feed-forward -------------------------------------------------
        h = jnp.maximum(
            jnp.dot(xf, w1[l], preferred_element_type=jnp.float32) + b1[l], 0.0)
        f = jnp.dot(h, w2[l], preferred_element_type=jnp.float32) + b2[l]
        xf = layer_norm(xf + f, ln3_g[l], ln3_b[l])

    # final LayerNorm + output projection (lane-dense (B*T, V) store)
    xf = layer_norm(xf, lnf_g[...], lnf_b[...])
    out_ref[...] = jnp.dot(xf, wout[...],
                           preferred_element_type=jnp.float32) + bout[...]


# ----------------------------------------------------------------------------
# Decoder forward
# ----------------------------------------------------------------------------
def decoder_forward(params, tgt_seq, encoder_output, src_mask, tgt_mask):
    B, T = tgt_seq.shape
    vocab, D = params["emb"].shape
    S = encoder_output.shape[1]
    V = params["wout"].shape[1]
    L = params["wq_self"].shape[0]

    # Combined additive masks (built once in the wrapper, reused every layer):
    #   valid(i, j)  <=>  same batch block  AND  user mask > 0   -> 0, else -1e9.
    # (User masks are the module's multiplicative {0,1} masks.)
    rows_t = jnp.arange(B * T) // T
    rows_s = jnp.arange(B * S) // S
    self_valid = (rows_t[:, None] == rows_t[None, :]) & jnp.tile(tgt_mask > 0, (B, B))
    cross_valid = (rows_t[:, None] == rows_s[None, :]) & jnp.tile(src_mask > 0, (B, B))
    self_mask = jnp.where(self_valid, 0.0, -1e9).astype(jnp.float32)
    cross_mask = jnp.where(cross_valid, 0.0, -1e9).astype(jnp.float32)

    kern = functools.partial(_decoder_kernel, num_layers=L, B=B, T=T, S=S, D=D,
                             vocab=vocab)

    out = pl.pallas_call(
        kern,
        out_shape=jax.ShapeDtypeStruct((B * T, V), jnp.float32),
        # single invocation (no grid): all operands are whole-array VMEM blocks
        compiler_params=pltpu.CompilerParams(vmem_limit_bytes=32 * 1024 * 1024),
    )(tgt_seq.reshape(B * T, 1).astype(jnp.int32),
      encoder_output.reshape(B * S, D).astype(jnp.float32),
      self_mask, cross_mask,
      params["emb"], params["pe"],
      params["wq_self"], params["wk_self"], params["wv_self"],
      params["bq_self"], params["bk_self"], params["bv_self"],
      params["wq_cross"], params["wk_cross"], params["wv_cross"],
      params["bq_cross"], params["bk_cross"], params["bv_cross"],
      params["ln1_g"], params["ln1_b"],
      params["ln2_g"], params["ln2_b"],
      params["ln3_g"], params["ln3_b"],
      params["w1"], params["b1"], params["w2"], params["b2"],
      params["lnf_g"], params["lnf_b"], params["wout"], params["bout"])

    return out.reshape(B, T, V)


# ----------------------------------------------------------------------------
# Parameter init (deterministic; mirrors the PyTorch module's shapes/init)
# ----------------------------------------------------------------------------
def sinusoidal_pe(max_seq_len, dim):
    pos = jnp.arange(max_seq_len, dtype=jnp.float32)[:, None]
    i = jnp.arange(0, dim, 2, dtype=jnp.float32)[None, :]
    div = jnp.exp(-math.log(10000.0) * i / dim)
    pe = jnp.zeros((max_seq_len, dim), jnp.float32)
    pe = pe.at[:, 0::2].set(jnp.sin(pos * div))
    pe = pe.at[:, 1::2].set(jnp.cos(pos * div))
    return pe


def init_params(key, vocab_size, dim, num_layers, dim_ff, max_seq_len):
    keys = iter(jax.random.split(key, 2 + num_layers * 16))

    def u(shape, scale):
        return jax.random.uniform(next(keys), shape, jnp.float32, -scale, scale)

    s_d, s_ff = 1.0 / math.sqrt(dim), 1.0 / math.sqrt(dim_ff)
    # Softmax scale 1/sqrt(D) is folded into the Q projections EXACTLY ONCE here.
    attn_scale = 1.0 / math.sqrt(dim)

    emb = u((vocab_size, dim), 0.1)                 # init_weights: uniform(-0.1, 0.1)
    wout = u((dim, vocab_size), 0.1)                # init_weights: uniform(-0.1, 0.1)

    layers = []
    for _ in range(num_layers):
        # Linear weights/biases: uniform(-1/sqrt(fan_in), 1/sqrt(fan_in)) like torch
        wq_s, wk_s, wv_s = u((dim, dim), s_d), u((dim, dim), s_d), u((dim, dim), s_d)
        bq_s, bk_s, bv_s = u((1, dim), s_d), u((1, dim), s_d), u((1, dim), s_d)
        wq_c, wk_c, wv_c = u((dim, dim), s_d), u((dim, dim), s_d), u((dim, dim), s_d)
        bq_c, bk_c, bv_c = u((1, dim), s_d), u((1, dim), s_d), u((1, dim), s_d)
        w1, b1 = u((dim, dim_ff), s_d), u((1, dim_ff), s_d)
        w2, b2 = u((dim_ff, dim), s_ff), u((1, dim), s_ff)
        layers.append(dict(
            wq_self=wq_s * attn_scale, bq_self=bq_s * attn_scale,
            wk_self=wk_s, bk_self=bk_s, wv_self=wv_s, bv_self=bv_s,
            wq_cross=wq_c * attn_scale, bq_cross=bq_c * attn_scale,
            wk_cross=wk_c, bk_cross=bk_c, wv_cross=wv_c, bv_cross=bv_c,
            ln1_g=jnp.ones((1, dim), jnp.float32), ln1_b=jnp.zeros((1, dim), jnp.float32),
            ln2_g=jnp.ones((1, dim), jnp.float32), ln2_b=jnp.zeros((1, dim), jnp.float32),
            ln3_g=jnp.ones((1, dim), jnp.float32), ln3_b=jnp.zeros((1, dim), jnp.float32),
            w1=w1, b1=b1, w2=w2, b2=b2,
        ))

    stacked = {k: jnp.stack([lyr[k] for lyr in layers], axis=0) for k in layers[0]}

    params = dict(
        emb=emb,
        pe=sinusoidal_pe(max_seq_len, dim),
        lnf_g=jnp.ones((1, dim), jnp.float32),
        lnf_b=jnp.zeros((1, dim), jnp.float32),
        wout=wout,
        bout=jnp.zeros((1, vocab_size), jnp.float32),   # init_weights: zero
        **stacked)
    return params


# ----------------------------------------------------------------------------
if __name__ == "__main__":
    VOCAB, DIM, N_LAYERS, DIM_FF, MAX_LEN = 128, 32, 2, 64, 16
    B, T, S = 2, 8, 16

    key = jax.random.PRNGKey(0)
    k_par, k_tok, k_enc = jax.random.split(key, 3)

    params = init_params(k_par, VOCAB, DIM, N_LAYERS, DIM_FF, MAX_LEN)
    tgt_seq = jax.random.randint(k_tok, (B, T), 0, VOCAB, dtype=jnp.int32)
    encoder_output = jax.random.normal(k_enc, (B, S, DIM), jnp.float32)

    # causal mask for self-attention (1 = attend, 0 = masked), full mask for cross.
    tgt_mask = jnp.tril(jnp.ones((T, T), jnp.float32))
    src_mask = jnp.ones((T, S), jnp.float32)

    out = decoder_forward(params, tgt_seq, encoder_output, src_mask, tgt_mask)
    out = jax.block_until_ready(out)
    assert out.shape == (B, T, VOCAB) and out.dtype == jnp.float32
    print("KERNEL_OK")
</pallas_src>

<mosaic_0001>
module attributes {stable_mosaic.version = 11 : i64} {
  func.func @_decoder_kernel(%arg0: memref<16x1xi32, #tpu.memory_space<vmem>>, %arg1: memref<32x32xf32, #tpu.memory_space<vmem>>, %arg2: memref<16x16xf32, #tpu.memory_space<vmem>>, %arg3: memref<16x32xf32, #tpu.memory_space<vmem>>, %arg4: memref<128x32xf32, #tpu.memory_space<vmem>>, %arg5: memref<16x32xf32, #tpu.memory_space<vmem>>, %arg6: memref<2x32x32xf32, #tpu.memory_space<vmem>>, %arg7: memref<2x32x32xf32, #tpu.memory_space<vmem>>, %arg8: memref<2x32x32xf32, #tpu.memory_space<vmem>>, %arg9: memref<2x1x32xf32, #tpu.memory_space<vmem>>, %arg10: memref<2x1x32xf32, #tpu.memory_space<vmem>>, %arg11: memref<2x1x32xf32, #tpu.memory_space<vmem>>, %arg12: memref<2x32x32xf32, #tpu.memory_space<vmem>>, %arg13: memref<2x32x32xf32, #tpu.memory_space<vmem>>, %arg14: memref<2x32x32xf32, #tpu.memory_space<vmem>>, %arg15: memref<2x1x32xf32, #tpu.memory_space<vmem>>, %arg16: memref<2x1x32xf32, #tpu.memory_space<vmem>>, %arg17: memref<2x1x32xf32, #tpu.memory_space<vmem>>, %arg18: memref<2x1x32xf32, #tpu.memory_space<vmem>>, %arg19: memref<2x1x32xf32, #tpu.memory_space<vmem>>, %arg20: memref<2x1x32xf32, #tpu.memory_space<vmem>>, %arg21: memref<2x1x32xf32, #tpu.memory_space<vmem>>, %arg22: memref<2x1x32xf32, #tpu.memory_space<vmem>>, %arg23: memref<2x1x32xf32, #tpu.memory_space<vmem>>, %arg24: memref<2x32x64xf32, #tpu.memory_space<vmem>>, %arg25: memref<2x1x64xf32, #tpu.memory_space<vmem>>, %arg26: memref<2x64x32xf32, #tpu.memory_space<vmem>>, %arg27: memref<2x1x32xf32, #tpu.memory_space<vmem>>, %arg28: memref<1x32xf32, #tpu.memory_space<vmem>>, %arg29: memref<1x32xf32, #tpu.memory_space<vmem>>, %arg30: memref<32x128xf32, #tpu.memory_space<vmem>>, %arg31: memref<1x128xf32, #tpu.memory_space<vmem>>, %arg32: memref<16x128xf32, #tpu.memory_space<vmem>>) attributes {dimension_semantics = [], scalar_prefetch = 0 : i64, scratch_operands = 0 : i64, tpu.core_type = #tpu.core_type<tc>} {
    %c0 = arith.constant 0 : index
    %c0_0 = arith.constant 0 : index
    %0 = vector.load %arg2[%c0, %c0_0] : memref<16x16xf32, #tpu.memory_space<vmem>>, vector<16x16xf32>
    %c0_1 = arith.constant 0 : index
    %c0_2 = arith.constant 0 : index
    %1 = vector.load %arg3[%c0_1, %c0_2] : memref<16x32xf32, #tpu.memory_space<vmem>>, vector<16x32xf32>
    %c0_3 = arith.constant 0 : index
    %c0_4 = arith.constant 0 : index
    %2 = vector.load %arg1[%c0_3, %c0_4] : memref<32x32xf32, #tpu.memory_space<vmem>>, vector<32x32xf32>
    %c0_5 = arith.constant 0 : index
    %c0_6 = arith.constant 0 : index
    %3 = vector.load %arg0[%c0_5, %c0_6] : memref<16x1xi32, #tpu.memory_space<vmem>>, vector<16x1xi32>
    %4 = tpu.iota {dimensions = array<i32: 1>} : vector<16x128xi32>
    %5 = vector.broadcast %3 : vector<16x1xi32> to vector<16x128xi32>
    %6 = arith.cmpi eq, %4, %5 : vector<16x128xi32>
    %7 = arith.extui %6 : vector<16x128xi1> to vector<16x128xi32>
    %8 = arith.sitofp %7 : vector<16x128xi32> to vector<16x128xf32>
    %c0_7 = arith.constant 0 : index
    %c0_8 = arith.constant 0 : index
    %9 = vector.load %arg4[%c0_7, %c0_8] : memref<128x32xf32, #tpu.memory_space<vmem>>, vector<128x32xf32>
    %cst = arith.constant dense<0.000000e+00> : vector<16x32xf32>
    %10 = tpu.matmul %8, %9, %cst {dimension_numbers = #tpu.dot_dimension_numbers<[1], [0], [0], [1], [0, 0, 1, 1], [], []>} : vector<16x128xf32>, vector<128x32xf32>, vector<16x32xf32> -> vector<16x32xf32>
    %c0_9 = arith.constant 0 : index
    %c0_10 = arith.constant 0 : index
    %11 = vector.load %arg5[%c0_9, %c0_10] : memref<16x32xf32, #tpu.memory_space<vmem>>, vector<8x32xf32>
    %12 = tpu.concatenate %11, %11 in 0 : vector<8x32xf32>, vector<8x32xf32> -> vector<16x32xf32>
    %cst_11 = arith.constant 5.65685415 : f32
    %13 = vector.broadcast %cst_11 : f32 to vector<16x32xf32>
    %14 = arith.mulf %10, %13 : vector<16x32xf32>
    %15 = arith.addf %14, %12 : vector<16x32xf32>
    %c0_12 = arith.constant 0 : index
    %c0_13 = arith.constant 0 : index
    %c0_14 = arith.constant 0 : index
    %16 = vector.load %arg6[%c0_12, %c0_13, %c0_14] : memref<2x32x32xf32, #tpu.memory_space<vmem>>, vector<1x32x32xf32>
    %17 = vector.shape_cast %16 : vector<1x32x32xf32> to vector<32x32xf32>
    %cst_15 = arith.constant dense<0.000000e+00> : vector<16x32xf32>
    %18 = tpu.matmul %15, %17, %cst_15 {dimension_numbers = #tpu.dot_dimension_numbers<[1], [0], [0], [1], [0, 0, 1, 1], [], []>} : vector<16x32xf32>, vector<32x32xf32>, vector<16x32xf32> -> vector<16x32xf32>
    %c0_16 = arith.constant 0 : index
    %c0_17 = arith.constant 0 : index
    %c0_18 = arith.constant 0 : index
    %19 = vector.load %arg9[%c0_16, %c0_17, %c0_18] : memref<2x1x32xf32, #tpu.memory_space<vmem>>, vector<1x1x32xf32>
    %20 = vector.shape_cast %19 : vector<1x1x32xf32> to vector<1x32xf32>
    %21 = vector.broadcast %20 : vector<1x32xf32> to vector<16x32xf32>
    %22 = arith.addf %18, %21 : vector<16x32xf32>
    %c0_19 = arith.constant 0 : index
    %c0_20 = arith.constant 0 : index
    %c0_21 = arith.constant 0 : index
    %23 = vector.load %arg7[%c0_19, %c0_20, %c0_21] : memref<2x32x32xf32, #tpu.memory_space<vmem>>, vector<1x32x32xf32>
    %24 = vector.shape_cast %23 : vector<1x32x32xf32> to vector<32x32xf32>
    %cst_22 = arith.constant dense<0.000000e+00> : vector<16x32xf32>
    %25 = tpu.matmul %15, %24, %cst_22 {dimension_numbers = #tpu.dot_dimension_numbers<[1], [0], [0], [1], [0, 0, 1, 1], [], []>} : vector<16x32xf32>, vector<32x32xf32>, vector<16x32xf32> -> vector<16x32xf32>
    %c0_23 = arith.constant 0 : index
    %c0_24 = arith.constant 0 : index
    %c0_25 = arith.constant 0 : index
    %26 = vector.load %arg10[%c0_23, %c0_24, %c0_25] : memref<2x1x32xf32, #tpu.memory_space<vmem>>, vector<1x1x32xf32>
    %27 = vector.shape_cast %26 : vector<1x1x32xf32> to vector<1x32xf32>
    %28 = vector.broadcast %27 : vector<1x32xf32> to vector<16x32xf32>
    %29 = arith.addf %25, %28 : vector<16x32xf32>
    %c0_26 = arith.constant 0 : index
    %c0_27 = arith.constant 0 : index
    %c0_28 = arith.constant 0 : index
    %30 = vector.load %arg8[%c0_26, %c0_27, %c0_28] : memref<2x32x32xf32, #tpu.memory_space<vmem>>, vector<1x32x32xf32>
    %31 = vector.shape_cast %30 : vector<1x32x32xf32> to vector<32x32xf32>
    %cst_29 = arith.constant dense<0.000000e+00> : vector<16x32xf32>
    %32 = tpu.matmul %15, %31, %cst_29 {dimension_numbers = #tpu.dot_dimension_numbers<[1], [0], [0], [1], [0, 0, 1, 1], [], []>} : vector<16x32xf32>, vector<32x32xf32>, vector<16x32xf32> -> vector<16x32xf32>
    %c0_30 = arith.constant 0 : index
    %c0_31 = arith.constant 0 : index
    %c0_32 = arith.constant 0 : index
    %33 = vector.load %arg11[%c0_30, %c0_31, %c0_32] : memref<2x1x32xf32, #tpu.memory_space<vmem>>, vector<1x1x32xf32>
    %34 = vector.shape_cast %33 : vector<1x1x32xf32> to vector<1x32xf32>
    %35 = vector.broadcast %34 : vector<1x32xf32> to vector<16x32xf32>
    %36 = arith.addf %32, %35 : vector<16x32xf32>
    %cst_33 = arith.constant dense<0.000000e+00> : vector<16x16xf32>
    %37 = tpu.matmul %22, %29, %cst_33 {dimension_numbers = #tpu.dot_dimension_numbers<[1], [1], [0], [0], [0, 0, 1, 0], [], []>} : vector<16x32xf32>, vector<16x32xf32>, vector<16x16xf32> -> vector<16x16xf32>
    %38 = arith.addf %37, %0 : vector<16x16xf32>
    %cst_34 = arith.constant dense<0xFF800000> : vector<16xf32>
    %39 = vector.multi_reduction <maximumf>, %38, %cst_34 [1] : vector<16x16xf32> to vector<16xf32>
    %40 = vector.shape_cast %39 : vector<16xf32> to vector<16x1xf32>
    %41 = vector.broadcast %40 : vector<16x1xf32> to vector<16x16xf32>
    %42 = arith.subf %38, %41 : vector<16x16xf32>
    %43 = math.exp %42 : vector<16x16xf32>
    %cst_35 = arith.constant dense<0.000000e+00> : vector<16xf32>
    %44 = vector.multi_reduction <add>, %43, %cst_35 [1] : vector<16x16xf32> to vector<16xf32>
    %45 = vector.shape_cast %44 : vector<16xf32> to vector<16x1xf32>
    %46 = tpu.reciprocal %45 : vector<16x1xf32> -> vector<16x1xf32>
    %47 = vector.broadcast %46 : vector<16x1xf32> to vector<16x16xf32>
    %48 = arith.mulf %43, %47 : vector<16x16xf32>
    %cst_36 = arith.constant dense<0.000000e+00> : vector<16x32xf32>
    %49 = tpu.matmul %48, %36, %cst_36 {dimension_numbers = #tpu.dot_dimension_numbers<[1], [0], [0], [1], [0, 0, 1, 1], [], []>} : vector<16x16xf32>, vector<16x32xf32>, vector<16x32xf32> -> vector<16x32xf32>
    %50 = arith.addf %15, %49 : vector<16x32xf32>
    %c0_37 = arith.constant 0 : index
    %c0_38 = arith.constant 0 : index
    %c0_39 = arith.constant 0 : index
    %51 = vector.load %arg18[%c0_37, %c0_38, %c0_39] : memref<2x1x32xf32, #tpu.memory_space<vmem>>, vector<1x1x32xf32>
    %52 = vector.shape_cast %51 : vector<1x1x32xf32> to vector<1x32xf32>
    %c0_40 = arith.constant 0 : index
    %c0_41 = arith.constant 0 : index
    %c0_42 = arith.constant 0 : index
    %53 = vector.load %arg19[%c0_40, %c0_41, %c0_42] : memref<2x1x32xf32, #tpu.memory_space<vmem>>, vector<1x1x32xf32>
    %54 = vector.shape_cast %53 : vector<1x1x32xf32> to vector<1x32xf32>
    %cst_43 = arith.constant dense<0.000000e+00> : vector<16xf32>
    %55 = vector.multi_reduction <add>, %50, %cst_43 [1] : vector<16x32xf32> to vector<16xf32>
    %56 = vector.shape_cast %55 : vector<16xf32> to vector<16x1xf32>
    %cst_44 = arith.constant 3.200000e+01 : f32
    %57 = vector.broadcast %cst_44 : f32 to vector<16x1xf32>
    %58 = arith.divf %56, %57 : vector<16x1xf32>
    %59 = vector.broadcast %58 : vector<16x1xf32> to vector<16x32xf32>
    %60 = arith.subf %50, %59 : vector<16x32xf32>
    %61 = arith.mulf %60, %60 : vector<16x32xf32>
    %cst_45 = arith.constant dense<0.000000e+00> : vector<16xf32>
    %62 = vector.multi_reduction <add>, %61, %cst_45 [1] : vector<16x32xf32> to vector<16xf32>
    %63 = vector.shape_cast %62 : vector<16xf32> to vector<16x1xf32>
    %cst_46 = arith.constant 3.200000e+01 : f32
    %64 = vector.broadcast %cst_46 : f32 to vector<16x1xf32>
    %65 = arith.divf %63, %64 : vector<16x1xf32>
    %66 = vector.broadcast %58 : vector<16x1xf32> to vector<16x32xf32>
    %67 = arith.subf %50, %66 : vector<16x32xf32>
    %cst_47 = arith.constant 9.99999974E-6 : f32
    %68 = vector.broadcast %cst_47 : f32 to vector<16x1xf32>
    %69 = arith.addf %65, %68 : vector<16x1xf32>
    %70 = math.rsqrt %69 : vector<16x1xf32>
    %71 = vector.broadcast %70 : vector<16x1xf32> to vector<16x32xf32>
    %72 = arith.mulf %67, %71 : vector<16x32xf32>
    %73 = vector.broadcast %52 : vector<1x32xf32> to vector<16x32xf32>
    %74 = arith.mulf %72, %73 : vector<16x32xf32>
    %75 = vector.broadcast %54 : vector<1x32xf32> to vector<16x32xf32>
    %76 = arith.addf %74, %75 : vector<16x32xf32>
    %c0_48 = arith.constant 0 : index
    %c0_49 = arith.constant 0 : index
    %c0_50 = arith.constant 0 : index
    %77 = vector.load %arg12[%c0_48, %c0_49, %c0_50] : memref<2x32x32xf32, #tpu.memory_space<vmem>>, vector<1x32x32xf32>
    %78 = vector.shape_cast %77 : vector<1x32x32xf32> to vector<32x32xf32>
    %cst_51 = arith.constant dense<0.000000e+00> : vector<16x32xf32>
    %79 = tpu.matmul %76, %78, %cst_51 {dimension_numbers = #tpu.dot_dimension_numbers<[1], [0], [0], [1], [0, 0, 1, 1], [], []>} : vector<16x32xf32>, vector<32x32xf32>, vector<16x32xf32> -> vector<16x32xf32>
    %c0_52 = arith.constant 0 : index
    %c0_53 = arith.constant 0 : index
    %c0_54 = arith.constant 0 : index
    %80 = vector.load %arg15[%c0_52, %c0_53, %c0_54] : memref<2x1x32xf32, #tpu.memory_space<vmem>>, vector<1x1x32xf32>
    %81 = vector.shape_cast %80 : vector<1x1x32xf32> to vector<1x32xf32>
    %82 = vector.broadcast %81 : vector<1x32xf32> to vector<16x32xf32>
    %83 = arith.addf %79, %82 : vector<16x32xf32>
    %c0_55 = arith.constant 0 : index
    %c0_56 = arith.constant 0 : index
    %c0_57 = arith.constant 0 : index
    %84 = vector.load %arg13[%c0_55, %c0_56, %c0_57] : memref<2x32x32xf32, #tpu.memory_space<vmem>>, vector<1x32x32xf32>
    %85 = vector.shape_cast %84 : vector<1x32x32xf32> to vector<32x32xf32>
    %cst_58 = arith.constant dense<0.000000e+00> : vector<32x32xf32>
    %86 = tpu.matmul %2, %85, %cst_58 {dimension_numbers = #tpu.dot_dimension_numbers<[1], [0], [0], [1], [0, 0, 1, 1], [], []>} : vector<32x32xf32>, vector<32x32xf32>, vector<32x32xf32> -> vector<32x32xf32>
    %c0_59 = arith.constant 0 : index
    %c0_60 = arith.constant 0 : index
    %c0_61 = arith.constant 0 : index
    %87 = vector.load %arg16[%c0_59, %c0_60, %c0_61] : memref<2x1x32xf32, #tpu.memory_space<vmem>>, vector<1x1x32xf32>
    %88 = vector.shape_cast %87 : vector<1x1x32xf32> to vector<1x32xf32>
    %89 = vector.broadcast %88 : vector<1x32xf32> to vector<32x32xf32>
    %90 = arith.addf %86, %89 : vector<32x32xf32>
    %c0_62 = arith.constant 0 : index
    %c0_63 = arith.constant 0 : index
    %c0_64 = arith.constant 0 : index
    %91 = vector.load %arg14[%c0_62, %c0_63, %c0_64] : memref<2x32x32xf32, #tpu.memory_space<vmem>>, vector<1x32x32xf32>
    %92 = vector.shape_cast %91 : vector<1x32x32xf32> to vector<32x32xf32>
    %cst_65 = arith.constant dense<0.000000e+00> : vector<32x32xf32>
    %93 = tpu.matmul %2, %92, %cst_65 {dimension_numbers = #tpu.dot_dimension_numbers<[1], [0], [0], [1], [0, 0, 1, 1], [], []>} : vector<32x32xf32>, vector<32x32xf32>, vector<32x32xf32> -> vector<32x32xf32>
    %c0_66 = arith.constant 0 : index
    %c0_67 = arith.constant 0 : index
    %c0_68 = arith.constant 0 : index
    %94 = vector.load %arg17[%c0_66, %c0_67, %c0_68] : memref<2x1x32xf32, #tpu.memory_space<vmem>>, vector<1x1x32xf32>
    %95 = vector.shape_cast %94 : vector<1x1x32xf32> to vector<1x32xf32>
    %96 = vector.broadcast %95 : vector<1x32xf32> to vector<32x32xf32>
    %97 = arith.addf %93, %96 : vector<32x32xf32>
    %cst_69 = arith.constant dense<0.000000e+00> : vector<16x32xf32>
    %98 = tpu.matmul %83, %90, %cst_69 {dimension_numbers = #tpu.dot_dimension_numbers<[1], [1], [0], [0], [0, 0, 1, 0], [], []>} : vector<16x32xf32>, vector<32x32xf32>, vector<16x32xf32> -> vector<16x32xf32>
    %99 = arith.addf %98, %1 : vector<16x32xf32>
    %cst_70 = arith.constant dense<0xFF800000> : vector<16xf32>
    %100 = vector.multi_reduction <maximumf>, %99, %cst_70 [1] : vector<16x32xf32> to vector<16xf32>
    %101 = vector.shape_cast %100 : vector<16xf32> to vector<16x1xf32>
    %102 = vector.broadcast %101 : vector<16x1xf32> to vector<16x32xf32>
    %103 = arith.subf %99, %102 : vector<16x32xf32>
    %104 = math.exp %103 : vector<16x32xf32>
    %cst_71 = arith.constant dense<0.000000e+00> : vector<16xf32>
    %105 = vector.multi_reduction <add>, %104, %cst_71 [1] : vector<16x32xf32> to vector<16xf32>
    %106 = vector.shape_cast %105 : vector<16xf32> to vector<16x1xf32>
    %107 = tpu.reciprocal %106 : vector<16x1xf32> -> vector<16x1xf32>
    %108 = vector.broadcast %107 : vector<16x1xf32> to vector<16x32xf32>
    %109 = arith.mulf %104, %108 : vector<16x32xf32>
    %cst_72 = arith.constant dense<0.000000e+00> : vector<16x32xf32>
    %110 = tpu.matmul %109, %97, %cst_72 {dimension_numbers = #tpu.dot_dimension_numbers<[1], [0], [0], [1], [0, 0, 1, 1], [], []>} : vector<16x32xf32>, vector<32x32xf32>, vector<16x32xf32> -> vector<16x32xf32>
    %111 = arith.addf %76, %110 : vector<16x32xf32>
    %c0_73 = arith.constant 0 : index
    %c0_74 = arith.constant 0 : index
    %c0_75 = arith.constant 0 : index
    %112 = vector.load %arg20[%c0_73, %c0_74, %c0_75] : memref<2x1x32xf32, #tpu.memory_space<vmem>>, vector<1x1x32xf32>
    %113 = vector.shape_cast %112 : vector<1x1x32xf32> to vector<1x32xf32>
    %c0_76 = arith.constant 0 : index
    %c0_77 = arith.constant 0 : index
    %c0_78 = arith.constant 0 : index
    %114 = vector.load %arg21[%c0_76, %c0_77, %c0_78] : memref<2x1x32xf32, #tpu.memory_space<vmem>>, vector<1x1x32xf32>
    %115 = vector.shape_cast %114 : vector<1x1x32xf32> to vector<1x32xf32>
    %cst_79 = arith.constant dense<0.000000e+00> : vector<16xf32>
    %116 = vector.multi_reduction <add>, %111, %cst_79 [1] : vector<16x32xf32> to vector<16xf32>
    %117 = vector.shape_cast %116 : vector<16xf32> to vector<16x1xf32>
    %cst_80 = arith.constant 3.200000e+01 : f32
    %118 = vector.broadcast %cst_80 : f32 to vector<16x1xf32>
    %119 = arith.divf %117, %118 : vector<16x1xf32>
    %120 = vector.broadcast %119 : vector<16x1xf32> to vector<16x32xf32>
    %121 = arith.subf %111, %120 : vector<16x32xf32>
    %122 = arith.mulf %121, %121 : vector<16x32xf32>
    %cst_81 = arith.constant dense<0.000000e+00> : vector<16xf32>
    %123 = vector.multi_reduction <add>, %122, %cst_81 [1] : vector<16x32xf32> to vector<16xf32>
    %124 = vector.shape_cast %123 : vector<16xf32> to vector<16x1xf32>
    %cst_82 = arith.constant 3.200000e+01 : f32
    %125 = vector.broadcast %cst_82 : f32 to vector<16x1xf32>
    %126 = arith.divf %124, %125 : vector<16x1xf32>
    %127 = vector.broadcast %119 : vector<16x1xf32> to vector<16x32xf32>
    %128 = arith.subf %111, %127 : vector<16x32xf32>
    %cst_83 = arith.constant 9.99999974E-6 : f32
    %129 = vector.broadcast %cst_83 : f32 to vector<16x1xf32>
    %130 = arith.addf %126, %129 : vector<16x1xf32>
    %131 = math.rsqrt %130 : vector<16x1xf32>
    %132 = vector.broadcast %131 : vector<16x1xf32> to vector<16x32xf32>
    %133 = arith.mulf %128, %132 : vector<16x32xf32>
    %134 = vector.broadcast %113 : vector<1x32xf32> to vector<16x32xf32>
    %135 = arith.mulf %133, %134 : vector<16x32xf32>
    %136 = vector.broadcast %115 : vector<1x32xf32> to vector<16x32xf32>
    %137 = arith.addf %135, %136 : vector<16x32xf32>
    %c0_84 = arith.constant 0 : index
    %c0_85 = arith.constant 0 : index
    %c0_86 = arith.constant 0 : index
    %138 = vector.load %arg24[%c0_84, %c0_85, %c0_86] : memref<2x32x64xf32, #tpu.memory_space<vmem>>, vector<1x32x64xf32>
    %139 = vector.shape_cast %138 : vector<1x32x64xf32> to vector<32x64xf32>
    %cst_87 = arith.constant dense<0.000000e+00> : vector<16x64xf32>
    %140 = tpu.matmul %137, %139, %cst_87 {dimension_numbers = #tpu.dot_dimension_numbers<[1], [0], [0], [1], [0, 0, 1, 1], [], []>} : vector<16x32xf32>, vector<32x64xf32>, vector<16x64xf32> -> vector<16x64xf32>
    %c0_88 = arith.constant 0 : index
    %c0_89 = arith.constant 0 : index
    %c0_90 = arith.constant 0 : index
    %141 = vector.load %arg25[%c0_88, %c0_89, %c0_90] : memref<2x1x64xf32, #tpu.memory_space<vmem>>, vector<1x1x64xf32>
    %142 = vector.shape_cast %141 : vector<1x1x64xf32> to vector<1x64xf32>
    %143 = vector.broadcast %142 : vector<1x64xf32> to vector<16x64xf32>
    %144 = arith.addf %140, %143 : vector<16x64xf32>
    %cst_91 = arith.constant 0.000000e+00 : f32
    %145 = vector.broadcast %cst_91 : f32 to vector<16x64xf32>
    %146 = arith.maximumf %144, %145 : vector<16x64xf32>
    %c0_92 = arith.constant 0 : index
    %c0_93 = arith.constant 0 : index
    %c0_94 = arith.constant 0 : index
    %147 = vector.load %arg26[%c0_92, %c0_93, %c0_94] : memref<2x64x32xf32, #tpu.memory_space<vmem>>, vector<1x64x32xf32>
    %148 = vector.shape_cast %147 : vector<1x64x32xf32> to vector<64x32xf32>
    %cst_95 = arith.constant dense<0.000000e+00> : vector<16x32xf32>
    %149 = tpu.matmul %146, %148, %cst_95 {dimension_numbers = #tpu.dot_dimension_numbers<[1], [0], [0], [1], [0, 0, 1, 1], [], []>} : vector<16x64xf32>, vector<64x32xf32>, vector<16x32xf32> -> vector<16x32xf32>
    %c0_96 = arith.constant 0 : index
    %c0_97 = arith.constant 0 : index
    %c0_98 = arith.constant 0 : index
    %150 = vector.load %arg27[%c0_96, %c0_97, %c0_98] : memref<2x1x32xf32, #tpu.memory_space<vmem>>, vector<1x1x32xf32>
    %151 = vector.shape_cast %150 : vector<1x1x32xf32> to vector<1x32xf32>
    %152 = vector.broadcast %151 : vector<1x32xf32> to vector<16x32xf32>
    %153 = arith.addf %149, %152 : vector<16x32xf32>
    %154 = arith.addf %137, %153 : vector<16x32xf32>
    %c0_99 = arith.constant 0 : index
    %c0_100 = arith.constant 0 : index
    %c0_101 = arith.constant 0 : index
    %155 = vector.load %arg22[%c0_99, %c0_100, %c0_101] : memref<2x1x32xf32, #tpu.memory_space<vmem>>, vector<1x1x32xf32>
    %156 = vector.shape_cast %155 : vector<1x1x32xf32> to vector<1x32xf32>
    %c0_102 = arith.constant 0 : index
    %c0_103 = arith.constant 0 : index
    %c0_104 = arith.constant 0 : index
    %157 = vector.load %arg23[%c0_102, %c0_103, %c0_104] : memref<2x1x32xf32, #tpu.memory_space<vmem>>, vector<1x1x32xf32>
    %158 = vector.shape_cast %157 : vector<1x1x32xf32> to vector<1x32xf32>
    %cst_105 = arith.constant dense<0.000000e+00> : vector<16xf32>
    %159 = vector.multi_reduction <add>, %154, %cst_105 [1] : vector<16x32xf32> to vector<16xf32>
    %160 = vector.shape_cast %159 : vector<16xf32> to vector<16x1xf32>
    %cst_106 = arith.constant 3.200000e+01 : f32
    %161 = vector.broadcast %cst_106 : f32 to vector<16x1xf32>
    %162 = arith.divf %160, %161 : vector<16x1xf32>
    %163 = vector.broadcast %162 : vector<16x1xf32> to vector<16x32xf32>
    %164 = arith.subf %154, %163 : vector<16x32xf32>
    %165 = arith.mulf %164, %164 : vector<16x32xf32>
    %cst_107 = arith.constant dense<0.000000e+00> : vector<16xf32>
    %166 = vector.multi_reduction <add>, %165, %cst_107 [1] : vector<16x32xf32> to vector<16xf32>
    %167 = vector.shape_cast %166 : vector<16xf32> to vector<16x1xf32>
    %cst_108 = arith.constant 3.200000e+01 : f32
    %168 = vector.broadcast %cst_108 : f32 to vector<16x1xf32>
    %169 = arith.divf %167, %168 : vector<16x1xf32>
    %170 = vector.broadcast %162 : vector<16x1xf32> to vector<16x32xf32>
    %171 = arith.subf %154, %170 : vector<16x32xf32>
    %cst_109 = arith.constant 9.99999974E-6 : f32
    %172 = vector.broadcast %cst_109 : f32 to vector<16x1xf32>
    %173 = arith.addf %169, %172 : vector<16x1xf32>
    %174 = math.rsqrt %173 : vector<16x1xf32>
    %175 = vector.broadcast %174 : vector<16x1xf32> to vector<16x32xf32>
    %176 = arith.mulf %171, %175 : vector<16x32xf32>
    %177 = vector.broadcast %156 : vector<1x32xf32> to vector<16x32xf32>
    %178 = arith.mulf %176, %177 : vector<16x32xf32>
    %179 = vector.broadcast %158 : vector<1x32xf32> to vector<16x32xf32>
    %180 = arith.addf %178, %179 : vector<16x32xf32>
    %c1 = arith.constant 1 : index
    %c0_110 = arith.constant 0 : index
    %c0_111 = arith.constant 0 : index
    %181 = vector.load %arg6[%c1, %c0_110, %c0_111] : memref<2x32x32xf32, #tpu.memory_space<vmem>>, vector<1x32x32xf32>
    %182 = vector.shape_cast %181 : vector<1x32x32xf32> to vector<32x32xf32>
    %cst_112 = arith.constant dense<0.000000e+00> : vector<16x32xf32>
    %183 = tpu.matmul %180, %182, %cst_112 {dimension_numbers = #tpu.dot_dimension_numbers<[1], [0], [0], [1], [0, 0, 1, 1], [], []>} : vector<16x32xf32>, vector<32x32xf32>, vector<16x32xf32> -> vector<16x32xf32>
    %c1_113 = arith.constant 1 : index
    %c0_114 = arith.constant 0 : index
    %c0_115 = arith.constant 0 : index
    %184 = vector.load %arg9[%c1_113, %c0_114, %c0_115] : memref<2x1x32xf32, #tpu.memory_space<vmem>>, vector<1x1x32xf32>
    %185 = vector.shape_cast %184 : vector<1x1x32xf32> to vector<1x32xf32>
    %186 = vector.broadcast %185 : vector<1x32xf32> to vector<16x32xf32>
    %187 = arith.addf %183, %186 : vector<16x32xf32>
    %c1_116 = arith.constant 1 : index
    %c0_117 = arith.constant 0 : index
    %c0_118 = arith.constant 0 : index
    %188 = vector.load %arg7[%c1_116, %c0_117, %c0_118] : memref<2x32x32xf32, #tpu.memory_space<vmem>>, vector<1x32x32xf32>
    %189 = vector.shape_cast %188 : vector<1x32x32xf32> to vector<32x32xf32>
    %cst_119 = arith.constant dense<0.000000e+00> : vector<16x32xf32>
    %190 = tpu.matmul %180, %189, %cst_119 {dimension_numbers = #tpu.dot_dimension_numbers<[1], [0], [0], [1], [0, 0, 1, 1], [], []>} : vector<16x32xf32>, vector<32x32xf32>, vector<16x32xf32> -> vector<16x32xf32>
    %c1_120 = arith.constant 1 : index
    %c0_121 = arith.constant 0 : index
    %c0_122 = arith.constant 0 : index
    %191 = vector.load %arg10[%c1_120, %c0_121, %c0_122] : memref<2x1x32xf32, #tpu.memory_space<vmem>>, vector<1x1x32xf32>
    %192 = vector.shape_cast %191 : vector<1x1x32xf32> to vector<1x32xf32>
    %193 = vector.broadcast %192 : vector<1x32xf32> to vector<16x32xf32>
    %194 = arith.addf %190, %193 : vector<16x32xf32>
    %c1_123 = arith.constant 1 : index
    %c0_124 = arith.constant 0 : index
    %c0_125 = arith.constant 0 : index
    %195 = vector.load %arg8[%c1_123, %c0_124, %c0_125] : memref<2x32x32xf32, #tpu.memory_space<vmem>>, vector<1x32x32xf32>
    %196 = vector.shape_cast %195 : vector<1x32x32xf32> to vector<32x32xf32>
    %cst_126 = arith.constant dense<0.000000e+00> : vector<16x32xf32>
    %197 = tpu.matmul %180, %196, %cst_126 {dimension_numbers = #tpu.dot_dimension_numbers<[1], [0], [0], [1], [0, 0, 1, 1], [], []>} : vector<16x32xf32>, vector<32x32xf32>, vector<16x32xf32> -> vector<16x32xf32>
    %c1_127 = arith.constant 1 : index
    %c0_128 = arith.constant 0 : index
    %c0_129 = arith.constant 0 : index
    %198 = vector.load %arg11[%c1_127, %c0_128, %c0_129] : memref<2x1x32xf32, #tpu.memory_space<vmem>>, vector<1x1x32xf32>
    %199 = vector.shape_cast %198 : vector<1x1x32xf32> to vector<1x32xf32>
    %200 = vector.broadcast %199 : vector<1x32xf32> to vector<16x32xf32>
    %201 = arith.addf %197, %200 : vector<16x32xf32>
    %cst_130 = arith.constant dense<0.000000e+00> : vector<16x16xf32>
    %202 = tpu.matmul %187, %194, %cst_130 {dimension_numbers = #tpu.dot_dimension_numbers<[1], [1], [0], [0], [0, 0, 1, 0], [], []>} : vector<16x32xf32>, vector<16x32xf32>, vector<16x16xf32> -> vector<16x16xf32>
    %203 = arith.addf %202, %0 : vector<16x16xf32>
    %cst_131 = arith.constant dense<0xFF800000> : vector<16xf32>
    %204 = vector.multi_reduction <maximumf>, %203, %cst_131 [1] : vector<16x16xf32> to vector<16xf32>
    %205 = vector.shape_cast %204 : vector<16xf32> to vector<16x1xf32>
    %206 = vector.broadcast %205 : vector<16x1xf32> to vector<16x16xf32>
    %207 = arith.subf %203, %206 : vector<16x16xf32>
    %208 = math.exp %207 : vector<16x16xf32>
    %cst_132 = arith.constant dense<0.000000e+00> : vector<16xf32>
    %209 = vector.multi_reduction <add>, %208, %cst_132 [1] : vector<16x16xf32> to vector<16xf32>
    %210 = vector.shape_cast %209 : vector<16xf32> to vector<16x1xf32>
    %211 = tpu.reciprocal %210 : vector<16x1xf32> -> vector<16x1xf32>
    %212 = vector.broadcast %211 : vector<16x1xf32> to vector<16x16xf32>
    %213 = arith.mulf %208, %212 : vector<16x16xf32>
    %cst_133 = arith.constant dense<0.000000e+00> : vector<16x32xf32>
    %214 = tpu.matmul %213, %201, %cst_133 {dimension_numbers = #tpu.dot_dimension_numbers<[1], [0], [0], [1], [0, 0, 1, 1], [], []>} : vector<16x16xf32>, vector<16x32xf32>, vector<16x32xf32> -> vector<16x32xf32>
    %215 = arith.addf %180, %214 : vector<16x32xf32>
    %c1_134 = arith.constant 1 : index
    %c0_135 = arith.constant 0 : index
    %c0_136 = arith.constant 0 : index
    %216 = vector.load %arg18[%c1_134, %c0_135, %c0_136] : memref<2x1x32xf32, #tpu.memory_space<vmem>>, vector<1x1x32xf32>
    %217 = vector.shape_cast %216 : vector<1x1x32xf32> to vector<1x32xf32>
    %c1_137 = arith.constant 1 : index
    %c0_138 = arith.constant 0 : index
    %c0_139 = arith.constant 0 : index
    %218 = vector.load %arg19[%c1_137, %c0_138, %c0_139] : memref<2x1x32xf32, #tpu.memory_space<vmem>>, vector<1x1x32xf32>
    %219 = vector.shape_cast %218 : vector<1x1x32xf32> to vector<1x32xf32>
    %cst_140 = arith.constant dense<0.000000e+00> : vector<16xf32>
    %220 = vector.multi_reduction <add>, %215, %cst_140 [1] : vector<16x32xf32> to vector<16xf32>
    %221 = vector.shape_cast %220 : vector<16xf32> to vector<16x1xf32>
    %cst_141 = arith.constant 3.200000e+01 : f32
    %222 = vector.broadcast %cst_141 : f32 to vector<16x1xf32>
    %223 = arith.divf %221, %222 : vector<16x1xf32>
    %224 = vector.broadcast %223 : vector<16x1xf32> to vector<16x32xf32>
    %225 = arith.subf %215, %224 : vector<16x32xf32>
    %226 = arith.mulf %225, %225 : vector<16x32xf32>
    %cst_142 = arith.constant dense<0.000000e+00> : vector<16xf32>
    %227 = vector.multi_reduction <add>, %226, %cst_142 [1] : vector<16x32xf32> to vector<16xf32>
    %228 = vector.shape_cast %227 : vector<16xf32> to vector<16x1xf32>
    %cst_143 = arith.constant 3.200000e+01 : f32
    %229 = vector.broadcast %cst_143 : f32 to vector<16x1xf32>
    %230 = arith.divf %228, %229 : vector<16x1xf32>
    %231 = vector.broadcast %223 : vector<16x1xf32> to vector<16x32xf32>
    %232 = arith.subf %215, %231 : vector<16x32xf32>
    %cst_144 = arith.constant 9.99999974E-6 : f32
    %233 = vector.broadcast %cst_144 : f32 to vector<16x1xf32>
    %234 = arith.addf %230, %233 : vector<16x1xf32>
    %235 = math.rsqrt %234 : vector<16x1xf32>
    %236 = vector.broadcast %235 : vector<16x1xf32> to vector<16x32xf32>
    %237 = arith.mulf %232, %236 : vector<16x32xf32>
    %238 = vector.broadcast %217 : vector<1x32xf32> to vector<16x32xf32>
    %239 = arith.mulf %237, %238 : vector<16x32xf32>
    %240 = vector.broadcast %219 : vector<1x32xf32> to vector<16x32xf32>
    %241 = arith.addf %239, %240 : vector<16x32xf32>
    %c1_145 = arith.constant 1 : index
    %c0_146 = arith.constant 0 : index
    %c0_147 = arith.constant 0 : index
    %242 = vector.load %arg12[%c1_145, %c0_146, %c0_147] : memref<2x32x32xf32, #tpu.memory_space<vmem>>, vector<1x32x32xf32>
    %243 = vector.shape_cast %242 : vector<1x32x32xf32> to vector<32x32xf32>
    %cst_148 = arith.constant dense<0.000000e+00> : vector<16x32xf32>
    %244 = tpu.matmul %241, %243, %cst_148 {dimension_numbers = #tpu.dot_dimension_numbers<[1], [0], [0], [1], [0, 0, 1, 1], [], []>} : vector<16x32xf32>, vector<32x32xf32>, vector<16x32xf32> -> vector<16x32xf32>
    %c1_149 = arith.constant 1 : index
    %c0_150 = arith.constant 0 : index
    %c0_151 = arith.constant 0 : index
    %245 = vector.load %arg15[%c1_149, %c0_150, %c0_151] : memref<2x1x32xf32, #tpu.memory_space<vmem>>, vector<1x1x32xf32>
    %246 = vector.shape_cast %245 : vector<1x1x32xf32> to vector<1x32xf32>
    %247 = vector.broadcast %246 : vector<1x32xf32> to vector<16x32xf32>
    %248 = arith.addf %244, %247 : vector<16x32xf32>
    %c1_152 = arith.constant 1 : index
    %c0_153 = arith.constant 0 : index
    %c0_154 = arith.constant 0 : index
    %249 = vector.load %arg13[%c1_152, %c0_153, %c0_154] : memref<2x32x32xf32, #tpu.memory_space<vmem>>, vector<1x32x32xf32>
    %250 = vector.shape_cast %249 : vector<1x32x32xf32> to vector<32x32xf32>
    %cst_155 = arith.constant dense<0.000000e+00> : vector<32x32xf32>
    %251 = tpu.matmul %2, %250, %cst_155 {dimension_numbers = #tpu.dot_dimension_numbers<[1], [0], [0], [1], [0, 0, 1, 1], [], []>} : vector<32x32xf32>, vector<32x32xf32>, vector<32x32xf32> -> vector<32x32xf32>
    %c1_156 = arith.constant 1 : index
    %c0_157 = arith.constant 0 : index
    %c0_158 = arith.constant 0 : index
    %252 = vector.load %arg16[%c1_156, %c0_157, %c0_158] : memref<2x1x32xf32, #tpu.memory_space<vmem>>, vector<1x1x32xf32>
    %253 = vector.shape_cast %252 : vector<1x1x32xf32> to vector<1x32xf32>
    %254 = vector.broadcast %253 : vector<1x32xf32> to vector<32x32xf32>
    %255 = arith.addf %251, %254 : vector<32x32xf32>
    %c1_159 = arith.constant 1 : index
    %c0_160 = arith.constant 0 : index
    %c0_161 = arith.constant 0 : index
    %256 = vector.load %arg14[%c1_159, %c0_160, %c0_161] : memref<2x32x32xf32, #tpu.memory_space<vmem>>, vector<1x32x32xf32>
    %257 = vector.shape_cast %256 : vector<1x32x32xf32> to vector<32x32xf32>
    %cst_162 = arith.constant dense<0.000000e+00> : vector<32x32xf32>
    %258 = tpu.matmul %2, %257, %cst_162 {dimension_numbers = #tpu.dot_dimension_numbers<[1], [0], [0], [1], [0, 0, 1, 1], [], []>} : vector<32x32xf32>, vector<32x32xf32>, vector<32x32xf32> -> vector<32x32xf32>
    %c1_163 = arith.constant 1 : index
    %c0_164 = arith.constant 0 : index
    %c0_165 = arith.constant 0 : index
    %259 = vector.load %arg17[%c1_163, %c0_164, %c0_165] : memref<2x1x32xf32, #tpu.memory_space<vmem>>, vector<1x1x32xf32>
    %260 = vector.shape_cast %259 : vector<1x1x32xf32> to vector<1x32xf32>
    %261 = vector.broadcast %260 : vector<1x32xf32> to vector<32x32xf32>
    %262 = arith.addf %258, %261 : vector<32x32xf32>
    %cst_166 = arith.constant dense<0.000000e+00> : vector<16x32xf32>
    %263 = tpu.matmul %248, %255, %cst_166 {dimension_numbers = #tpu.dot_dimension_numbers<[1], [1], [0], [0], [0, 0, 1, 0], [], []>} : vector<16x32xf32>, vector<32x32xf32>, vector<16x32xf32> -> vector<16x32xf32>
    %264 = arith.addf %263, %1 : vector<16x32xf32>
    %cst_167 = arith.constant dense<0xFF800000> : vector<16xf32>
    %265 = vector.multi_reduction <maximumf>, %264, %cst_167 [1] : vector<16x32xf32> to vector<16xf32>
    %266 = vector.shape_cast %265 : vector<16xf32> to vector<16x1xf32>
    %267 = vector.broadcast %266 : vector<16x1xf32> to vector<16x32xf32>
    %268 = arith.subf %264, %267 : vector<16x32xf32>
    %269 = math.exp %268 : vector<16x32xf32>
    %cst_168 = arith.constant dense<0.000000e+00> : vector<16xf32>
    %270 = vector.multi_reduction <add>, %269, %cst_168 [1] : vector<16x32xf32> to vector<16xf32>
    %271 = vector.shape_cast %270 : vector<16xf32> to vector<16x1xf32>
    %272 = tpu.reciprocal %271 : vector<16x1xf32> -> vector<16x1xf32>
    %273 = vector.broadcast %272 : vector<16x1xf32> to vector<16x32xf32>
    %274 = arith.mulf %269, %273 : vector<16x32xf32>
    %cst_169 = arith.constant dense<0.000000e+00> : vector<16x32xf32>
    %275 = tpu.matmul %274, %262, %cst_169 {dimension_numbers = #tpu.dot_dimension_numbers<[1], [0], [0], [1], [0, 0, 1, 1], [], []>} : vector<16x32xf32>, vector<32x32xf32>, vector<16x32xf32> -> vector<16x32xf32>
    %276 = arith.addf %241, %275 : vector<16x32xf32>
    %c1_170 = arith.constant 1 : index
    %c0_171 = arith.constant 0 : index
    %c0_172 = arith.constant 0 : index
    %277 = vector.load %arg20[%c1_170, %c0_171, %c0_172] : memref<2x1x32xf32, #tpu.memory_space<vmem>>, vector<1x1x32xf32>
    %278 = vector.shape_cast %277 : vector<1x1x32xf32> to vector<1x32xf32>
    %c1_173 = arith.constant 1 : index
    %c0_174 = arith.constant 0 : index
    %c0_175 = arith.constant 0 : index
    %279 = vector.load %arg21[%c1_173, %c0_174, %c0_175] : memref<2x1x32xf32, #tpu.memory_space<vmem>>, vector<1x1x32xf32>
    %280 = vector.shape_cast %279 : vector<1x1x32xf32> to vector<1x32xf32>
    %cst_176 = arith.constant dense<0.000000e+00> : vector<16xf32>
    %281 = vector.multi_reduction <add>, %276, %cst_176 [1] : vector<16x32xf32> to vector<16xf32>
    %282 = vector.shape_cast %281 : vector<16xf32> to vector<16x1xf32>
    %cst_177 = arith.constant 3.200000e+01 : f32
    %283 = vector.broadcast %cst_177 : f32 to vector<16x1xf32>
    %284 = arith.divf %282, %283 : vector<16x1xf32>
    %285 = vector.broadcast %284 : vector<16x1xf32> to vector<16x32xf32>
    %286 = arith.subf %276, %285 : vector<16x32xf32>
    %287 = arith.mulf %286, %286 : vector<16x32xf32>
    %cst_178 = arith.constant dense<0.000000e+00> : vector<16xf32>
    %288 = vector.multi_reduction <add>, %287, %cst_178 [1] : vector<16x32xf32> to vector<16xf32>
    %289 = vector.shape_cast %288 : vector<16xf32> to vector<16x1xf32>
    %cst_179 = arith.constant 3.200000e+01 : f32
    %290 = vector.broadcast %cst_179 : f32 to vector<16x1xf32>
    %291 = arith.divf %289, %290 : vector<16x1xf32>
    %292 = vector.broadcast %284 : vector<16x1xf32> to vector<16x32xf32>
    %293 = arith.subf %276, %292 : vector<16x32xf32>
    %cst_180 = arith.constant 9.99999974E-6 : f32
    %294 = vector.broadcast %cst_180 : f32 to vector<16x1xf32>
    %295 = arith.addf %291, %294 : vector<16x1xf32>
    %296 = math.rsqrt %295 : vector<16x1xf32>
    %297 = vector.broadcast %296 : vector<16x1xf32> to vector<16x32xf32>
    %298 = arith.mulf %293, %297 : vector<16x32xf32>
    %299 = vector.broadcast %278 : vector<1x32xf32> to vector<16x32xf32>
    %300 = arith.mulf %298, %299 : vector<16x32xf32>
    %301 = vector.broadcast %280 : vector<1x32xf32> to vector<16x32xf32>
    %302 = arith.addf %300, %301 : vector<16x32xf32>
    %c1_181 = arith.constant 1 : index
    %c0_182 = arith.constant 0 : index
    %c0_183 = arith.constant 0 : index
    %303 = vector.load %arg24[%c1_181, %c0_182, %c0_183] : memref<2x32x64xf32, #tpu.memory_space<vmem>>, vector<1x32x64xf32>
    %304 = vector.shape_cast %303 : vector<1x32x64xf32> to vector<32x64xf32>
    %cst_184 = arith.constant dense<0.000000e+00> : vector<16x64xf32>
    %305 = tpu.matmul %302, %304, %cst_184 {dimension_numbers = #tpu.dot_dimension_numbers<[1], [0], [0], [1], [0, 0, 1, 1], [], []>} : vector<16x32xf32>, vector<32x64xf32>, vector<16x64xf32> -> vector<16x64xf32>
    %c1_185 = arith.constant 1 : index
    %c0_186 = arith.constant 0 : index
    %c0_187 = arith.constant 0 : index
    %306 = vector.load %arg25[%c1_185, %c0_186, %c0_187] : memref<2x1x64xf32, #tpu.memory_space<vmem>>, vector<1x1x64xf32>
    %307 = vector.shape_cast %306 : vector<1x1x64xf32> to vector<1x64xf32>
    %308 = vector.broadcast %307 : vector<1x64xf32> to vector<16x64xf32>
    %309 = arith.addf %305, %308 : vector<16x64xf32>
    %cst_188 = arith.constant 0.000000e+00 : f32
    %310 = vector.broadcast %cst_188 : f32 to vector<16x64xf32>
    %311 = arith.maximumf %309, %310 : vector<16x64xf32>
    %c1_189 = arith.constant 1 : index
    %c0_190 = arith.constant 0 : index
    %c0_191 = arith.constant 0 : index
    %312 = vector.load %arg26[%c1_189, %c0_190, %c0_191] : memref<2x64x32xf32, #tpu.memory_space<vmem>>, vector<1x64x32xf32>
    %313 = vector.shape_cast %312 : vector<1x64x32xf32> to vector<64x32xf32>
    %cst_192 = arith.constant dense<0.000000e+00> : vector<16x32xf32>
    %314 = tpu.matmul %311, %313, %cst_192 {dimension_numbers = #tpu.dot_dimension_numbers<[1], [0], [0], [1], [0, 0, 1, 1], [], []>} : vector<16x64xf32>, vector<64x32xf32>, vector<16x32xf32> -> vector<16x32xf32>
    %c1_193 = arith.constant 1 : index
    %c0_194 = arith.constant 0 : index
    %c0_195 = arith.constant 0 : index
    %315 = vector.load %arg27[%c1_193, %c0_194, %c0_195] : memref<2x1x32xf32, #tpu.memory_space<vmem>>, vector<1x1x32xf32>
    %316 = vector.shape_cast %315 : vector<1x1x32xf32> to vector<1x32xf32>
    %317 = vector.broadcast %316 : vector<1x32xf32> to vector<16x32xf32>
    %318 = arith.addf %314, %317 : vector<16x32xf32>
    %319 = arith.addf %302, %318 : vector<16x32xf32>
    %c1_196 = arith.constant 1 : index
    %c0_197 = arith.constant 0 : index
    %c0_198 = arith.constant 0 : index
    %320 = vector.load %arg22[%c1_196, %c0_197, %c0_198] : memref<2x1x32xf32, #tpu.memory_space<vmem>>, vector<1x1x32xf32>
    %321 = vector.shape_cast %320 : vector<1x1x32xf32> to vector<1x32xf32>
    %c1_199 = arith.constant 1 : index
    %c0_200 = arith.constant 0 : index
    %c0_201 = arith.constant 0 : index
    %322 = vector.load %arg23[%c1_199, %c0_200, %c0_201] : memref<2x1x32xf32, #tpu.memory_space<vmem>>, vector<1x1x32xf32>
    %323 = vector.shape_cast %322 : vector<1x1x32xf32> to vector<1x32xf32>
    %cst_202 = arith.constant dense<0.000000e+00> : vector<16xf32>
    %324 = vector.multi_reduction <add>, %319, %cst_202 [1] : vector<16x32xf32> to vector<16xf32>
    %325 = vector.shape_cast %324 : vector<16xf32> to vector<16x1xf32>
    %cst_203 = arith.constant 3.200000e+01 : f32
    %326 = vector.broadcast %cst_203 : f32 to vector<16x1xf32>
    %327 = arith.divf %325, %326 : vector<16x1xf32>
    %328 = vector.broadcast %327 : vector<16x1xf32> to vector<16x32xf32>
    %329 = arith.subf %319, %328 : vector<16x32xf32>
    %330 = arith.mulf %329, %329 : vector<16x32xf32>
    %cst_204 = arith.constant dense<0.000000e+00> : vector<16xf32>
    %331 = vector.multi_reduction <add>, %330, %cst_204 [1] : vector<16x32xf32> to vector<16xf32>
    %332 = vector.shape_cast %331 : vector<16xf32> to vector<16x1xf32>
    %cst_205 = arith.constant 3.200000e+01 : f32
    %333 = vector.broadcast %cst_205 : f32 to vector<16x1xf32>
    %334 = arith.divf %332, %333 : vector<16x1xf32>
    %335 = vector.broadcast %327 : vector<16x1xf32> to vector<16x32xf32>
    %336 = arith.subf %319, %335 : vector<16x32xf32>
    %cst_206 = arith.constant 9.99999974E-6 : f32
    %337 = vector.broadcast %cst_206 : f32 to vector<16x1xf32>
    %338 = arith.addf %334, %337 : vector<16x1xf32>
    %339 = math.rsqrt %338 : vector<16x1xf32>
    %340 = vector.broadcast %339 : vector<16x1xf32> to vector<16x32xf32>
    %341 = arith.mulf %336, %340 : vector<16x32xf32>
    %342 = vector.broadcast %321 : vector<1x32xf32> to vector<16x32xf32>
    %343 = arith.mulf %341, %342 : vector<16x32xf32>
    %344 = vector.broadcast %323 : vector<1x32xf32> to vector<16x32xf32>
    %345 = arith.addf %343, %344 : vector<16x32xf32>
    %c0_207 = arith.constant 0 : index
    %c0_208 = arith.constant 0 : index
    %346 = vector.load %arg28[%c0_207, %c0_208] : memref<1x32xf32, #tpu.memory_space<vmem>>, vector<1x32xf32>
    %c0_209 = arith.constant 0 : index
    %c0_210 = arith.constant 0 : index
    %347 = vector.load %arg29[%c0_209, %c0_210] : memref<1x32xf32, #tpu.memory_space<vmem>>, vector<1x32xf32>
    %cst_211 = arith.constant dense<0.000000e+00> : vector<16xf32>
    %348 = vector.multi_reduction <add>, %345, %cst_211 [1] : vector<16x32xf32> to vector<16xf32>
    %349 = vector.shape_cast %348 : vector<16xf32> to vector<16x1xf32>
    %cst_212 = arith.constant 3.200000e+01 : f32
    %350 = vector.broadcast %cst_212 : f32 to vector<16x1xf32>
    %351 = arith.divf %349, %350 : vector<16x1xf32>
    %352 = vector.broadcast %351 : vector<16x1xf32> to vector<16x32xf32>
    %353 = arith.subf %345, %352 : vector<16x32xf32>
    %354 = arith.mulf %353, %353 : vector<16x32xf32>
    %cst_213 = arith.constant dense<0.000000e+00> : vector<16xf32>
    %355 = vector.multi_reduction <add>, %354, %cst_213 [1] : vector<16x32xf32> to vector<16xf32>
    %356 = vector.shape_cast %355 : vector<16xf32> to vector<16x1xf32>
    %cst_214 = arith.constant 3.200000e+01 : f32
    %357 = vector.broadcast %cst_214 : f32 to vector<16x1xf32>
    %358 = arith.divf %356, %357 : vector<16x1xf32>
    %359 = vector.broadcast %351 : vector<16x1xf32> to vector<16x32xf32>
    %360 = arith.subf %345, %359 : vector<16x32xf32>
    %cst_215 = arith.constant 9.99999974E-6 : f32
    %361 = vector.broadcast %cst_215 : f32 to vector<16x1xf32>
    %362 = arith.addf %358, %361 : vector<16x1xf32>
    %363 = math.rsqrt %362 : vector<16x1xf32>
    %364 = vector.broadcast %363 : vector<16x1xf32> to vector<16x32xf32>
    %365 = arith.mulf %360, %364 : vector<16x32xf32>
    %366 = vector.broadcast %346 : vector<1x32xf32> to vector<16x32xf32>
    %367 = arith.mulf %365, %366 : vector<16x32xf32>
    %368 = vector.broadcast %347 : vector<1x32xf32> to vector<16x32xf32>
    %369 = arith.addf %367, %368 : vector<16x32xf32>
    %c0_216 = arith.constant 0 : index
    %c0_217 = arith.constant 0 : index
    %370 = vector.load %arg30[%c0_216, %c0_217] : memref<32x128xf32, #tpu.memory_space<vmem>>, vector<32x128xf32>
    %cst_218 = arith.constant dense<0.000000e+00> : vector<16x128xf32>
    %371 = tpu.matmul %369, %370, %cst_218 {dimension_numbers = #tpu.dot_dimension_numbers<[1], [0], [0], [1], [0, 0, 1, 1], [], []>} : vector<16x32xf32>, vector<32x128xf32>, vector<16x128xf32> -> vector<16x128xf32>
    %c0_219 = arith.constant 0 : index
    %c0_220 = arith.constant 0 : index
    %372 = vector.load %arg31[%c0_219, %c0_220] : memref<1x128xf32, #tpu.memory_space<vmem>>, vector<1x128xf32>
    %373 = vector.broadcast %372 : vector<1x128xf32> to vector<16x128xf32>
    %374 = arith.addf %371, %373 : vector<16x128xf32>
    %c0_221 = arith.constant 0 : index
    %c0_222 = arith.constant 0 : index
    %375 = vector.load %arg32[%c0_221, %c0_222] : memref<16x128xf32, #tpu.memory_space<vmem>>, vector<16x128xf32>
    tpu.vector_store %arg32[%c0_221, %c0_222], %374 {strides = array<i32>} : memref<16x128xf32, #tpu.memory_space<vmem>>, vector<16x128xf32>,
    return
  }
}

</mosaic_0001>

<llo_original>
// kernel: tpu_custom_call.1
$region0: #{tpu_custom_call.1}
  #allocation0 [shape = 'u32[]', space=smem, size = 0x4, offset = 0x4, fixed_abs, tag = 'smem constant byte address 0x4 - core index']
  #allocation1 [shape = 'u32[144,128]{1,0:T(1,128)}', space=vmem, size = 0x12000, scoped, tag = 'internal scratch']
  %s0 = inlined_call_operand.smem [shape: u32[33], index: -1, kind: input, shape index: {}]
  %s1 = sld [smem:[%s0]]
  %s2 = scalar_lea.smem %s0, 1
  %s3 = sld [smem:[%s2]]
  %s4 = scalar_lea.smem %s0, 2
  %s5 = sld [smem:[%s4]]
  %s6 = scalar_lea.smem %s0, 3
  %s7 = sld [smem:[%s6]]
  %s8 = scalar_lea.smem %s0, 4
  %s9 = sld [smem:[%s8]]
  %s10 = scalar_lea.smem %s0, 5
  %s11 = sld [smem:[%s10]]
  %s12 = scalar_lea.smem %s0, 6
  %s13 = sld [smem:[%s12]]
  %s14 = scalar_lea.smem %s0, 7
  %s15 = sld [smem:[%s14]]
  %s16 = scalar_lea.smem %s0, 8
  %s17 = sld [smem:[%s16]]
  %s18 = scalar_lea.smem %s0, 9
  %s19 = sld [smem:[%s18]]
  %s20 = scalar_lea.smem %s0, 10
  %s21 = sld [smem:[%s20]]
  %s22 = scalar_lea.smem %s0, 11
  %s23 = sld [smem:[%s22]]
  %s24 = scalar_lea.smem %s0, 12
  %s25 = sld [smem:[%s24]]
  %s26 = scalar_lea.smem %s0, 13
  %s27 = sld [smem:[%s26]]
  %s28 = scalar_lea.smem %s0, 14
  %s29 = sld [smem:[%s28]]
  %s30 = scalar_lea.smem %s0, 15
  %s31 = sld [smem:[%s30]]
  %s32 = scalar_lea.smem %s0, 16
  %s33 = sld [smem:[%s32]]
  %s34 = scalar_lea.smem %s0, 17
  %s35 = sld [smem:[%s34]]
  %s36 = scalar_lea.smem %s0, 18
  %s37 = sld [smem:[%s36]]
  %s38 = scalar_lea.smem %s0, 19
  %s39 = sld [smem:[%s38]]
  %s40 = scalar_lea.smem %s0, 20
  %s41 = sld [smem:[%s40]]
  %s42 = scalar_lea.smem %s0, 21
  %s43 = sld [smem:[%s42]]
  %s44 = scalar_lea.smem %s0, 22
  %s45 = sld [smem:[%s44]]
  %s46 = scalar_lea.smem %s0, 23
  %s47 = sld [smem:[%s46]]
  %s48 = scalar_lea.smem %s0, 24
  %s49 = sld [smem:[%s48]]
  %s50 = scalar_lea.smem %s0, 25
  %s51 = sld [smem:[%s50]]
  %s52 = scalar_lea.smem %s0, 26
  %s53 = sld [smem:[%s52]]
  %s54 = scalar_lea.smem %s0, 27
  %s55 = sld [smem:[%s54]]
  %s56 = scalar_lea.smem %s0, 28
  %s57 = sld [smem:[%s56]]
  %s58 = scalar_lea.smem %s0, 29
  %s59 = sld [smem:[%s58]]
  %s60 = scalar_lea.smem %s0, 30
  %s61 = sld [smem:[%s60]]
  %s62 = scalar_lea.smem %s0, 31
  %s63 = sld [smem:[%s62]]
  %s64 = scalar_lea.smem %s0, 32
  %s65 = sld [smem:[%s64]]
  %s66 = sld [smem:[#allocation0]]
  $region222: #{tpu_custom_call.1} parent=0
    _
  %s68 = ssub.s32 1, %s66
  %s69 = scalar_select 0, %s68, %s66
  $region1: #{tpu_custom_call.1} parent=0
    #allocation2 [shape = 'u8[16384]{0}', space=vmem, size = 0x4000, scoped, tag = 'input window, operand 1, single buffered']
    #allocation3 [shape = 's32[1]{0}', space=sflag, size = 0x4, scoped, tag = 'scoped memory for tpu_custom_call.1']
    #allocation4 [shape = 's32[1]{0}', space=sflag, size = 0x4, scoped, tag = 'scoped memory for tpu_custom_call.1']
    #allocation5 [shape = 'u8[8192]{0}', space=vmem, size = 0x2000, scoped, tag = 'input window, operand 2, single buffered']
    #allocation6 [shape = 's32[1]{0}', space=sflag, size = 0x4, scoped, tag = 'scoped memory for tpu_custom_call.1']
    #allocation7 [shape = 'u8[8192]{0}', space=vmem, size = 0x2000, scoped, tag = 'input window, operand 3, single buffered']
    #allocation8 [shape = 'u8[8192]{0}', space=vmem, size = 0x2000, scoped, tag = 'input window, operand 5, single buffered']
    #allocation9 [shape = 's32[1]{0}', space=sflag, size = 0x4, scoped, tag = 'scoped memory for tpu_custom_call.1']
    #allocation10 [shape = 'u8[1024]{0}', space=vmem, size = 0x400, scoped, tag = 'input window, operand 10, single buffered']
    #allocation11 [shape = 'u8[1024]{0}', space=vmem, size = 0x400, scoped, tag = 'input window, operand 11, single buffered']
    #allocation12 [shape = 's32[1]{0}', space=sflag, size = 0x4, scoped, tag = 'scoped memory for tpu_custom_call.1']
    #allocation13 [shape = 'u8[32768]{0}', space=vmem, size = 0x8000, scoped, tag = 'input window, operand 14, single buffered']
    #allocation14 [shape = 'u8[1024]{0}', space=vmem, size = 0x400, scoped, tag = 'input window, operand 15, single buffered']
    #allocation15 [shape = 's32[1]{0}', space=sflag, size = 0x4, scoped, tag = 'scoped memory for tpu_custom_call.1']
    #allocation16 [shape = 'u8[1024]{0}', space=vmem, size = 0x400, scoped, tag = 'input window, operand 16, single buffered']
    #allocation17 [shape = 'u8[1024]{0}', space=vmem, size = 0x400, scoped, tag = 'input window, operand 17, single buffered']
    #allocation18 [shape = 's32[1]{0}', space=sflag, size = 0x4, scoped, tag = 'scoped memory for tpu_custom_call.1']
    #allocation19 [shape = 'u8[1024]{0}', space=vmem, size = 0x400, scoped, tag = 'input window, operand 18, single buffered']
    #allocation20 [shape = 'u8[1024]{0}', space=vmem, size = 0x400, scoped, tag = 'input window, operand 19, single buffered']
    #allocation21 [shape = 's32[1]{0}', space=sflag, size = 0x4, scoped, tag = 'scoped memory for tpu_custom_call.1']
    #allocation22 [shape = 'u8[1024]{0}', space=vmem, size = 0x400, scoped, tag = 'input window, operand 20, single buffered']
    #allocation23 [shape = 'u8[1024]{0}', space=vmem, size = 0x400, scoped, tag = 'input window, operand 21, single buffered']
    #allocation24 [shape = 's32[1]{0}', space=sflag, size = 0x4, scoped, tag = 'scoped memory for tpu_custom_call.1']
    #allocation25 [shape = 'u8[1024]{0}', space=vmem, size = 0x400, scoped, tag = 'input window, operand 22, single buffered']
    #allocation26 [shape = 'u8[1024]{0}', space=vmem, size = 0x400, scoped, tag = 'input window, operand 23, single buffered']
    #allocation27 [shape = 's32[1]{0}', space=sflag, size = 0x4, scoped, tag = 'scoped memory for tpu_custom_call.1']
    #allocation28 [shape = 'u8[1024]{0}', space=vmem, size = 0x400, scoped, tag = 'input window, operand 25, single buffered']
    #allocation29 [shape = 'u8[1024]{0}', space=vmem, size = 0x400, scoped, tag = 'input window, operand 27, single buffered']
    #allocation30 [shape = 's32[1]{0}', space=sflag, size = 0x4, scoped, tag = 'scoped memory for tpu_custom_call.1']
    #allocation31 [shape = 'u8[512]{0}', space=vmem, size = 0x400, scoped, tag = 'input window, operand 28, single buffered']
    #allocation32 [shape = 'u8[512]{0}', space=vmem, size = 0x400, scoped, tag = 'input window, operand 29, single buffered']
    #allocation33 [shape = 's32[1]{0}', space=sflag, size = 0x4, scoped, tag = 'scoped memory for tpu_custom_call.1']
    #allocation34 [shape = 'u8[512]{0}', space=vmem, size = 0x400, scoped, tag = 'input window, operand 31, single buffered']
    #allocation35 [shape = 'u8[8192]{0}', space=vmem, size = 0x2000, scoped, tag = 'output window, operand 0, single buffered']
    %70 = vsyncpa [#allocation3], 0
    %71 = vsyncpa [#allocation6], 0
    %72 = vsyncpa [#allocation9], 0
    %73 = vsyncpa [#allocation12], 0
    %74 = vsyncpa [#allocation15], 0
    %75 = vsyncpa [#allocation18], 0
    %76 = vsyncpa [#allocation21], 0
    %77 = vsyncpa [#allocation24], 0
    %78 = vsyncpa [#allocation27], 0
    %79 = vsyncpa [#allocation30], 0
    %80 = vsyncpa [#allocation33], 0
    %81 = vsyncpa [#allocation4], 0
    // Predicated region
    $region2: #{tpu_custom_call.1} parent=1 // pred_check
      _
    $region3: #{tpu_custom_call.1} parent=1 // pred_check_branch
      %83 = sbr.rel (0) target = $region5
    $region4: #{tpu_custom_call.1} parent=1 // pred_region
      _
    $region5: #{tpu_custom_call.1} parent=1 // pred_fallthru
      _
    // Predicated region
    $region6: #{tpu_custom_call.1} parent=1 // pred_check
      _
    $region7: #{tpu_custom_call.1} parent=1 // pred_check_branch
      %85 = sbr.rel (0) target = $region9
    $region8: #{tpu_custom_call.1} parent=1 // pred_region
      %s87 = ssub.s32 512, 512
      %88 = vsyncadd [#allocation3], %s87
      %s89 = sshll.u32 [#allocation2], 4
      %s90 = int_to_ptr.vmem [resolvable:$true] %s89
      %95 = dma.hbm_to_vmem [thread:$0]  %s3, 512, %s90, [#allocation3], 128, 128, 8
    $region9: #{tpu_custom_call.1} parent=1 // pred_fallthru
      _
    // Predicated region
    $region10: #{tpu_custom_call.1} parent=1 // pred_check
      _
    $region11: #{tpu_custom_call.1} parent=1 // pred_check_branch
      %97 = sbr.rel (0) target = $region13
    $region12: #{tpu_custom_call.1} parent=1 // pred_region
      %s99 = ssub.s32 256, 256
      %100 = vsyncadd [#allocation6], %s99
      %s101 = sshll.u32 [#allocation5], 4
      %s102 = int_to_ptr.vmem [resolvable:$true] %s101
      %107 = dma.hbm_to_vmem [thread:$0]  %s5, 256, %s102, [#allocation6], 128, 128, 8
    $region13: #{tpu_custom_call.1} parent=1 // pred_fallthru
      _
    // Predicated region
    $region14: #{tpu_custom_call.1} parent=1 // pred_check
      _
    $region15: #{tpu_custom_call.1} parent=1 // pred_check_branch
      %109 = sbr.rel (0) target = $region17
    $region16: #{tpu_custom_call.1} parent=1 // pred_region
      %s111 = ssub.s32 256, 256
      %112 = vsyncadd [#allocation6], %s111
      %s113 = sshll.u32 [#allocation7], 4
      %s114 = int_to_ptr.vmem [resolvable:$true] %s113
      %119 = dma.hbm_to_vmem [thread:$0]  %s7, 256, %s114, [#allocation6], 128, 128, 8
    $region17: #{tpu_custom_call.1} parent=1 // pred_fallthru
      _
    // Predicated region
    $region18: #{tpu_custom_call.1} parent=1 // pred_check
      _
    $region19: #{tpu_custom_call.1} parent=1 // pred_check_branch
      %121 = sbr.rel (0) target = $region21
    $region20: #{tpu_custom_call.1} parent=1 // pred_region
      _
    $region21: #{tpu_custom_call.1} parent=1 // pred_fallthru
      _
    // Predicated region
    $region22: #{tpu_custom_call.1} parent=1 // pred_check
      _
    $region23: #{tpu_custom_call.1} parent=1 // pred_check_branch
      %123 = sbr.rel (0) target = $region25
    $region24: #{tpu_custom_call.1} parent=1 // pred_region
      %s125 = ssub.s32 256, 256
      %126 = vsyncadd [#allocation9], %s125
      %s127 = sshll.u32 [#allocation8], 4
      %s128 = int_to_ptr.vmem [resolvable:$true] %s127
      %133 = dma.hbm_to_vmem [thread:$0]  %s11, 256, %s128, [#allocation9], 128, 128, 8
    $region25: #{tpu_custom_call.1} parent=1 // pred_fallthru
      _
    // Predicated region
    $region26: #{tpu_custom_call.1} parent=1 // pred_check
      _
    $region27: #{tpu_custom_call.1} parent=1 // pred_check_branch
      %135 = sbr.rel (0) target = $region29
    $region28: #{tpu_custom_call.1} parent=1 // pred_region
      _
    $region29: #{tpu_custom_call.1} parent=1 // pred_fallthru
      _
    // Predicated region
    $region30: #{tpu_custom_call.1} parent=1 // pred_check
      _
    $region31: #{tpu_custom_call.1} parent=1 // pred_check_branch
      %137 = sbr.rel (0) target = $region33
    $region32: #{tpu_custom_call.1} parent=1 // pred_region
      _
    $region33: #{tpu_custom_call.1} parent=1 // pred_fallthru
      _
    // Predicated region
    $region34: #{tpu_custom_call.1} parent=1 // pred_check
      _
    $region35: #{tpu_custom_call.1} parent=1 // pred_check_branch
      %139 = sbr.rel (0) target = $region37
    $region36: #{tpu_custom_call.1} parent=1 // pred_region
      _
    $region37: #{tpu_custom_call.1} parent=1 // pred_fallthru
      _
    // Predicated region
    $region38: #{tpu_custom_call.1} parent=1 // pred_check
      _
    $region39: #{tpu_custom_call.1} parent=1 // pred_check_branch
      %141 = sbr.rel (0) target = $region41
    $region40: #{tpu_custom_call.1} parent=1 // pred_region
      _
    $region41: #{tpu_custom_call.1} parent=1 // pred_fallthru
      _
    // Predicated region
    $region42: #{tpu_custom_call.1} parent=1 // pred_check
      _
    $region43: #{tpu_custom_call.1} parent=1 // pred_check_branch
      %143 = sbr.rel (0) target = $region45
    $region44: #{tpu_custom_call.1} parent=1 // pred_region
      %s145 = ssub.s32 32, 32
      %146 = vsyncadd [#allocation9], %s145
      %s147 = sshll.u32 [#allocation10], 4
      %s148 = int_to_ptr.vmem [resolvable:$true] %s147
      %153 = dma.hbm_to_vmem [thread:$0]  %s21, 32, %s148, [#allocation9], 16, 16, 1
    $region45: #{tpu_custom_call.1} parent=1 // pred_fallthru
      _
    // Predicated region
    $region46: #{tpu_custom_call.1} parent=1 // pred_check
      _
    $region47: #{tpu_custom_call.1} parent=1 // pred_check_branch
      %155 = sbr.rel (0) target = $region49
    $region48: #{tpu_custom_call.1} parent=1 // pred_region
      %s157 = ssub.s32 32, 32
      %158 = vsyncadd [#allocation12], %s157
      %s159 = sshll.u32 [#allocation11], 4
      %s160 = int_to_ptr.vmem [resolvable:$true] %s159
      %165 = dma.hbm_to_vmem [thread:$0]  %s23, 32, %s160, [#allocation12], 16, 16, 1
    $region49: #{tpu_custom_call.1} parent=1 // pred_fallthru
      _
    // Predicated region
    $region50: #{tpu_custom_call.1} parent=1 // pred_check
      _
    $region51: #{tpu_custom_call.1} parent=1 // pred_check_branch
      %167 = sbr.rel (0) target = $region53
    $region52: #{tpu_custom_call.1} parent=1 // pred_region
      _
    $region53: #{tpu_custom_call.1} parent=1 // pred_fallthru
      _
    // Predicated region
    $region54: #{tpu_custom_call.1} parent=1 // pred_check
      _
    $region55: #{tpu_custom_call.1} parent=1 // pred_check_branch
      %169 = sbr.rel (0) target = $region57
    $region56: #{tpu_custom_call.1} parent=1 // pred_region
      _
    $region57: #{tpu_custom_call.1} parent=1 // pred_fallthru
      _
    // Predicated region
    $region58: #{tpu_custom_call.1} parent=1 // pred_check
      _
    $region59: #{tpu_custom_call.1} parent=1 // pred_check_branch
      %171 = sbr.rel (0) target = $region61
    $region60: #{tpu_custom_call.1} parent=1 // pred_region
      %s173 = ssub.s32 1024, 1024
      %174 = vsyncadd [#allocation12], %s173
      %s175 = sshll.u32 [#allocation13], 4
      %s176 = int_to_ptr.vmem [resolvable:$true] %s175
      %181 = dma.hbm_to_vmem [thread:$0]  %s29, 1024, %s176, [#allocation12], 128, 128, 8
    $region61: #{tpu_custom_call.1} parent=1 // pred_fallthru
      _
    // Predicated region
    $region62: #{tpu_custom_call.1} parent=1 // pred_check
      _
    $region63: #{tpu_custom_call.1} parent=1 // pred_check_branch
      %183 = sbr.rel (0) target = $region65
    $region64: #{tpu_custom_call.1} parent=1 // pred_region
      %s185 = ssub.s32 32, 32
      %186 = vsyncadd [#allocation15], %s185
      %s187 = sshll.u32 [#allocation14], 4
      %s188 = int_to_ptr.vmem [resolvable:$true] %s187
      %193 = dma.hbm_to_vmem [thread:$0]  %s31, 32, %s188, [#allocation15], 16, 16, 1
    $region65: #{tpu_custom_call.1} parent=1 // pred_fallthru
      _
    // Predicated region
    $region66: #{tpu_custom_call.1} parent=1 // pred_check
      _
    $region67: #{tpu_custom_call.1} parent=1 // pred_check_branch
      %195 = sbr.rel (0) target = $region69
    $region68: #{tpu_custom_call.1} parent=1 // pred_region
      %s197 = ssub.s32 32, 32
      %198 = vsyncadd [#allocation15], %s197
      %s199 = sshll.u32 [#allocation16], 4
      %s200 = int_to_ptr.vmem [resolvable:$true] %s199
      %205 = dma.hbm_to_vmem [thread:$0]  %s33, 32, %s200, [#allocation15], 16, 16, 1
    $region69: #{tpu_custom_call.1} parent=1 // pred_fallthru
      _
    // Predicated region
    $region70: #{tpu_custom_call.1} parent=1 // pred_check
      _
    $region71: #{tpu_custom_call.1} parent=1 // pred_check_branch
      %207 = sbr.rel (0) target = $region73
    $region72: #{tpu_custom_call.1} parent=1 // pred_region
      %s209 = ssub.s32 32, 32
      %210 = vsyncadd [#allocation18], %s209
      %s211 = sshll.u32 [#allocation17], 4
      %s212 = int_to_ptr.vmem [resolvable:$true] %s211
      %217 = dma.hbm_to_vmem [thread:$0]  %s35, 32, %s212, [#allocation18], 16, 16, 1
    $region73: #{tpu_custom_call.1} parent=1 // pred_fallthru
      _
    // Predicated region
    $region74: #{tpu_custom_call.1} parent=1 // pred_check
      _
    $region75: #{tpu_custom_call.1} parent=1 // pred_check_branch
      %219 = sbr.rel (0) target = $region77
    $region76: #{tpu_custom_call.1} parent=1 // pred_region
      %s221 = ssub.s32 32, 32
      %222 = vsyncadd [#allocation18], %s221
      %s223 = sshll.u32 [#allocation19], 4
      %s224 = int_to_ptr.vmem [resolvable:$true] %s223
      %229 = dma.hbm_to_vmem [thread:$0]  %s37, 32, %s224, [#allocation18], 16, 16, 1
    $region77: #{tpu_custom_call.1} parent=1 // pred_fallthru
      _
    // Predicated region
    $region78: #{tpu_custom_call.1} parent=1 // pred_check
      _
    $region79: #{tpu_custom_call.1} parent=1 // pred_check_branch
      %231 = sbr.rel (0) target = $region81
    $region80: #{tpu_custom_call.1} parent=1 // pred_region
      %s233 = ssub.s32 32, 32
      %234 = vsyncadd [#allocation21], %s233
      %s235 = sshll.u32 [#allocation20], 4
      %s236 = int_to_ptr.vmem [resolvable:$true] %s235
      %241 = dma.hbm_to_vmem [thread:$0]  %s39, 32, %s236, [#allocation21], 16, 16, 1
    $region81: #{tpu_custom_call.1} parent=1 // pred_fallthru
      _
    // Predicated region
    $region82: #{tpu_custom_call.1} parent=1 // pred_check
      _
    $region83: #{tpu_custom_call.1} parent=1 // pred_check_branch
      %243 = sbr.rel (0) target = $region85
    $region84: #{tpu_custom_call.1} parent=1 // pred_region
      %s245 = ssub.s32 32, 32
      %246 = vsyncadd [#allocation21], %s245
      %s247 = sshll.u32 [#allocation22], 4
      %s248 = int_to_ptr.vmem [resolvable:$true] %s247
      %253 = dma.hbm_to_vmem [thread:$0]  %s41, 32, %s248, [#allocation21], 16, 16, 1
    $region85: #{tpu_custom_call.1} parent=1 // pred_fallthru
      _
    // Predicated region
    $region86: #{tpu_custom_call.1} parent=1 // pred_check
      _
    $region87: #{tpu_custom_call.1} parent=1 // pred_check_branch
      %255 = sbr.rel (0) target = $region89
    $region88: #{tpu_custom_call.1} parent=1 // pred_region
      %s257 = ssub.s32 32, 32
      %258 = vsyncadd [#allocation24], %s257
      %s259 = sshll.u32 [#allocation23], 4
      %s260 = int_to_ptr.vmem [resolvable:$true] %s259
      %265 = dma.hbm_to_vmem [thread:$0]  %s43, 32, %s260, [#allocation24], 16, 16, 1
    $region89: #{tpu_custom_call.1} parent=1 // pred_fallthru
      _
    // Predicated region
    $region90: #{tpu_custom_call.1} parent=1 // pred_check
      _
    $region91: #{tpu_custom_call.1} parent=1 // pred_check_branch
      %267 = sbr.rel (0) target = $region93
    $region92: #{tpu_custom_call.1} parent=1 // pred_region
      %s269 = ssub.s32 32, 32
      %270 = vsyncadd [#allocation24], %s269
      %s271 = sshll.u32 [#allocation25], 4
      %s272 = int_to_ptr.vmem [resolvable:$true] %s271
      %277 = dma.hbm_to_vmem [thread:$0]  %s45, 32, %s272, [#allocation24], 16, 16, 1
    $region93: #{tpu_custom_call.1} parent=1 // pred_fallthru
      _
    // Predicated region
    $region94: #{tpu_custom_call.1} parent=1 // pred_check
      _
    $region95: #{tpu_custom_call.1} parent=1 // pred_check_branch
      %279 = sbr.rel (0) target = $region97
    $region96: #{tpu_custom_call.1} parent=1 // pred_region
      %s281 = ssub.s32 32, 32
      %282 = vsyncadd [#allocation27], %s281
      %s283 = sshll.u32 [#allocation26], 4
      %s284 = int_to_ptr.vmem [resolvable:$true] %s283
      %289 = dma.hbm_to_vmem [thread:$0]  %s47, 32, %s284, [#allocation27], 16, 16, 1
    $region97: #{tpu_custom_call.1} parent=1 // pred_fallthru
      _
    // Predicated region
    $region98: #{tpu_custom_call.1} parent=1 // pred_check
      _
    $region99: #{tpu_custom_call.1} parent=1 // pred_check_branch
      %291 = sbr.rel (0) target = $region101
    $region100: #{tpu_custom_call.1} parent=1 // pred_region
      _
    $region101: #{tpu_custom_call.1} parent=1 // pred_fallthru
      _
    // Predicated region
    $region102: #{tpu_custom_call.1} parent=1 // pred_check
      _
    $region103: #{tpu_custom_call.1} parent=1 // pred_check_branch
      %293 = sbr.rel (0) target = $region105
    $region104: #{tpu_custom_call.1} parent=1 // pred_region
      %s295 = ssub.s32 32, 32
      %296 = vsyncadd [#allocation27], %s295
      %s297 = sshll.u32 [#allocation28], 4
      %s298 = int_to_ptr.vmem [resolvable:$true] %s297
      %303 = dma.hbm_to_vmem [thread:$0]  %s51, 32, %s298, [#allocation27], 16, 16, 1
    $region105: #{tpu_custom_call.1} parent=1 // pred_fallthru
      _
    // Predicated region
    $region106: #{tpu_custom_call.1} parent=1 // pred_check
      _
    $region107: #{tpu_custom_call.1} parent=1 // pred_check_branch
      %305 = sbr.rel (0) target = $region109
    $region108: #{tpu_custom_call.1} parent=1 // pred_region
      _
    $region109: #{tpu_custom_call.1} parent=1 // pred_fallthru
      _
    // Predicated region
    $region110: #{tpu_custom_call.1} parent=1 // pred_check
      _
    $region111: #{tpu_custom_call.1} parent=1 // pred_check_branch
      %307 = sbr.rel (0) target = $region113
    $region112: #{tpu_custom_call.1} parent=1 // pred_region
      %s309 = ssub.s32 32, 32
      %310 = vsyncadd [#allocation30], %s309
      %s311 = sshll.u32 [#allocation29], 4
      %s312 = int_to_ptr.vmem [resolvable:$true] %s311
      %317 = dma.hbm_to_vmem [thread:$0]  %s55, 32, %s312, [#allocation30], 16, 16, 1
    $region113: #{tpu_custom_call.1} parent=1 // pred_fallthru
      _
    // Predicated region
    $region114: #{tpu_custom_call.1} parent=1 // pred_check
      _
    $region115: #{tpu_custom_call.1} parent=1 // pred_check_branch
      %319 = sbr.rel (0) target = $region117
    $region116: #{tpu_custom_call.1} parent=1 // pred_region
      %s321 = ssub.s32 16, 16
      %322 = vsyncadd [#allocation30], %s321
      %s324 = sshll.u32 [#allocation31], 4
      %s325 = int_to_ptr.vmem [resolvable:$true] %s324
      %327 = dma.hbm_to_vmem [thread:$0]  %s57, 16, %s325, [#allocation30]
    $region117: #{tpu_custom_call.1} parent=1 // pred_fallthru
      _
    // Predicated region
    $region118: #{tpu_custom_call.1} parent=1 // pred_check
      _
    $region119: #{tpu_custom_call.1} parent=1 // pred_check_branch
      %329 = sbr.rel (0) target = $region121
    $region120: #{tpu_custom_call.1} parent=1 // pred_region
      %s331 = ssub.s32 16, 16
      %332 = vsyncadd [#allocation33], %s331
      %s334 = sshll.u32 [#allocation32], 4
      %s335 = int_to_ptr.vmem [resolvable:$true] %s334
      %337 = dma.hbm_to_vmem [thread:$0]  %s59, 16, %s335, [#allocation33]
    $region121: #{tpu_custom_call.1} parent=1 // pred_fallthru
      _
    // Predicated region
    $region122: #{tpu_custom_call.1} parent=1 // pred_check
      _
    $region123: #{tpu_custom_call.1} parent=1 // pred_check_branch
      %339 = sbr.rel (0) target = $region125
    $region124: #{tpu_custom_call.1} parent=1 // pred_region
      _
    $region125: #{tpu_custom_call.1} parent=1 // pred_fallthru
      _
    // Predicated region
    $region126: #{tpu_custom_call.1} parent=1 // pred_check
      _
    $region127: #{tpu_custom_call.1} parent=1 // pred_check_branch
      %341 = sbr.rel (0) target = $region129
    $region128: #{tpu_custom_call.1} parent=1 // pred_region
      %s343 = ssub.s32 16, 16
      %344 = vsyncadd [#allocation33], %s343
      %s346 = sshll.u32 [#allocation34], 4
      %s347 = int_to_ptr.vmem [resolvable:$true] %s346
      %349 = dma.hbm_to_vmem [thread:$0]  %s63, 16, %s347, [#allocation33]
    $region129: #{tpu_custom_call.1} parent=1 // pred_fallthru
      _
    // Predicated region
    $region130: #{tpu_custom_call.1} parent=1 // pred_check
      _
    $region131: #{tpu_custom_call.1} parent=1 // pred_check_branch
      %351 = sbr.rel (0) target = $region133
    $region132: #{tpu_custom_call.1} parent=1 // pred_region
      %352 = dma.done [#allocation3], 512
    $region133: #{tpu_custom_call.1} parent=1 // pred_fallthru
      _
    // Predicated region
    $region134: #{tpu_custom_call.1} parent=1 // pred_check
      _
    $region135: #{tpu_custom_call.1} parent=1 // pred_check_branch
      %354 = sbr.rel (0) target = $region137
    $region136: #{tpu_custom_call.1} parent=1 // pred_region
      %355 = dma.done [#allocation6], 256
    $region137: #{tpu_custom_call.1} parent=1 // pred_fallthru
      _
    // Predicated region
    $region138: #{tpu_custom_call.1} parent=1 // pred_check
      _
    $region139: #{tpu_custom_call.1} parent=1 // pred_check_branch
      %357 = sbr.rel (0) target = $region141
    $region140: #{tpu_custom_call.1} parent=1 // pred_region
      %358 = dma.done [#allocation6], 256
    $region141: #{tpu_custom_call.1} parent=1 // pred_fallthru
      _
    // Predicated region
    $region142: #{tpu_custom_call.1} parent=1 // pred_check
      _
    $region143: #{tpu_custom_call.1} parent=1 // pred_check_branch
      %360 = sbr.rel (0) target = $region145
    $region144: #{tpu_custom_call.1} parent=1 // pred_region
      %361 = dma.done [#allocation9], 256
    $region145: #{tpu_custom_call.1} parent=1 // pred_fallthru
      _
    // Predicated region
    $region146: #{tpu_custom_call.1} parent=1 // pred_check
      _
    $region147: #{tpu_custom_call.1} parent=1 // pred_check_branch
      %363 = sbr.rel (0) target = $region149
    $region148: #{tpu_custom_call.1} parent=1 // pred_region
      %364 = dma.done [#allocation9], 32
    $region149: #{tpu_custom_call.1} parent=1 // pred_fallthru
      _
    // Predicated region
    $region150: #{tpu_custom_call.1} parent=1 // pred_check
      _
    $region151: #{tpu_custom_call.1} parent=1 // pred_check_branch
      %366 = sbr.rel (0) target = $region153
    $region152: #{tpu_custom_call.1} parent=1 // pred_region
      %367 = dma.done [#allocation12], 32
    $region153: #{tpu_custom_call.1} parent=1 // pred_fallthru
      _
    // Predicated region
    $region154: #{tpu_custom_call.1} parent=1 // pred_check
      _
    $region155: #{tpu_custom_call.1} parent=1 // pred_check_branch
      %369 = sbr.rel (0) target = $region157
    $region156: #{tpu_custom_call.1} parent=1 // pred_region
      %370 = dma.done [#allocation12], 1024
    $region157: #{tpu_custom_call.1} parent=1 // pred_fallthru
      _
    // Predicated region
    $region158: #{tpu_custom_call.1} parent=1 // pred_check
      _
    $region159: #{tpu_custom_call.1} parent=1 // pred_check_branch
      %372 = sbr.rel (0) target = $region161
    $region160: #{tpu_custom_call.1} parent=1 // pred_region
      %373 = dma.done [#allocation15], 32
    $region161: #{tpu_custom_call.1} parent=1 // pred_fallthru
      _
    // Predicated region
    $region162: #{tpu_custom_call.1} parent=1 // pred_check
      _
    $region163: #{tpu_custom_call.1} parent=1 // pred_check_branch
      %375 = sbr.rel (0) target = $region165
    $region164: #{tpu_custom_call.1} parent=1 // pred_region
      %376 = dma.done [#allocation15], 32
    $region165: #{tpu_custom_call.1} parent=1 // pred_fallthru
      _
    // Predicated region
    $region166: #{tpu_custom_call.1} parent=1 // pred_check
      _
    $region167: #{tpu_custom_call.1} parent=1 // pred_check_branch
      %378 = sbr.rel (0) target = $region169
    $region168: #{tpu_custom_call.1} parent=1 // pred_region
      %379 = dma.done [#allocation18], 32
    $region169: #{tpu_custom_call.1} parent=1 // pred_fallthru
      _
    // Predicated region
    $region170: #{tpu_custom_call.1} parent=1 // pred_check
      _
    $region171: #{tpu_custom_call.1} parent=1 // pred_check_branch
      %381 = sbr.rel (0) target = $region173
    $region172: #{tpu_custom_call.1} parent=1 // pred_region
      %382 = dma.done [#allocation18], 32
    $region173: #{tpu_custom_call.1} parent=1 // pred_fallthru
      _
    // Predicated region
    $region174: #{tpu_custom_call.1} parent=1 // pred_check
      _
    $region175: #{tpu_custom_call.1} parent=1 // pred_check_branch
      %384 = sbr.rel (0) target = $region177
    $region176: #{tpu_custom_call.1} parent=1 // pred_region
      %385 = dma.done [#allocation21], 32
    $region177: #{tpu_custom_call.1} parent=1 // pred_fallthru
      _
    // Predicated region
    $region178: #{tpu_custom_call.1} parent=1 // pred_check
      _
    $region179: #{tpu_custom_call.1} parent=1 // pred_check_branch
      %387 = sbr.rel (0) target = $region181
    $region180: #{tpu_custom_call.1} parent=1 // pred_region
      %388 = dma.done [#allocation21], 32
    $region181: #{tpu_custom_call.1} parent=1 // pred_fallthru
      _
    // Predicated region
    $region182: #{tpu_custom_call.1} parent=1 // pred_check
      _
    $region183: #{tpu_custom_call.1} parent=1 // pred_check_branch
      %390 = sbr.rel (0) target = $region185
    $region184: #{tpu_custom_call.1} parent=1 // pred_region
      %391 = dma.done [#allocation24], 32
    $region185: #{tpu_custom_call.1} parent=1 // pred_fallthru
      _
    // Predicated region
    $region186: #{tpu_custom_call.1} parent=1 // pred_check
      _
    $region187: #{tpu_custom_call.1} parent=1 // pred_check_branch
      %393 = sbr.rel (0) target = $region189
    $region188: #{tpu_custom_call.1} parent=1 // pred_region
      %394 = dma.done [#allocation24], 32
    $region189: #{tpu_custom_call.1} parent=1 // pred_fallthru
      _
    // Predicated region
    $region190: #{tpu_custom_call.1} parent=1 // pred_check
      _
    $region191: #{tpu_custom_call.1} parent=1 // pred_check_branch
      %396 = sbr.rel (0) target = $region193
    $region192: #{tpu_custom_call.1} parent=1 // pred_region
      %397 = dma.done [#allocation27], 32
    $region193: #{tpu_custom_call.1} parent=1 // pred_fallthru
      _
    // Predicated region
    $region194: #{tpu_custom_call.1} parent=1 // pred_check
      _
    $region195: #{tpu_custom_call.1} parent=1 // pred_check_branch
      %399 = sbr.rel (0) target = $region197
    $region196: #{tpu_custom_call.1} parent=1 // pred_region
      %400 = dma.done [#allocation27], 32
    $region197: #{tpu_custom_call.1} parent=1 // pred_fallthru
      _
    // Predicated region
    $region198: #{tpu_custom_call.1} parent=1 // pred_check
      _
    $region199: #{tpu_custom_call.1} parent=1 // pred_check_branch
      %402 = sbr.rel (0) target = $region201
    $region200: #{tpu_custom_call.1} parent=1 // pred_region
      %403 = dma.done [#allocation30], 32
    $region201: #{tpu_custom_call.1} parent=1 // pred_fallthru
      _
    // Predicated region
    $region202: #{tpu_custom_call.1} parent=1 // pred_check
      _
    $region203: #{tpu_custom_call.1} parent=1 // pred_check_branch
      %405 = sbr.rel (0) target = $region205
    $region204: #{tpu_custom_call.1} parent=1 // pred_region
      %406 = dma.done [#allocation30], 16
    $region205: #{tpu_custom_call.1} parent=1 // pred_fallthru
      _
    // Predicated region
    $region206: #{tpu_custom_call.1} parent=1 // pred_check
      _
    $region207: #{tpu_custom_call.1} parent=1 // pred_check_branch
      %408 = sbr.rel (0) target = $region209
    $region208: #{tpu_custom_call.1} parent=1 // pred_region
      %409 = dma.done [#allocation33], 16
    $region209: #{tpu_custom_call.1} parent=1 // pred_fallthru
      _
    // Predicated region
    $region210: #{tpu_custom_call.1} parent=1 // pred_check
      _
    $region211: #{tpu_custom_call.1} parent=1 // pred_check_branch
      %411 = sbr.rel (0) target = $region213
    $region212: #{tpu_custom_call.1} parent=1 // pred_region
      %412 = dma.done [#allocation33], 16
    $region213: #{tpu_custom_call.1} parent=1 // pred_fallthru
      _
    %v413 = vld [vmem:[#allocation5] sm:$0xff]
    %v414 = vld [vmem:[#allocation5 + $0x8] sm:$0xff]
    %v415 = vld [vmem:[#allocation7] sm:$0xff]
    %v416 = vld [vmem:[#allocation7 + $0x8] sm:$0xff]
    %v417 = vld [vmem:[#allocation2] sm:$0xff]
    %v418 = vld [vmem:[#allocation2 + $0x8] sm:$0xff]
    %v419 = vld [vmem:[#allocation2 + $0x10] sm:$0xff]
    %v420 = vld [vmem:[#allocation2 + $0x18] sm:$0xff]
    %v421 = vld [vmem:[%s1] sm:$0xff]
    %v422 = vld [vmem:[%s1 + $0x8] sm:$0xff]
    %v423 = vlaneseq
    %v424 = vand.u32 %v423, 127
    %425 = vset.pattern.permute.xlu0 0
    %426 = vperm.xlu0 %425, %v421
    %v427 = vpop.permute.xlu0 %426
    %428 = vset.pattern.permute.xlu0 0
    %429 = vperm.xlu0 %428, %v422
    %v430 = vpop.permute.xlu0 %429
    %vm431 = vcmp.eq.s32.totalorder %v424, %v427
    %vm432 = vcmp.eq.s32.totalorder %v424, %v430
    %v433 = vsel %vm431, 1, 0
    %v434 = vsel %vm432, 1, 0
    %v435 = vcvt.s32.f32 %v433
    %v436 = vcvt.s32.f32 %v434
    %v437 = vld [vmem:[%s9] sm:$0xff]
    %v438 = vld [vmem:[%s9 + $0x8] sm:$0xff]
    %v439 = vld [vmem:[%s9 + $0x10] sm:$0xff]
    %v440 = vld [vmem:[%s9 + $0x18] sm:$0xff]
    %v441 = vld [vmem:[%s9 + $0x20] sm:$0xff]
    %v442 = vld [vmem:[%s9 + $0x28] sm:$0xff]
    %v443 = vld [vmem:[%s9 + $0x30] sm:$0xff]
    %v444 = vld [vmem:[%s9 + $0x38] sm:$0xff]
    %v445 = vld [vmem:[%s9 + $0x40] sm:$0xff]
    %v446 = vld [vmem:[%s9 + $0x48] sm:$0xff]
    %v447 = vld [vmem:[%s9 + $0x50] sm:$0xff]
    %v448 = vld [vmem:[%s9 + $0x58] sm:$0xff]
    %v449 = vld [vmem:[%s9 + $0x60] sm:$0xff]
    %v450 = vld [vmem:[%s9 + $0x68] sm:$0xff]
    %v451 = vld [vmem:[%s9 + $0x70] sm:$0xff]
    %v452 = vld [vmem:[%s9 + $0x78] sm:$0xff]
    %453 = vmatprep.subr.mxu0 0.0
    %454 = vmatpush1.msra.mxu0 %v437
    %455 = vmatprep.subr.mxu0 0.0
    %456 = vmatpush1.msra.mxu0 %v438
    %457 = vmatprep.subr.mxu0 0.0
    %458 = vmatpush1.msra.mxu0 %v439
    %459 = vmatprep.subr.mxu0 0.0
    %460 = vmatpush1.msra.mxu0 %v440
    %461 = vmatprep.subr.mxu0 0.0
    %462 = vmatpush1.msra.mxu0 %v441
    %463 = vmatprep.subr.mxu0 0.0
    %464 = vmatpush1.msra.mxu0 %v442
    %465 = vmatprep.subr.mxu0 0.0
    %466 = vmatpush1.msra.mxu0 %v443
    %467 = vmatprep.subr.mxu0 0.0
    %468 = vmatpush1.msra.mxu0 %v444
    %469 = vmatprep.subr.mxu0 0.0
    %470 = vmatpush1.msra.mxu0 %v445
    %471 = vmatprep.subr.mxu0 0.0
    %472 = vmatpush1.msra.mxu0 %v446
    %473 = vmatprep.subr.mxu0 0.0
    %474 = vmatpush1.msra.mxu0 %v447
    %475 = vmatprep.subr.mxu0 0.0
    %476 = vmatpush1.msra.mxu0 %v448
    %477 = vmatprep.subr.mxu0 0.0
    %478 = vmatpush1.msra.mxu0 %v449
    %479 = vmatprep.subr.mxu0 0.0
    %480 = vmatpush1.msra.mxu0 %v450
    %481 = vmatprep.subr.mxu0 0.0
    %482 = vmatpush1.msra.mxu0 %v451
    %483 = vmatprep.subr.mxu0 0.0
    %484 = vmatpush1.msra.mxu0 %v452
    %485 = vmatprep.subr.mxu0 0.0
    %486 = vmatpush1.msra.mxu0 0.0
    %487 = vmatprep.subr.mxu0 0.0
    %488 = vmatpush1.msra.mxu0 0.0
    %489 = vmatprep.subr.mxu0 0.0
    %490 = vmatpush1.msra.mxu0 0.0
    %491 = vmatprep.subr.mxu0 0.0
    %492 = vmatpush1.msra.mxu0 0.0
    %493 = vmatprep.subr.mxu0 0.0
    %494 = vmatpush1.msra.mxu0 0.0
    %495 = vmatprep.subr.mxu0 0.0
    %496 = vmatpush1.msra.mxu0 0.0
    %497 = vmatprep.subr.mxu0 0.0
    %498 = vmatpush1.msra.mxu0 0.0
    %499 = vmatprep.subr.mxu0 0.0
    %500 = vmatpush1.msra.mxu0 0.0
    %501 = vmatprep.subr.mxu0 0.0
    %502 = vmatpush1.msra.mxu0 0.0
    %503 = vmatprep.subr.mxu0 0.0
    %504 = vmatpush1.msra.mxu0 0.0
    %505 = vmatprep.subr.mxu0 0.0
    %506 = vmatpush1.msra.mxu0 0.0
    %507 = vmatprep.subr.mxu0 0.0
    %508 = vmatpush1.msra.mxu0 0.0
    %509 = vmatprep.subr.mxu0 0.0
    %510 = vmatpush1.msra.mxu0 0.0
    %511 = vmatprep.subr.mxu0 0.0
    %512 = vmatpush1.msra.mxu0 0.0
    %513 = vmatprep.subr.mxu0 0.0
    %514 = vmatpush1.msra.mxu0 0.0
    %515 = vmatprep.subr.mxu0 0.0
    %516 = vmatpush1.msra.mxu0 0.0
    %517 = vmatprep.mubr.f32.mxu0 0.0
    %518 = vmatmul.mubr.f32.gmra.mrb[0].mxu0 %v435
    %v519 = vpop.f32.mrb[0].mxu0
    %v520 = vadd.f32 0.0, %v519
    %v521 = vpop.f32.mrb[0].mxu0
    %522 = vmatprep.mubr.f32.mxu0 0.0
    %523 = vmatmul.mubr.f32.gmra.mrb[0].mxu0 %v436
    %v524 = vpop.f32.mrb[0].mxu0
    %v525 = vadd.f32 0.0, %v524
    %v526 = vpop.f32.mrb[0].mxu0
    %527 = vdwg.mxu0
    %v528 = vld [vmem:[#allocation8] sm:$0xff]
    %v529 = vmul.f32 %v520, 5.656854
    %v530 = vmul.f32 %v525, 5.656854
    %v531 = vadd.f32 %v529, %v528
    %v532 = vadd.f32 %v530, %v528
    %v533 = vld [vmem:[%s13] sm:$0xff]
    %v534 = vld [vmem:[%s13 + $0x8] sm:$0xff]
    %v535 = vld [vmem:[%s13 + $0x10] sm:$0xff]
    %v536 = vld [vmem:[%s13 + $0x18] sm:$0xff]
    %v537 = vld [vmem:[%s19] sm:$0x1]
    %v539 = vlaneseq
    %v540 = vshrl.u32 %v539, 7
    %v541 = vsub.s32 0, %v540
    %v542 = vrot.slane %v537, %v541
    %vm544 = vcmask 261120
    %v546 = vsel %vm544, %v531, 0
    %v549 = vsel %vm544, %v532, 0
    %551 = vmatprep.subr.mxu0 0.0
    %552 = vmatpush1.msra.mxu0 %v533
    %553 = vmatprep.subr.mxu0 0.0
    %554 = vmatpush1.msra.mxu0 %v534
    %555 = vmatprep.subr.mxu0 0.0
    %556 = vmatpush1.msra.mxu0 %v535
    %557 = vmatprep.subr.mxu0 0.0
    %558 = vmatpush1.msra.mxu0 %v536
    %559 = vmatprep.subr.mxu0 0.0
    %560 = vmatpush1.msra.mxu0 0.0
    %561 = vmatprep.subr.mxu0 0.0
    %562 = vmatpush1.msra.mxu0 0.0
    %563 = vmatprep.subr.mxu0 0.0
    %564 = vmatpush1.msra.mxu0 0.0
    %565 = vmatprep.subr.mxu0 0.0
    %566 = vmatpush1.msra.mxu0 0.0
    %567 = vmatprep.subr.mxu0 0.0
    %568 = vmatpush1.msra.mxu0 0.0
    %569 = vmatprep.subr.mxu0 0.0
    %570 = vmatpush1.msra.mxu0 0.0
    %571 = vmatprep.subr.mxu0 0.0
    %572 = vmatpush1.msra.mxu0 0.0
    %573 = vmatprep.subr.mxu0 0.0
    %574 = vmatpush1.msra.mxu0 0.0
    %575 = vmatprep.subr.mxu0 0.0
    %576 = vmatpush1.msra.mxu0 0.0
    %577 = vmatprep.subr.mxu0 0.0
    %578 = vmatpush1.msra.mxu0 0.0
    %579 = vmatprep.subr.mxu0 0.0
    %580 = vmatpush1.msra.mxu0 0.0
    %581 = vmatprep.subr.mxu0 0.0
    %582 = vmatpush1.msra.mxu0 0.0
    %583 = vmatprep.subr.mxu0 0.0
    %584 = vmatpush1.msra.mxu0 0.0
    %585 = vmatprep.subr.mxu0 0.0
    %586 = vmatpush1.msra.mxu0 0.0
    %587 = vmatprep.subr.mxu0 0.0
    %588 = vmatpush1.msra.mxu0 0.0
    %589 = vmatprep.subr.mxu0 0.0
    %590 = vmatpush1.msra.mxu0 0.0
    %591 = vmatprep.subr.mxu0 0.0
    %592 = vmatpush1.msra.mxu0 0.0
    %593 = vmatprep.subr.mxu0 0.0
    %594 = vmatpush1.msra.mxu0 0.0
    %595 = vmatprep.subr.mxu0 0.0
    %596 = vmatpush1.msra.mxu0 0.0
    %597 = vmatprep.subr.mxu0 0.0
    %598 = vmatpush1.msra.mxu0 0.0
    %599 = vmatprep.subr.mxu0 0.0
    %600 = vmatpush1.msra.mxu0 0.0
    %601 = vmatprep.subr.mxu0 0.0
    %602 = vmatpush1.msra.mxu0 0.0
    %603 = vmatprep.subr.mxu0 0.0
    %604 = vmatpush1.msra.mxu0 0.0
    %605 = vmatprep.subr.mxu0 0.0
    %606 = vmatpush1.msra.mxu0 0.0
    %607 = vmatprep.subr.mxu0 0.0
    %608 = vmatpush1.msra.mxu0 0.0
    %609 = vmatprep.subr.mxu0 0.0
    %610 = vmatpush1.msra.mxu0 0.0
    %611 = vmatprep.subr.mxu0 0.0
    %612 = vmatpush1.msra.mxu0 0.0
    %613 = vmatprep.subr.mxu0 0.0
    %614 = vmatpush1.msra.mxu0 0.0
    %615 = vmatprep.mubr.f32.mxu0 0.0
    %616 = vmatmul.mubr.f32.gmra.mrb[0].mxu0 %v546
    %v617 = vpop.f32.mrb[0].mxu0
    %v618 = vadd.f32 %v542, %v617
    %v619 = vpop.f32.mrb[0].mxu0
    %620 = vmatprep.mubr.f32.mxu0 0.0
    %621 = vmatmul.mubr.f32.gmra.mrb[0].mxu0 %v549
    %v622 = vpop.f32.mrb[0].mxu0
    %v623 = vadd.f32 %v542, %v622
    %v624 = vpop.f32.mrb[0].mxu0
    %625 = vdwg.mxu0
    %v626 = vld [vmem:[%s15] sm:$0xff]
    %v627 = vld [vmem:[%s15 + $0x8] sm:$0xff]
    %v628 = vld [vmem:[%s15 + $0x10] sm:$0xff]
    %v629 = vld [vmem:[%s15 + $0x18] sm:$0xff]
    %v630 = vld [vmem:[#allocation10] sm:$0x1]
    %v632 = vlaneseq
    %v633 = vshrl.u32 %v632, 7
    %v634 = vsub.s32 0, %v633
    %v635 = vrot.slane %v630, %v634
    %637 = vmatprep.subr.mxu0 0.0
    %638 = vmatpush1.msra.mxu0 %v626
    %639 = vmatprep.subr.mxu0 0.0
    %640 = vmatpush1.msra.mxu0 %v627
    %641 = vmatprep.subr.mxu0 0.0
    %642 = vmatpush1.msra.mxu0 %v628
    %643 = vmatprep.subr.mxu0 0.0
    %644 = vmatpush1.msra.mxu0 %v629
    %645 = vmatprep.subr.mxu0 0.0
    %646 = vmatpush1.msra.mxu0 0.0
    %647 = vmatprep.subr.mxu0 0.0
    %648 = vmatpush1.msra.mxu0 0.0
    %649 = vmatprep.subr.mxu0 0.0
    %650 = vmatpush1.msra.mxu0 0.0
    %651 = vmatprep.subr.mxu0 0.0
    %652 = vmatpush1.msra.mxu0 0.0
    %653 = vmatprep.subr.mxu0 0.0
    %654 = vmatpush1.msra.mxu0 0.0
    %655 = vmatprep.subr.mxu0 0.0
    %656 = vmatpush1.msra.mxu0 0.0
    %657 = vmatprep.subr.mxu0 0.0
    %658 = vmatpush1.msra.mxu0 0.0
    %659 = vmatprep.subr.mxu0 0.0
    %660 = vmatpush1.msra.mxu0 0.0
    %661 = vmatprep.subr.mxu0 0.0
    %662 = vmatpush1.msra.mxu0 0.0
    %663 = vmatprep.subr.mxu0 0.0
    %664 = vmatpush1.msra.mxu0 0.0
    %665 = vmatprep.subr.mxu0 0.0
    %666 = vmatpush1.msra.mxu0 0.0
    %667 = vmatprep.subr.mxu0 0.0
    %668 = vmatpush1.msra.mxu0 0.0
    %669 = vmatprep.subr.mxu0 0.0
    %670 = vmatpush1.msra.mxu0 0.0
    %671 = vmatprep.subr.mxu0 0.0
    %672 = vmatpush1.msra.mxu0 0.0
    %673 = vmatprep.subr.mxu0 0.0
    %674 = vmatpush1.msra.mxu0 0.0
    %675 = vmatprep.subr.mxu0 0.0
    %676 = vmatpush1.msra.mxu0 0.0
    %677 = vmatprep.subr.mxu0 0.0
    %678 = vmatpush1.msra.mxu0 0.0
    %679 = vmatprep.subr.mxu0 0.0
    %680 = vmatpush1.msra.mxu0 0.0
    %681 = vmatprep.subr.mxu0 0.0
    %682 = vmatpush1.msra.mxu0 0.0
    %683 = vmatprep.subr.mxu0 0.0
    %684 = vmatpush1.msra.mxu0 0.0
    %685 = vmatprep.subr.mxu0 0.0
    %686 = vmatpush1.msra.mxu0 0.0
    %687 = vmatprep.subr.mxu0 0.0
    %688 = vmatpush1.msra.mxu0 0.0
    %689 = vmatprep.subr.mxu0 0.0
    %690 = vmatpush1.msra.mxu0 0.0
    %691 = vmatprep.subr.mxu0 0.0
    %692 = vmatpush1.msra.mxu0 0.0
    %693 = vmatprep.subr.mxu0 0.0
    %694 = vmatpush1.msra.mxu0 0.0
    %695 = vmatprep.subr.mxu0 0.0
    %696 = vmatpush1.msra.mxu0 0.0
    %697 = vmatprep.subr.mxu0 0.0
    %698 = vmatpush1.msra.mxu0 0.0
    %699 = vmatprep.subr.mxu0 0.0
    %700 = vmatpush1.msra.mxu0 0.0
    %701 = vmatprep.mubr.f32.mxu0 0.0
    %702 = vmatmul.mubr.f32.gmra.mrb[0].mxu0 %v546
    %v703 = vpop.f32.mrb[0].mxu0
    %v704 = vadd.f32 %v635, %v703
    %v705 = vpop.f32.mrb[0].mxu0
    %706 = vmatprep.mubr.f32.mxu0 0.0
    %707 = vmatmul.mubr.f32.gmra.mrb[0].mxu0 %v549
    %v708 = vpop.f32.mrb[0].mxu0
    %v709 = vadd.f32 %v635, %v708
    %v710 = vpop.f32.mrb[0].mxu0
    %711 = vdwg.mxu0
    %v712 = vld [vmem:[%s17] sm:$0xff]
    %v713 = vld [vmem:[%s17 + $0x8] sm:$0xff]
    %v714 = vld [vmem:[%s17 + $0x10] sm:$0xff]
    %v715 = vld [vmem:[%s17 + $0x18] sm:$0xff]
    %v716 = vld [vmem:[#allocation11] sm:$0x1]
    %v718 = vlaneseq
    %v719 = vshrl.u32 %v718, 7
    %v720 = vsub.s32 0, %v719
    %v721 = vrot.slane %v716, %v720
    %723 = vmatprep.subr.mxu0 0.0
    %724 = vmatpush1.msra.mxu0 %v712
    %725 = vmatprep.subr.mxu0 0.0
    %726 = vmatpush1.msra.mxu0 %v713
    %727 = vmatprep.subr.mxu0 0.0
    %728 = vmatpush1.msra.mxu0 %v714
    %729 = vmatprep.subr.mxu0 0.0
    %730 = vmatpush1.msra.mxu0 %v715
    %731 = vmatprep.subr.mxu0 0.0
    %732 = vmatpush1.msra.mxu0 0.0
    %733 = vmatprep.subr.mxu0 0.0
    %734 = vmatpush1.msra.mxu0 0.0
    %735 = vmatprep.subr.mxu0 0.0
    %736 = vmatpush1.msra.mxu0 0.0
    %737 = vmatprep.subr.mxu0 0.0
    %738 = vmatpush1.msra.mxu0 0.0
    %739 = vmatprep.subr.mxu0 0.0
    %740 = vmatpush1.msra.mxu0 0.0
    %741 = vmatprep.subr.mxu0 0.0
    %742 = vmatpush1.msra.mxu0 0.0
    %743 = vmatprep.subr.mxu0 0.0
    %744 = vmatpush1.msra.mxu0 0.0
    %745 = vmatprep.subr.mxu0 0.0
    %746 = vmatpush1.msra.mxu0 0.0
    %747 = vmatprep.subr.mxu0 0.0
    %748 = vmatpush1.msra.mxu0 0.0
    %749 = vmatprep.subr.mxu0 0.0
    %750 = vmatpush1.msra.mxu0 0.0
    %751 = vmatprep.subr.mxu0 0.0
    %752 = vmatpush1.msra.mxu0 0.0
    %753 = vmatprep.subr.mxu0 0.0
    %754 = vmatpush1.msra.mxu0 0.0
    %755 = vmatprep.subr.mxu0 0.0
    %756 = vmatpush1.msra.mxu0 0.0
    %757 = vmatprep.subr.mxu0 0.0
    %758 = vmatpush1.msra.mxu0 0.0
    %759 = vmatprep.subr.mxu0 0.0
    %760 = vmatpush1.msra.mxu0 0.0
    %761 = vmatprep.subr.mxu0 0.0
    %762 = vmatpush1.msra.mxu0 0.0
    %763 = vmatprep.subr.mxu0 0.0
    %764 = vmatpush1.msra.mxu0 0.0
    %765 = vmatprep.subr.mxu0 0.0
    %766 = vmatpush1.msra.mxu0 0.0
    %767 = vmatprep.subr.mxu0 0.0
    %768 = vmatpush1.msra.mxu0 0.0
    %769 = vmatprep.subr.mxu0 0.0
    %770 = vmatpush1.msra.mxu0 0.0
    %771 = vmatprep.subr.mxu0 0.0
    %772 = vmatpush1.msra.mxu0 0.0
    %773 = vmatprep.subr.mxu0 0.0
    %774 = vmatpush1.msra.mxu0 0.0
    %775 = vmatprep.subr.mxu0 0.0
    %776 = vmatpush1.msra.mxu0 0.0
    %777 = vmatprep.subr.mxu0 0.0
    %778 = vmatpush1.msra.mxu0 0.0
    %779 = vmatprep.subr.mxu0 0.0
    %780 = vmatpush1.msra.mxu0 0.0
    %781 = vmatprep.subr.mxu0 0.0
    %782 = vmatpush1.msra.mxu0 0.0
    %783 = vmatprep.subr.mxu0 0.0
    %784 = vmatpush1.msra.mxu0 0.0
    %785 = vmatprep.subr.mxu0 0.0
    %786 = vmatpush1.msra.mxu0 0.0
    %787 = vmatprep.mubr.f32.mxu0 0.0
    %788 = vmatmul.mubr.f32.gmra.mrb[0].mxu0 %v546
    %v789 = vpop.f32.mrb[0].mxu0
    %v790 = vadd.f32 %v721, %v789
    %v791 = vpop.f32.mrb[0].mxu0
    %792 = vmatprep.mubr.f32.mxu0 0.0
    %793 = vmatmul.mubr.f32.gmra.mrb[0].mxu0 %v549
    %v794 = vpop.f32.mrb[0].mxu0
    %v795 = vadd.f32 %v721, %v794
    %v796 = vpop.f32.mrb[0].mxu0
    %797 = vdwg.mxu0
    %v799 = vsel %vm544, %v618, 0
    %v802 = vsel %vm544, %v623, 0
    %v805 = vsel %vm544, %v704, 0
    %v808 = vsel %vm544, %v709, 0
    %810 = vmatprep.subr.mxu0 0.0
    %811 = vmatpush1.xpose.msra.mxu0 %v805
    %812 = vmatprep.subr.mxu0 0.0
    %813 = vmatpush1.xpose.msra.mxu0 %v808
    %814 = vmatprep.subr.mxu0 0.0
    %815 = vmatpush1.xpose.msra.mxu0 0.0
    %816 = vmatprep.subr.mxu0 0.0
    %817 = vmatpush1.xpose.msra.mxu0 0.0
    %818 = vmatprep.subr.mxu0 0.0
    %819 = vmatpush1.xpose.msra.mxu0 0.0
    %820 = vmatprep.subr.mxu0 0.0
    %821 = vmatpush1.xpose.msra.mxu0 0.0
    %822 = vmatprep.subr.mxu0 0.0
    %823 = vmatpush1.xpose.msra.mxu0 0.0
    %824 = vmatprep.subr.mxu0 0.0
    %825 = vmatpush1.xpose.msra.mxu0 0.0
    %826 = vmatprep.subr.mxu0 0.0
    %827 = vmatpush1.xpose.msra.mxu0 0.0
    %828 = vmatprep.subr.mxu0 0.0
    %829 = vmatpush1.xpose.msra.mxu0 0.0
    %830 = vmatprep.subr.mxu0 0.0
    %831 = vmatpush1.xpose.msra.mxu0 0.0
    %832 = vmatprep.subr.mxu0 0.0
    %833 = vmatpush1.xpose.msra.mxu0 0.0
    %834 = vmatprep.subr.mxu0 0.0
    %835 = vmatpush1.xpose.msra.mxu0 0.0
    %836 = vmatprep.subr.mxu0 0.0
    %837 = vmatpush1.xpose.msra.mxu0 0.0
    %838 = vmatprep.subr.mxu0 0.0
    %839 = vmatpush1.xpose.msra.mxu0 0.0
    %840 = vmatprep.subr.mxu0 0.0
    %841 = vmatpush1.xpose.msra.mxu0 0.0
    %842 = vmatprep.subr.mxu0 0.0
    %843 = vmatpush1.xpose.msra.mxu0 0.0
    %844 = vmatprep.subr.mxu0 0.0
    %845 = vmatpush1.xpose.msra.mxu0 0.0
    %846 = vmatprep.subr.mxu0 0.0
    %847 = vmatpush1.xpose.msra.mxu0 0.0
    %848 = vmatprep.subr.mxu0 0.0
    %849 = vmatpush1.xpose.msra.mxu0 0.0
    %850 = vmatprep.subr.mxu0 0.0
    %851 = vmatpush1.xpose.msra.mxu0 0.0
    %852 = vmatprep.subr.mxu0 0.0
    %853 = vmatpush1.xpose.msra.mxu0 0.0
    %854 = vmatprep.subr.mxu0 0.0
    %855 = vmatpush1.xpose.msra.mxu0 0.0
    %856 = vmatprep.subr.mxu0 0.0
    %857 = vmatpush1.xpose.msra.mxu0 0.0
    %858 = vmatprep.subr.mxu0 0.0
    %859 = vmatpush1.xpose.msra.mxu0 0.0
    %860 = vmatprep.subr.mxu0 0.0
    %861 = vmatpush1.xpose.msra.mxu0 0.0
    %862 = vmatprep.subr.mxu0 0.0
    %863 = vmatpush1.xpose.msra.mxu0 0.0
    %864 = vmatprep.subr.mxu0 0.0
    %865 = vmatpush1.xpose.msra.mxu0 0.0
    %866 = vmatprep.subr.mxu0 0.0
    %867 = vmatpush1.xpose.msra.mxu0 0.0
    %868 = vmatprep.subr.mxu0 0.0
    %869 = vmatpush1.xpose.msra.mxu0 0.0
    %870 = vmatprep.subr.mxu0 0.0
    %871 = vmatpush1.xpose.msra.mxu0 0.0
    %872 = vmatprep.subr.mxu0 0.0
    %873 = vmatpush1.xpose.msra.mxu0 0.0
    %874 = vmatprep.mubr.f32.mxu0 0.0
    %875 = vmatmul.mubr.f32.gmra.mrb[0].mxu0 %v799
    %v876 = vpop.f32.mrb[0].mxu0
    %v877 = vadd.f32 %v413, %v876
    %v878 = vpop.f32.mrb[0].mxu0
    %879 = vmatprep.mubr.f32.mxu0 0.0
    %880 = vmatmul.mubr.f32.gmra.mrb[0].mxu0 %v802
    %v881 = vpop.f32.mrb[0].mxu0
    %v882 = vadd.f32 %v414, %v881
    %v883 = vpop.f32.mrb[0].mxu0
    %884 = vdwg.mxu0
    %vm885 = vcmask 130048
    %v886 = vsel %vm885, %v877, -inf
    %887 = vmax.xlane.f32.xlu0 %v886
    %v888 = vpop.xlane.xlu0 %887
    %v889 = vsel %vm885, %v882, -inf
    %890 = vmax.xlane.f32.xlu0 %v889
    %v891 = vpop.xlane.xlu0 %890
    %v892 = vsub.f32 %v877, %v888
    %v893 = vsub.f32 %v882, %v891
    %v894 = vmul.f32 %v892, 1.442695
    %v895 = vpow.pop %v894
    %v896 = vmul.f32 %v893, 1.442695
    %v897 = vpow.pop %v896
    %v898 = vsel %vm885, %v895, 0.0
    %899 = vadd.xlane.f32.xlu0 %v898
    %v900 = vpop.xlane.xlu0 %899
    %v901 = vsel %vm885, %v897, 0.0
    %902 = vadd.xlane.f32.xlu0 %v901
    %v903 = vpop.xlane.xlu0 %902
    %v904 = vrcp.pop %v900
    %v905 = vrcp.pop %v903
    %v906 = vmul.f32 %v895, %v904
    %v907 = vmul.f32 %v897, %v905
    %v909 = vsel %vm885, %v906, 0
    %v912 = vsel %vm885, %v907, 0
    %914 = vmatprep.subr.mxu0 0.0
    %915 = vmatpush1.msra.mxu0 %v790
    %916 = vmatprep.subr.mxu0 0.0
    %917 = vmatpush1.msra.mxu0 %v795
    %918 = vmatprep.subr.mxu0 0.0
    %919 = vmatpush1.msra.mxu0 0.0
    %920 = vmatprep.subr.mxu0 0.0
    %921 = vmatpush1.msra.mxu0 0.0
    %922 = vmatprep.subr.mxu0 0.0
    %923 = vmatpush1.msra.mxu0 0.0
    %924 = vmatprep.subr.mxu0 0.0
    %925 = vmatpush1.msra.mxu0 0.0
    %926 = vmatprep.subr.mxu0 0.0
    %927 = vmatpush1.msra.mxu0 0.0
    %928 = vmatprep.subr.mxu0 0.0
    %929 = vmatpush1.msra.mxu0 0.0
    %930 = vmatprep.subr.mxu0 0.0
    %931 = vmatpush1.msra.mxu0 0.0
    %932 = vmatprep.subr.mxu0 0.0
    %933 = vmatpush1.msra.mxu0 0.0
    %934 = vmatprep.subr.mxu0 0.0
    %935 = vmatpush1.msra.mxu0 0.0
    %936 = vmatprep.subr.mxu0 0.0
    %937 = vmatpush1.msra.mxu0 0.0
    %938 = vmatprep.subr.mxu0 0.0
    %939 = vmatpush1.msra.mxu0 0.0
    %940 = vmatprep.subr.mxu0 0.0
    %941 = vmatpush1.msra.mxu0 0.0
    %942 = vmatprep.subr.mxu0 0.0
    %943 = vmatpush1.msra.mxu0 0.0
    %944 = vmatprep.subr.mxu0 0.0
    %945 = vmatpush1.msra.mxu0 0.0
    %946 = vmatprep.subr.mxu0 0.0
    %947 = vmatpush1.msra.mxu0 0.0
    %948 = vmatprep.subr.mxu0 0.0
    %949 = vmatpush1.msra.mxu0 0.0
    %950 = vmatprep.subr.mxu0 0.0
    %951 = vmatpush1.msra.mxu0 0.0
    %952 = vmatprep.subr.mxu0 0.0
    %953 = vmatpush1.msra.mxu0 0.0
    %954 = vmatprep.subr.mxu0 0.0
    %955 = vmatpush1.msra.mxu0 0.0
    %956 = vmatprep.subr.mxu0 0.0
    %957 = vmatpush1.msra.mxu0 0.0
    %958 = vmatprep.subr.mxu0 0.0
    %959 = vmatpush1.msra.mxu0 0.0
    %960 = vmatprep.subr.mxu0 0.0
    %961 = vmatpush1.msra.mxu0 0.0
    %962 = vmatprep.subr.mxu0 0.0
    %963 = vmatpush1.msra.mxu0 0.0
    %964 = vmatprep.subr.mxu0 0.0
    %965 = vmatpush1.msra.mxu0 0.0
    %966 = vmatprep.subr.mxu0 0.0
    %967 = vmatpush1.msra.mxu0 0.0
    %968 = vmatprep.subr.mxu0 0.0
    %969 = vmatpush1.msra.mxu0 0.0
    %970 = vmatprep.subr.mxu0 0.0
    %971 = vmatpush1.msra.mxu0 0.0
    %972 = vmatprep.subr.mxu0 0.0
    %973 = vmatpush1.msra.mxu0 0.0
    %974 = vmatprep.subr.mxu0 0.0
    %975 = vmatpush1.msra.mxu0 0.0
    %976 = vmatprep.subr.mxu0 0.0
    %977 = vmatpush1.msra.mxu0 0.0
    %978 = vmatprep.mubr.f32.mxu0 0.0
    %979 = vmatmul.mubr.f32.gmra.mrb[0].mxu0 %v909
    %v980 = vpop.f32.mrb[0].mxu0
    %v981 = vadd.f32 0.0, %v980
    %v982 = vpop.f32.mrb[0].mxu0
    %983 = vmatprep.mubr.f32.mxu0 0.0
    %984 = vmatmul.mubr.f32.gmra.mrb[0].mxu0 %v912
    %v985 = vpop.f32.mrb[0].mxu0
    %v986 = vadd.f32 0.0, %v985
    %v987 = vpop.f32.mrb[0].mxu0
    %988 = vdwg.mxu0
    %v989 = vadd.f32 %v531, %v981
    %v990 = vadd.f32 %v532, %v986
    %v991 = vld [vmem:[#allocation19] sm:$0x1]
    %v992 = vld [vmem:[#allocation20] sm:$0x1]
    %v993 = vsel %vm544, %v989, 0.0
    %994 = vadd.xlane.f32.xlu0 %v993
    %v995 = vpop.xlane.xlu0 %994
    %v996 = vsel %vm544, %v990, 0.0
    %997 = vadd.xlane.f32.xlu0 %v996
    %v998 = vpop.xlane.xlu0 %997
    %v999 = vrcp.pop 32.0
    %v1000 = vmul.f32 %v995, %v999
    %v1001 = vmul.f32 %v998, %v999
    %v1002 = vsub.f32 %v989, %v1000
    %v1003 = vsub.f32 %v990, %v1001
    %v1004 = vmul.f32 %v1002, %v1002
    %v1005 = vmul.f32 %v1003, %v1003
    %v1006 = vsel %vm544, %v1004, 0.0
    %1007 = vadd.xlane.f32.xlu0 %v1006
    %v1008 = vpop.xlane.xlu0 %1007
    %v1009 = vsel %vm544, %v1005, 0.0
    %1010 = vadd.xlane.f32.xlu0 %v1009
    %v1011 = vpop.xlane.xlu0 %1010
    %v1012 = vmul.f32 %v1008, %v999
    %v1013 = vmul.f32 %v1011, %v999
    %v1014 = vadd.f32 %v1012, 1e-05
    %v1015 = vadd.f32 %v1013, 1e-05
    %v1016 = vrsqrt.pop %v1014
    %v1017 = vrsqrt.pop %v1015
    %v1018 = vmul.f32 %v1002, %v1016
    %v1019 = vmul.f32 %v1003, %v1017
    %v1021 = vlaneseq
    %v1022 = vshrl.u32 %v1021, 7
    %v1023 = vsub.s32 0, %v1022
    %v1024 = vrot.slane %v991, %v1023
    %v1026 = vmul.f32 %v1018, %v1024
    %v1027 = vmul.f32 %v1019, %v1024
    %v1029 = vlaneseq
    %v1030 = vshrl.u32 %v1029, 7
    %v1031 = vsub.s32 0, %v1030
    %v1032 = vrot.slane %v992, %v1031
    %v1034 = vadd.f32 %v1026, %v1032
    %v1035 = vadd.f32 %v1027, %v1032
    %v1036 = vld [vmem:[%s25] sm:$0xff]
    %v1037 = vld [vmem:[%s25 + $0x8] sm:$0xff]
    %v1038 = vld [vmem:[%s25 + $0x10] sm:$0xff]
    %v1039 = vld [vmem:[%s25 + $0x18] sm:$0xff]
    %v1040 = vld [vmem:[#allocation14] sm:$0x1]
    %v1042 = vlaneseq
    %v1043 = vshrl.u32 %v1042, 7
    %v1044 = vsub.s32 0, %v1043
    %v1045 = vrot.slane %v1040, %v1044
    %v1048 = vsel %vm544, %v1034, 0
    %v1051 = vsel %vm544, %v1035, 0
    %1053 = vmatprep.subr.mxu0 0.0
    %1054 = vmatpush1.msra.mxu0 %v1036
    %1055 = vmatprep.subr.mxu0 0.0
    %1056 = vmatpush1.msra.mxu0 %v1037
    %1057 = vmatprep.subr.mxu0 0.0
    %1058 = vmatpush1.msra.mxu0 %v1038
    %1059 = vmatprep.subr.mxu0 0.0
    %1060 = vmatpush1.msra.mxu0 %v1039
    %1061 = vmatprep.subr.mxu0 0.0
    %1062 = vmatpush1.msra.mxu0 0.0
    %1063 = vmatprep.subr.mxu0 0.0
    %1064 = vmatpush1.msra.mxu0 0.0
    %1065 = vmatprep.subr.mxu0 0.0
    %1066 = vmatpush1.msra.mxu0 0.0
    %1067 = vmatprep.subr.mxu0 0.0
    %1068 = vmatpush1.msra.mxu0 0.0
    %1069 = vmatprep.subr.mxu0 0.0
    %1070 = vmatpush1.msra.mxu0 0.0
    %1071 = vmatprep.subr.mxu0 0.0
    %1072 = vmatpush1.msra.mxu0 0.0
    %1073 = vmatprep.subr.mxu0 0.0
    %1074 = vmatpush1.msra.mxu0 0.0
    %1075 = vmatprep.subr.mxu0 0.0
    %1076 = vmatpush1.msra.mxu0 0.0
    %1077 = vmatprep.subr.mxu0 0.0
    %1078 = vmatpush1.msra.mxu0 0.0
    %1079 = vmatprep.subr.mxu0 0.0
    %1080 = vmatpush1.msra.mxu0 0.0
    %1081 = vmatprep.subr.mxu0 0.0
    %1082 = vmatpush1.msra.mxu0 0.0
    %1083 = vmatprep.subr.mxu0 0.0
    %1084 = vmatpush1.msra.mxu0 0.0
    %1085 = vmatprep.subr.mxu0 0.0
    %1086 = vmatpush1.msra.mxu0 0.0
    %1087 = vmatprep.subr.mxu0 0.0
    %1088 = vmatpush1.msra.mxu0 0.0
    %1089 = vmatprep.subr.mxu0 0.0
    %1090 = vmatpush1.msra.mxu0 0.0
    %1091 = vmatprep.subr.mxu0 0.0
    %1092 = vmatpush1.msra.mxu0 0.0
    %1093 = vmatprep.subr.mxu0 0.0
    %1094 = vmatpush1.msra.mxu0 0.0
    %1095 = vmatprep.subr.mxu0 0.0
    %1096 = vmatpush1.msra.mxu0 0.0
    %1097 = vmatprep.subr.mxu0 0.0
    %1098 = vmatpush1.msra.mxu0 0.0
    %1099 = vmatprep.subr.mxu0 0.0
    %1100 = vmatpush1.msra.mxu0 0.0
    %1101 = vmatprep.subr.mxu0 0.0
    %1102 = vmatpush1.msra.mxu0 0.0
    %1103 = vmatprep.subr.mxu0 0.0
    %1104 = vmatpush1.msra.mxu0 0.0
    %1105 = vmatprep.subr.mxu0 0.0
    %1106 = vmatpush1.msra.mxu0 0.0
    %1107 = vmatprep.subr.mxu0 0.0
    %1108 = vmatpush1.msra.mxu0 0.0
    %1109 = vmatprep.subr.mxu0 0.0
    %1110 = vmatpush1.msra.mxu0 0.0
    %1111 = vmatprep.subr.mxu0 0.0
    %1112 = vmatpush1.msra.mxu0 0.0
    %1113 = vmatprep.subr.mxu0 0.0
    %1114 = vmatpush1.msra.mxu0 0.0
    %1115 = vmatprep.subr.mxu0 0.0
    %1116 = vmatpush1.msra.mxu0 0.0
    %1117 = vmatprep.mubr.f32.mxu0 0.0
    %1118 = vmatmul.mubr.f32.gmra.mrb[0].mxu0 %v1048
    %v1119 = vpop.f32.mrb[0].mxu0
    %v1120 = vadd.f32 %v1045, %v1119
    %v1121 = vpop.f32.mrb[0].mxu0
    %1122 = vmatprep.mubr.f32.mxu0 0.0
    %1123 = vmatmul.mubr.f32.gmra.mrb[0].mxu0 %v1051
    %v1124 = vpop.f32.mrb[0].mxu0
    %v1125 = vadd.f32 %v1045, %v1124
    %v1126 = vpop.f32.mrb[0].mxu0
    %1127 = vdwg.mxu0
    %v1128 = vld [vmem:[%s27] sm:$0xff]
    %v1129 = vld [vmem:[%s27 + $0x8] sm:$0xff]
    %v1130 = vld [vmem:[%s27 + $0x10] sm:$0xff]
    %v1131 = vld [vmem:[%s27 + $0x18] sm:$0xff]
    %v1132 = vld [vmem:[#allocation16] sm:$0x1]
    %v1134 = vlaneseq
    %v1135 = vshrl.u32 %v1134, 7
    %v1136 = vsub.s32 0, %v1135
    %v1137 = vrot.slane %v1132, %v1136
    %v1140 = vsel %vm544, %v417, 0
    %v1143 = vsel %vm544, %v418, 0
    %v1146 = vsel %vm544, %v419, 0
    %v1149 = vsel %vm544, %v420, 0
    %1151 = vmatprep.subr.mxu0 0.0
    %1152 = vmatpush1.msra.mxu0 %v1128
    %1153 = vmatprep.subr.mxu0 0.0
    %1154 = vmatpush1.msra.mxu0 %v1129
    %1155 = vmatprep.subr.mxu0 0.0
    %1156 = vmatpush1.msra.mxu0 %v1130
    %1157 = vmatprep.subr.mxu0 0.0
    %1158 = vmatpush1.msra.mxu0 %v1131
    %1159 = vmatprep.subr.mxu0 0.0
    %1160 = vmatpush1.msra.mxu0 0.0
    %1161 = vmatprep.subr.mxu0 0.0
    %1162 = vmatpush1.msra.mxu0 0.0
    %1163 = vmatprep.subr.mxu0 0.0
    %1164 = vmatpush1.msra.mxu0 0.0
    %1165 = vmatprep.subr.mxu0 0.0
    %1166 = vmatpush1.msra.mxu0 0.0
    %1167 = vmatprep.subr.mxu0 0.0
    %1168 = vmatpush1.msra.mxu0 0.0
    %1169 = vmatprep.subr.mxu0 0.0
    %1170 = vmatpush1.msra.mxu0 0.0
    %1171 = vmatprep.subr.mxu0 0.0
    %1172 = vmatpush1.msra.mxu0 0.0
    %1173 = vmatprep.subr.mxu0 0.0
    %1174 = vmatpush1.msra.mxu0 0.0
    %1175 = vmatprep.subr.mxu0 0.0
    %1176 = vmatpush1.msra.mxu0 0.0
    %1177 = vmatprep.subr.mxu0 0.0
    %1178 = vmatpush1.msra.mxu0 0.0
    %1179 = vmatprep.subr.mxu0 0.0
    %1180 = vmatpush1.msra.mxu0 0.0
    %1181 = vmatprep.subr.mxu0 0.0
    %1182 = vmatpush1.msra.mxu0 0.0
    %1183 = vmatprep.subr.mxu0 0.0
    %1184 = vmatpush1.msra.mxu0 0.0
    %1185 = vmatprep.subr.mxu0 0.0
    %1186 = vmatpush1.msra.mxu0 0.0
    %1187 = vmatprep.subr.mxu0 0.0
    %1188 = vmatpush1.msra.mxu0 0.0
    %1189 = vmatprep.subr.mxu0 0.0
    %1190 = vmatpush1.msra.mxu0 0.0
    %1191 = vmatprep.subr.mxu0 0.0
    %1192 = vmatpush1.msra.mxu0 0.0
    %1193 = vmatprep.subr.mxu0 0.0
    %1194 = vmatpush1.msra.mxu0 0.0
    %1195 = vmatprep.subr.mxu0 0.0
    %1196 = vmatpush1.msra.mxu0 0.0
    %1197 = vmatprep.subr.mxu0 0.0
    %1198 = vmatpush1.msra.mxu0 0.0
    %1199 = vmatprep.subr.mxu0 0.0
    %1200 = vmatpush1.msra.mxu0 0.0
    %1201 = vmatprep.subr.mxu0 0.0
    %1202 = vmatpush1.msra.mxu0 0.0
    %1203 = vmatprep.subr.mxu0 0.0
    %1204 = vmatpush1.msra.mxu0 0.0
    %1205 = vmatprep.subr.mxu0 0.0
    %1206 = vmatpush1.msra.mxu0 0.0
    %1207 = vmatprep.subr.mxu0 0.0
    %1208 = vmatpush1.msra.mxu0 0.0
    %1209 = vmatprep.subr.mxu0 0.0
    %1210 = vmatpush1.msra.mxu0 0.0
    %1211 = vmatprep.subr.mxu0 0.0
    %1212 = vmatpush1.msra.mxu0 0.0
    %1213 = vmatprep.subr.mxu0 0.0
    %1214 = vmatpush1.msra.mxu0 0.0
    %1215 = vmatprep.mubr.f32.mxu0 0.0
    %1216 = vmatmul.mubr.f32.gmra.mrb[0].mxu0 %v1140
    %v1217 = vpop.f32.mrb[0].mxu0
    %v1218 = vadd.f32 %v1137, %v1217
    %v1219 = vpop.f32.mrb[0].mxu0
    %1220 = vmatprep.mubr.f32.mxu0 0.0
    %1221 = vmatmul.mubr.f32.gmra.mrb[0].mxu0 %v1143
    %v1222 = vpop.f32.mrb[0].mxu0
    %v1223 = vadd.f32 %v1137, %v1222
    %v1224 = vpop.f32.mrb[0].mxu0
    %1225 = vmatprep.mubr.f32.mxu0 0.0
    %1226 = vmatmul.mubr.f32.gmra.mrb[0].mxu0 %v1146
    %v1227 = vpop.f32.mrb[0].mxu0
    %v1228 = vadd.f32 %v1137, %v1227
    %v1229 = vpop.f32.mrb[0].mxu0
    %1230 = vmatprep.mubr.f32.mxu0 0.0
    %1231 = vmatmul.mubr.f32.gmra.mrb[0].mxu0 %v1149
    %v1232 = vpop.f32.mrb[0].mxu0
    %v1233 = vadd.f32 %v1137, %v1232
    %v1234 = vpop.f32.mrb[0].mxu0
    %1235 = vdwg.mxu0
    %v1236 = vld [vmem:[#allocation13] sm:$0xff]
    %v1237 = vld [vmem:[#allocation13 + $0x8] sm:$0xff]
    %v1238 = vld [vmem:[#allocation13 + $0x10] sm:$0xff]
    %v1239 = vld [vmem:[#allocation13 + $0x18] sm:$0xff]
    %v1240 = vld [vmem:[#allocation17] sm:$0x1]
    %v1242 = vlaneseq
    %v1243 = vshrl.u32 %v1242, 7
    %v1244 = vsub.s32 0, %v1243
    %v1245 = vrot.slane %v1240, %v1244
    %1247 = vmatprep.subr.mxu0 0.0
    %1248 = vmatpush1.msra.mxu0 %v1236
    %1249 = vmatprep.subr.mxu0 0.0
    %1250 = vmatpush1.msra.mxu0 %v1237
    %1251 = vmatprep.subr.mxu0 0.0
    %1252 = vmatpush1.msra.mxu0 %v1238
    %1253 = vmatprep.subr.mxu0 0.0
    %1254 = vmatpush1.msra.mxu0 %v1239
    %1255 = vmatprep.subr.mxu0 0.0
    %1256 = vmatpush1.msra.mxu0 0.0
    %1257 = vmatprep.subr.mxu0 0.0
    %1258 = vmatpush1.msra.mxu0 0.0
    %1259 = vmatprep.subr.mxu0 0.0
    %1260 = vmatpush1.msra.mxu0 0.0
    %1261 = vmatprep.subr.mxu0 0.0
    %1262 = vmatpush1.msra.mxu0 0.0
    %1263 = vmatprep.subr.mxu0 0.0
    %1264 = vmatpush1.msra.mxu0 0.0
    %1265 = vmatprep.subr.mxu0 0.0
    %1266 = vmatpush1.msra.mxu0 0.0
    %1267 = vmatprep.subr.mxu0 0.0
    %1268 = vmatpush1.msra.mxu0 0.0
    %1269 = vmatprep.subr.mxu0 0.0
    %1270 = vmatpush1.msra.mxu0 0.0
    %1271 = vmatprep.subr.mxu0 0.0
    %1272 = vmatpush1.msra.mxu0 0.0
    %1273 = vmatprep.subr.mxu0 0.0
    %1274 = vmatpush1.msra.mxu0 0.0
    %1275 = vmatprep.subr.mxu0 0.0
    %1276 = vmatpush1.msra.mxu0 0.0
    %1277 = vmatprep.subr.mxu0 0.0
    %1278 = vmatpush1.msra.mxu0 0.0
    %1279 = vmatprep.subr.mxu0 0.0
    %1280 = vmatpush1.msra.mxu0 0.0
    %1281 = vmatprep.subr.mxu0 0.0
    %1282 = vmatpush1.msra.mxu0 0.0
    %1283 = vmatprep.subr.mxu0 0.0
    %1284 = vmatpush1.msra.mxu0 0.0
    %1285 = vmatprep.subr.mxu0 0.0
    %1286 = vmatpush1.msra.mxu0 0.0
    %1287 = vmatprep.subr.mxu0 0.0
    %1288 = vmatpush1.msra.mxu0 0.0
    %1289 = vmatprep.subr.mxu0 0.0
    %1290 = vmatpush1.msra.mxu0 0.0
    %1291 = vmatprep.subr.mxu0 0.0
    %1292 = vmatpush1.msra.mxu0 0.0
    %1293 = vmatprep.subr.mxu0 0.0
    %1294 = vmatpush1.msra.mxu0 0.0
    %1295 = vmatprep.subr.mxu0 0.0
    %1296 = vmatpush1.msra.mxu0 0.0
    %1297 = vmatprep.subr.mxu0 0.0
    %1298 = vmatpush1.msra.mxu0 0.0
    %1299 = vmatprep.subr.mxu0 0.0
    %1300 = vmatpush1.msra.mxu0 0.0
    %1301 = vmatprep.subr.mxu0 0.0
    %1302 = vmatpush1.msra.mxu0 0.0
    %1303 = vmatprep.subr.mxu0 0.0
    %1304 = vmatpush1.msra.mxu0 0.0
    %1305 = vmatprep.subr.mxu0 0.0
    %1306 = vmatpush1.msra.mxu0 0.0
    %1307 = vmatprep.subr.mxu0 0.0
    %1308 = vmatpush1.msra.mxu0 0.0
    %1309 = vmatprep.subr.mxu0 0.0
    %1310 = vmatpush1.msra.mxu0 0.0
    %1311 = vmatprep.mubr.f32.mxu0 0.0
    %1312 = vmatmul.mubr.f32.gmra.mrb[0].mxu0 %v1140
    %v1313 = vpop.f32.mrb[0].mxu0
    %v1314 = vadd.f32 %v1245, %v1313
    %v1315 = vpop.f32.mrb[0].mxu0
    %1316 = vmatprep.mubr.f32.mxu0 0.0
    %1317 = vmatmul.mubr.f32.gmra.mrb[0].mxu0 %v1143
    %v1318 = vpop.f32.mrb[0].mxu0
    %v1319 = vadd.f32 %v1245, %v1318
    %v1320 = vpop.f32.mrb[0].mxu0
    %1321 = vmatprep.mubr.f32.mxu0 0.0
    %1322 = vmatmul.mubr.f32.gmra.mrb[0].mxu0 %v1146
    %v1323 = vpop.f32.mrb[0].mxu0
    %v1324 = vadd.f32 %v1245, %v1323
    %v1325 = vpop.f32.mrb[0].mxu0
    %1326 = vmatprep.mubr.f32.mxu0 0.0
    %1327 = vmatmul.mubr.f32.gmra.mrb[0].mxu0 %v1149
    %v1328 = vpop.f32.mrb[0].mxu0
    %v1329 = vadd.f32 %v1245, %v1328
    %v1330 = vpop.f32.mrb[0].mxu0
    %1331 = vdwg.mxu0
    %v1333 = vsel %vm544, %v1120, 0
    %v1336 = vsel %vm544, %v1125, 0
    %v1339 = vsel %vm544, %v1218, 0
    %v1342 = vsel %vm544, %v1223, 0
    %v1345 = vsel %vm544, %v1228, 0
    %v1348 = vsel %vm544, %v1233, 0
    %1350 = vmatprep.subr.mxu0 0.0
    %1351 = vmatpush1.xpose.msra.mxu0 %v1339
    %1352 = vmatprep.subr.mxu0 0.0
    %1353 = vmatpush1.xpose.msra.mxu0 %v1342
    %1354 = vmatprep.subr.mxu0 0.0
    %1355 = vmatpush1.xpose.msra.mxu0 %v1345
    %1356 = vmatprep.subr.mxu0 0.0
    %1357 = vmatpush1.xpose.msra.mxu0 %v1348
    %1358 = vmatprep.subr.mxu0 0.0
    %1359 = vmatpush1.xpose.msra.mxu0 0.0
    %1360 = vmatprep.subr.mxu0 0.0
    %1361 = vmatpush1.xpose.msra.mxu0 0.0
    %1362 = vmatprep.subr.mxu0 0.0
    %1363 = vmatpush1.xpose.msra.mxu0 0.0
    %1364 = vmatprep.subr.mxu0 0.0
    %1365 = vmatpush1.xpose.msra.mxu0 0.0
    %1366 = vmatprep.subr.mxu0 0.0
    %1367 = vmatpush1.xpose.msra.mxu0 0.0
    %1368 = vmatprep.subr.mxu0 0.0
    %1369 = vmatpush1.xpose.msra.mxu0 0.0
    %1370 = vmatprep.subr.mxu0 0.0
    %1371 = vmatpush1.xpose.msra.mxu0 0.0
    %1372 = vmatprep.subr.mxu0 0.0
    %1373 = vmatpush1.xpose.msra.mxu0 0.0
    %1374 = vmatprep.subr.mxu0 0.0
    %1375 = vmatpush1.xpose.msra.mxu0 0.0
    %1376 = vmatprep.subr.mxu0 0.0
    %1377 = vmatpush1.xpose.msra.mxu0 0.0
    %1378 = vmatprep.subr.mxu0 0.0
    %1379 = vmatpush1.xpose.msra.mxu0 0.0
    %1380 = vmatprep.subr.mxu0 0.0
    %1381 = vmatpush1.xpose.msra.mxu0 0.0
    %1382 = vmatprep.subr.mxu0 0.0
    %1383 = vmatpush1.xpose.msra.mxu0 0.0
    %1384 = vmatprep.subr.mxu0 0.0
    %1385 = vmatpush1.xpose.msra.mxu0 0.0
    %1386 = vmatprep.subr.mxu0 0.0
    %1387 = vmatpush1.xpose.msra.mxu0 0.0
    %1388 = vmatprep.subr.mxu0 0.0
    %1389 = vmatpush1.xpose.msra.mxu0 0.0
    %1390 = vmatprep.subr.mxu0 0.0
    %1391 = vmatpush1.xpose.msra.mxu0 0.0
    %1392 = vmatprep.subr.mxu0 0.0
    %1393 = vmatpush1.xpose.msra.mxu0 0.0
    %1394 = vmatprep.subr.mxu0 0.0
    %1395 = vmatpush1.xpose.msra.mxu0 0.0
    %1396 = vmatprep.subr.mxu0 0.0
    %1397 = vmatpush1.xpose.msra.mxu0 0.0
    %1398 = vmatprep.subr.mxu0 0.0
    %1399 = vmatpush1.xpose.msra.mxu0 0.0
    %1400 = vmatprep.subr.mxu0 0.0
    %1401 = vmatpush1.xpose.msra.mxu0 0.0
    %1402 = vmatprep.subr.mxu0 0.0
    %1403 = vmatpush1.xpose.msra.mxu0 0.0
    %1404 = vmatprep.subr.mxu0 0.0
    %1405 = vmatpush1.xpose.msra.mxu0 0.0
    %1406 = vmatprep.subr.mxu0 0.0
    %1407 = vmatpush1.xpose.msra.mxu0 0.0
    %1408 = vmatprep.subr.mxu0 0.0
    %1409 = vmatpush1.xpose.msra.mxu0 0.0
    %1410 = vmatprep.subr.mxu0 0.0
    %1411 = vmatpush1.xpose.msra.mxu0 0.0
    %1412 = vmatprep.subr.mxu0 0.0
    %1413 = vmatpush1.xpose.msra.mxu0 0.0
    %1414 = vmatprep.mubr.f32.mxu0 0.0
    %1415 = vmatmul.mubr.f32.gmra.mrb[0].mxu0 %v1333
    %v1416 = vpop.f32.mrb[0].mxu0
    %v1417 = vadd.f32 %v415, %v1416
    %v1418 = vpop.f32.mrb[0].mxu0
    %1419 = vmatprep.mubr.f32.mxu0 0.0
    %1420 = vmatmul.mubr.f32.gmra.mrb[0].mxu0 %v1336
    %v1421 = vpop.f32.mrb[0].mxu0
    %v1422 = vadd.f32 %v416, %v1421
    %v1423 = vpop.f32.mrb[0].mxu0
    %1424 = vdwg.mxu0
    %v1425 = vsel %vm544, %v1417, -inf
    %1426 = vmax.xlane.f32.xlu0 %v1425
    %v1427 = vpop.xlane.xlu0 %1426
    %v1428 = vsel %vm544, %v1422, -inf
    %1429 = vmax.xlane.f32.xlu0 %v1428
    %v1430 = vpop.xlane.xlu0 %1429
    %v1431 = vsub.f32 %v1417, %v1427
    %v1432 = vsub.f32 %v1422, %v1430
    %v1433 = vmul.f32 %v1431, 1.442695
    %v1434 = vpow.pop %v1433
    %v1435 = vmul.f32 %v1432, 1.442695
    %v1436 = vpow.pop %v1435
    %v1437 = vsel %vm544, %v1434, 0.0
    %1438 = vadd.xlane.f32.xlu0 %v1437
    %v1439 = vpop.xlane.xlu0 %1438
    %v1440 = vsel %vm544, %v1436, 0.0
    %1441 = vadd.xlane.f32.xlu0 %v1440
    %v1442 = vpop.xlane.xlu0 %1441
    %v1443 = vrcp.pop %v1439
    %v1444 = vrcp.pop %v1442
    %v1445 = vmul.f32 %v1434, %v1443
    %v1446 = vmul.f32 %v1436, %v1444
    %v1448 = vsel %vm544, %v1445, 0
    %v1451 = vsel %vm544, %v1446, 0
    %1453 = vmatprep.subr.mxu0 0.0
    %1454 = vmatpush1.msra.mxu0 %v1314
    %1455 = vmatprep.subr.mxu0 0.0
    %1456 = vmatpush1.msra.mxu0 %v1319
    %1457 = vmatprep.subr.mxu0 0.0
    %1458 = vmatpush1.msra.mxu0 %v1324
    %1459 = vmatprep.subr.mxu0 0.0
    %1460 = vmatpush1.msra.mxu0 %v1329
    %1461 = vmatprep.subr.mxu0 0.0
    %1462 = vmatpush1.msra.mxu0 0.0
    %1463 = vmatprep.subr.mxu0 0.0
    %1464 = vmatpush1.msra.mxu0 0.0
    %1465 = vmatprep.subr.mxu0 0.0
    %1466 = vmatpush1.msra.mxu0 0.0
    %1467 = vmatprep.subr.mxu0 0.0
    %1468 = vmatpush1.msra.mxu0 0.0
    %1469 = vmatprep.subr.mxu0 0.0
    %1470 = vmatpush1.msra.mxu0 0.0
    %1471 = vmatprep.subr.mxu0 0.0
    %1472 = vmatpush1.msra.mxu0 0.0
    %1473 = vmatprep.subr.mxu0 0.0
    %1474 = vmatpush1.msra.mxu0 0.0
    %1475 = vmatprep.subr.mxu0 0.0
    %1476 = vmatpush1.msra.mxu0 0.0
    %1477 = vmatprep.subr.mxu0 0.0
    %1478 = vmatpush1.msra.mxu0 0.0
    %1479 = vmatprep.subr.mxu0 0.0
    %1480 = vmatpush1.msra.mxu0 0.0
    %1481 = vmatprep.subr.mxu0 0.0
    %1482 = vmatpush1.msra.mxu0 0.0
    %1483 = vmatprep.subr.mxu0 0.0
    %1484 = vmatpush1.msra.mxu0 0.0
    %1485 = vmatprep.subr.mxu0 0.0
    %1486 = vmatpush1.msra.mxu0 0.0
    %1487 = vmatprep.subr.mxu0 0.0
    %1488 = vmatpush1.msra.mxu0 0.0
    %1489 = vmatprep.subr.mxu0 0.0
    %1490 = vmatpush1.msra.mxu0 0.0
    %1491 = vmatprep.subr.mxu0 0.0
    %1492 = vmatpush1.msra.mxu0 0.0
    %1493 = vmatprep.subr.mxu0 0.0
    %1494 = vmatpush1.msra.mxu0 0.0
    %1495 = vmatprep.subr.mxu0 0.0
    %1496 = vmatpush1.msra.mxu0 0.0
    %1497 = vmatprep.subr.mxu0 0.0
    %1498 = vmatpush1.msra.mxu0 0.0
    %1499 = vmatprep.subr.mxu0 0.0
    %1500 = vmatpush1.msra.mxu0 0.0
    %1501 = vmatprep.subr.mxu0 0.0
    %1502 = vmatpush1.msra.mxu0 0.0
    %1503 = vmatprep.subr.mxu0 0.0
    %1504 = vmatpush1.msra.mxu0 0.0
    %1505 = vmatprep.subr.mxu0 0.0
    %1506 = vmatpush1.msra.mxu0 0.0
    %1507 = vmatprep.subr.mxu0 0.0
    %1508 = vmatpush1.msra.mxu0 0.0
    %1509 = vmatprep.subr.mxu0 0.0
    %1510 = vmatpush1.msra.mxu0 0.0
    %1511 = vmatprep.subr.mxu0 0.0
    %1512 = vmatpush1.msra.mxu0 0.0
    %1513 = vmatprep.subr.mxu0 0.0
    %1514 = vmatpush1.msra.mxu0 0.0
    %1515 = vmatprep.subr.mxu0 0.0
    %1516 = vmatpush1.msra.mxu0 0.0
    %1517 = vmatprep.mubr.f32.mxu0 0.0
    %1518 = vmatmul.mubr.f32.gmra.mrb[0].mxu0 %v1448
    %v1519 = vpop.f32.mrb[0].mxu0
    %v1520 = vadd.f32 0.0, %v1519
    %v1521 = vpop.f32.mrb[0].mxu0
    %1522 = vmatprep.mubr.f32.mxu0 0.0
    %1523 = vmatmul.mubr.f32.gmra.mrb[0].mxu0 %v1451
    %v1524 = vpop.f32.mrb[0].mxu0
    %v1525 = vadd.f32 0.0, %v1524
    %v1526 = vpop.f32.mrb[0].mxu0
    %1527 = vdwg.mxu0
    %v1528 = vadd.f32 %v1034, %v1520
    %v1529 = vadd.f32 %v1035, %v1525
    %v1530 = vld [vmem:[#allocation22] sm:$0x1]
    %v1531 = vld [vmem:[#allocation23] sm:$0x1]
    %v1532 = vsel %vm544, %v1528, 0.0
    %1533 = vadd.xlane.f32.xlu0 %v1532
    %v1534 = vpop.xlane.xlu0 %1533
    %v1535 = vsel %vm544, %v1529, 0.0
    %1536 = vadd.xlane.f32.xlu0 %v1535
    %v1537 = vpop.xlane.xlu0 %1536
    %v1538 = vmul.f32 %v1534, %v999
    %v1539 = vmul.f32 %v1537, %v999
    %v1540 = vsub.f32 %v1528, %v1538
    %v1541 = vsub.f32 %v1529, %v1539
    %v1542 = vmul.f32 %v1540, %v1540
    %v1543 = vmul.f32 %v1541, %v1541
    %v1544 = vsel %vm544, %v1542, 0.0
    %1545 = vadd.xlane.f32.xlu0 %v1544
    %v1546 = vpop.xlane.xlu0 %1545
    %v1547 = vsel %vm544, %v1543, 0.0
    %1548 = vadd.xlane.f32.xlu0 %v1547
    %v1549 = vpop.xlane.xlu0 %1548
    %v1550 = vmul.f32 %v1546, %v999
    %v1551 = vmul.f32 %v1549, %v999
    %v1552 = vadd.f32 %v1550, 1e-05
    %v1553 = vadd.f32 %v1551, 1e-05
    %v1554 = vrsqrt.pop %v1552
    %v1555 = vrsqrt.pop %v1553
    %v1556 = vmul.f32 %v1540, %v1554
    %v1557 = vmul.f32 %v1541, %v1555
    %v1559 = vlaneseq
    %v1560 = vshrl.u32 %v1559, 7
    %v1561 = vsub.s32 0, %v1560
    %v1562 = vrot.slane %v1530, %v1561
    %v1564 = vmul.f32 %v1556, %v1562
    %v1565 = vmul.f32 %v1557, %v1562
    %v1567 = vlaneseq
    %v1568 = vshrl.u32 %v1567, 7
    %v1569 = vsub.s32 0, %v1568
    %v1570 = vrot.slane %v1531, %v1569
    %v1572 = vadd.f32 %v1564, %v1570
    %v1573 = vadd.f32 %v1565, %v1570
    %v1574 = vld [vmem:[%s49] sm:$0xff]
    %v1575 = vld [vmem:[%s49 + $0x8] sm:$0xff]
    %v1576 = vld [vmem:[%s49 + $0x10] sm:$0xff]
    %v1577 = vld [vmem:[%s49 + $0x18] sm:$0xff]
    %v1578 = vld [vmem:[#allocation28] sm:$0x1]
    %v1580 = vlaneseq
    %v1581 = vshrl.u32 %v1580, 7
    %v1582 = vsub.s32 0, %v1581
    %v1583 = vrot.slane %v1578, %v1582
    %v1586 = vsel %vm544, %v1572, 0
    %v1589 = vsel %vm544, %v1573, 0
    %1591 = vmatprep.subr.mxu0 0.0
    %1592 = vmatpush1.msra.mxu0 %v1574
    %1593 = vmatprep.subr.mxu0 0.0
    %1594 = vmatpush1.msra.mxu0 %v1575
    %1595 = vmatprep.subr.mxu0 0.0
    %1596 = vmatpush1.msra.mxu0 %v1576
    %1597 = vmatprep.subr.mxu0 0.0
    %1598 = vmatpush1.msra.mxu0 %v1577
    %1599 = vmatprep.subr.mxu0 0.0
    %1600 = vmatpush1.msra.mxu0 0.0
    %1601 = vmatprep.subr.mxu0 0.0
    %1602 = vmatpush1.msra.mxu0 0.0
    %1603 = vmatprep.subr.mxu0 0.0
    %1604 = vmatpush1.msra.mxu0 0.0
    %1605 = vmatprep.subr.mxu0 0.0
    %1606 = vmatpush1.msra.mxu0 0.0
    %1607 = vmatprep.subr.mxu0 0.0
    %1608 = vmatpush1.msra.mxu0 0.0
    %1609 = vmatprep.subr.mxu0 0.0
    %1610 = vmatpush1.msra.mxu0 0.0
    %1611 = vmatprep.subr.mxu0 0.0
    %1612 = vmatpush1.msra.mxu0 0.0
    %1613 = vmatprep.subr.mxu0 0.0
    %1614 = vmatpush1.msra.mxu0 0.0
    %1615 = vmatprep.subr.mxu0 0.0
    %1616 = vmatpush1.msra.mxu0 0.0
    %1617 = vmatprep.subr.mxu0 0.0
    %1618 = vmatpush1.msra.mxu0 0.0
    %1619 = vmatprep.subr.mxu0 0.0
    %1620 = vmatpush1.msra.mxu0 0.0
    %1621 = vmatprep.subr.mxu0 0.0
    %1622 = vmatpush1.msra.mxu0 0.0
    %1623 = vmatprep.subr.mxu0 0.0
    %1624 = vmatpush1.msra.mxu0 0.0
    %1625 = vmatprep.subr.mxu0 0.0
    %1626 = vmatpush1.msra.mxu0 0.0
    %1627 = vmatprep.subr.mxu0 0.0
    %1628 = vmatpush1.msra.mxu0 0.0
    %1629 = vmatprep.subr.mxu0 0.0
    %1630 = vmatpush1.msra.mxu0 0.0
    %1631 = vmatprep.subr.mxu0 0.0
    %1632 = vmatpush1.msra.mxu0 0.0
    %1633 = vmatprep.subr.mxu0 0.0
    %1634 = vmatpush1.msra.mxu0 0.0
    %1635 = vmatprep.subr.mxu0 0.0
    %1636 = vmatpush1.msra.mxu0 0.0
    %1637 = vmatprep.subr.mxu0 0.0
    %1638 = vmatpush1.msra.mxu0 0.0
    %1639 = vmatprep.subr.mxu0 0.0
    %1640 = vmatpush1.msra.mxu0 0.0
    %1641 = vmatprep.subr.mxu0 0.0
    %1642 = vmatpush1.msra.mxu0 0.0
    %1643 = vmatprep.subr.mxu0 0.0
    %1644 = vmatpush1.msra.mxu0 0.0
    %1645 = vmatprep.subr.mxu0 0.0
    %1646 = vmatpush1.msra.mxu0 0.0
    %1647 = vmatprep.subr.mxu0 0.0
    %1648 = vmatpush1.msra.mxu0 0.0
    %1649 = vmatprep.subr.mxu0 0.0
    %1650 = vmatpush1.msra.mxu0 0.0
    %1651 = vmatprep.subr.mxu0 0.0
    %1652 = vmatpush1.msra.mxu0 0.0
    %1653 = vmatprep.subr.mxu0 0.0
    %1654 = vmatpush1.msra.mxu0 0.0
    %1655 = vmatprep.mubr.f32.mxu0 0.0
    %1656 = vmatmul.mubr.f32.gmra.mrb[0].mxu0 %v1586
    %v1657 = vpop.f32.mrb[0].mxu0
    %v1658 = vadd.f32 %v1583, %v1657
    %v1659 = vpop.f32.mrb[0].mxu0
    %1660 = vmatprep.mubr.f32.mxu0 0.0
    %1661 = vmatmul.mubr.f32.gmra.mrb[0].mxu0 %v1589
    %v1662 = vpop.f32.mrb[0].mxu0
    %v1663 = vadd.f32 %v1583, %v1662
    %v1664 = vpop.f32.mrb[0].mxu0
    %1665 = vdwg.mxu0
    %v1666 = vmax.f32 %v1658, 0.0
    %v1667 = vmax.f32 %v1663, 0.0
    %v1668 = vld [vmem:[%s53] sm:$0xff]
    %v1669 = vld [vmem:[%s53 + $0x8] sm:$0xff]
    %v1670 = vld [vmem:[%s53 + $0x10] sm:$0xff]
    %v1671 = vld [vmem:[%s53 + $0x18] sm:$0xff]
    %v1672 = vld [vmem:[%s53 + $0x20] sm:$0xff]
    %v1673 = vld [vmem:[%s53 + $0x28] sm:$0xff]
    %v1674 = vld [vmem:[%s53 + $0x30] sm:$0xff]
    %v1675 = vld [vmem:[%s53 + $0x38] sm:$0xff]
    %v1676 = vld [vmem:[#allocation29] sm:$0x1]
    %v1678 = vlaneseq
    %v1679 = vshrl.u32 %v1678, 7
    %v1680 = vsub.s32 0, %v1679
    %v1681 = vrot.slane %v1676, %v1680
    %vm1683 = vcmask 523264
    %v1685 = vsel %vm1683, %v1666, 0
    %v1688 = vsel %vm1683, %v1667, 0
    %1690 = vmatprep.subr.mxu0 0.0
    %1691 = vmatpush1.msra.mxu0 %v1668
    %1692 = vmatprep.subr.mxu0 0.0
    %1693 = vmatpush1.msra.mxu0 %v1669
    %1694 = vmatprep.subr.mxu0 0.0
    %1695 = vmatpush1.msra.mxu0 %v1670
    %1696 = vmatprep.subr.mxu0 0.0
    %1697 = vmatpush1.msra.mxu0 %v1671
    %1698 = vmatprep.subr.mxu0 0.0
    %1699 = vmatpush1.msra.mxu0 %v1672
    %1700 = vmatprep.subr.mxu0 0.0
    %1701 = vmatpush1.msra.mxu0 %v1673
    %1702 = vmatprep.subr.mxu0 0.0
    %1703 = vmatpush1.msra.mxu0 %v1674
    %1704 = vmatprep.subr.mxu0 0.0
    %1705 = vmatpush1.msra.mxu0 %v1675
    %1706 = vmatprep.subr.mxu0 0.0
    %1707 = vmatpush1.msra.mxu0 0.0
    %1708 = vmatprep.subr.mxu0 0.0
    %1709 = vmatpush1.msra.mxu0 0.0
    %1710 = vmatprep.subr.mxu0 0.0
    %1711 = vmatpush1.msra.mxu0 0.0
    %1712 = vmatprep.subr.mxu0 0.0
    %1713 = vmatpush1.msra.mxu0 0.0
    %1714 = vmatprep.subr.mxu0 0.0
    %1715 = vmatpush1.msra.mxu0 0.0
    %1716 = vmatprep.subr.mxu0 0.0
    %1717 = vmatpush1.msra.mxu0 0.0
    %1718 = vmatprep.subr.mxu0 0.0
    %1719 = vmatpush1.msra.mxu0 0.0
    %1720 = vmatprep.subr.mxu0 0.0
    %1721 = vmatpush1.msra.mxu0 0.0
    %1722 = vmatprep.subr.mxu0 0.0
    %1723 = vmatpush1.msra.mxu0 0.0
    %1724 = vmatprep.subr.mxu0 0.0
    %1725 = vmatpush1.msra.mxu0 0.0
    %1726 = vmatprep.subr.mxu0 0.0
    %1727 = vmatpush1.msra.mxu0 0.0
    %1728 = vmatprep.subr.mxu0 0.0
    %1729 = vmatpush1.msra.mxu0 0.0
    %1730 = vmatprep.subr.mxu0 0.0
    %1731 = vmatpush1.msra.mxu0 0.0
    %1732 = vmatprep.subr.mxu0 0.0
    %1733 = vmatpush1.msra.mxu0 0.0
    %1734 = vmatprep.subr.mxu0 0.0
    %1735 = vmatpush1.msra.mxu0 0.0
    %1736 = vmatprep.subr.mxu0 0.0
    %1737 = vmatpush1.msra.mxu0 0.0
    %1738 = vmatprep.subr.mxu0 0.0
    %1739 = vmatpush1.msra.mxu0 0.0
    %1740 = vmatprep.subr.mxu0 0.0
    %1741 = vmatpush1.msra.mxu0 0.0
    %1742 = vmatprep.subr.mxu0 0.0
    %1743 = vmatpush1.msra.mxu0 0.0
    %1744 = vmatprep.subr.mxu0 0.0
    %1745 = vmatpush1.msra.mxu0 0.0
    %1746 = vmatprep.subr.mxu0 0.0
    %1747 = vmatpush1.msra.mxu0 0.0
    %1748 = vmatprep.subr.mxu0 0.0
    %1749 = vmatpush1.msra.mxu0 0.0
    %1750 = vmatprep.subr.mxu0 0.0
    %1751 = vmatpush1.msra.mxu0 0.0
    %1752 = vmatprep.subr.mxu0 0.0
    %1753 = vmatpush1.msra.mxu0 0.0
    %1754 = vmatprep.mubr.f32.mxu0 0.0
    %1755 = vmatmul.mubr.f32.gmra.mrb[0].mxu0 %v1685
    %v1756 = vpop.f32.mrb[0].mxu0
    %v1757 = vadd.f32 %v1681, %v1756
    %v1758 = vpop.f32.mrb[0].mxu0
    %1759 = vmatprep.mubr.f32.mxu0 0.0
    %1760 = vmatmul.mubr.f32.gmra.mrb[0].mxu0 %v1688
    %v1761 = vpop.f32.mrb[0].mxu0
    %v1762 = vadd.f32 %v1681, %v1761
    %v1763 = vpop.f32.mrb[0].mxu0
    %1764 = vdwg.mxu0
    %v1765 = vadd.f32 %v1572, %v1757
    %v1766 = vadd.f32 %v1573, %v1762
    %v1767 = vld [vmem:[#allocation25] sm:$0x1]
    %v1768 = vld [vmem:[#allocation26] sm:$0x1]
    %v1769 = vsel %vm544, %v1765, 0.0
    %1770 = vadd.xlane.f32.xlu0 %v1769
    %v1771 = vpop.xlane.xlu0 %1770
    %v1772 = vsel %vm544, %v1766, 0.0
    %1773 = vadd.xlane.f32.xlu0 %v1772
    %v1774 = vpop.xlane.xlu0 %1773
    %v1775 = vmul.f32 %v1771, %v999
    %v1776 = vmul.f32 %v1774, %v999
    %v1777 = vsub.f32 %v1765, %v1775
    %v1778 = vsub.f32 %v1766, %v1776
    %v1779 = vmul.f32 %v1777, %v1777
    %v1780 = vmul.f32 %v1778, %v1778
    %v1781 = vsel %vm544, %v1779, 0.0
    %1782 = vadd.xlane.f32.xlu0 %v1781
    %v1783 = vpop.xlane.xlu0 %1782
    %v1784 = vsel %vm544, %v1780, 0.0
    %1785 = vadd.xlane.f32.xlu0 %v1784
    %v1786 = vpop.xlane.xlu0 %1785
    %v1787 = vmul.f32 %v1783, %v999
    %v1788 = vmul.f32 %v1786, %v999
    %v1789 = vadd.f32 %v1787, 1e-05
    %v1790 = vadd.f32 %v1788, 1e-05
    %v1791 = vrsqrt.pop %v1789
    %v1792 = vrsqrt.pop %v1790
    %v1793 = vmul.f32 %v1777, %v1791
    %v1794 = vmul.f32 %v1778, %v1792
    %v1796 = vlaneseq
    %v1797 = vshrl.u32 %v1796, 7
    %v1798 = vsub.s32 0, %v1797
    %v1799 = vrot.slane %v1767, %v1798
    %v1801 = vmul.f32 %v1793, %v1799
    %v1802 = vmul.f32 %v1794, %v1799
    %v1804 = vlaneseq
    %v1805 = vshrl.u32 %v1804, 7
    %v1806 = vsub.s32 0, %v1805
    %v1807 = vrot.slane %v1768, %v1806
    %v1809 = vadd.f32 %v1801, %v1807
    %v1810 = vadd.f32 %v1802, %v1807
    %s1811 = scalar_lea.vmem %s13, 32
    %v1812 = vld [vmem:[%s1811] sm:$0xff]
    %v1813 = vld [vmem:[%s1811 + $0x8] sm:$0xff]
    %v1814 = vld [vmem:[%s1811 + $0x10] sm:$0xff]
    %v1815 = vld [vmem:[%s1811 + $0x18] sm:$0xff]
    %s1816 = scalar_lea.vmem %s19, 1
    %v1817 = vld [vmem:[%s1816] sm:$0x1]
    %v1819 = vlaneseq
    %v1820 = vshrl.u32 %v1819, 7
    %v1821 = vsub.s32 0, %v1820
    %v1822 = vrot.slane %v1817, %v1821
    %v1825 = vsel %vm544, %v1809, 0
    %v1828 = vsel %vm544, %v1810, 0
    %1830 = vmatprep.subr.mxu0 0.0
    %1831 = vmatpush1.msra.mxu0 %v1812
    %1832 = vmatprep.subr.mxu0 0.0
    %1833 = vmatpush1.msra.mxu0 %v1813
    %1834 = vmatprep.subr.mxu0 0.0
    %1835 = vmatpush1.msra.mxu0 %v1814
    %1836 = vmatprep.subr.mxu0 0.0
    %1837 = vmatpush1.msra.mxu0 %v1815
    %1838 = vmatprep.subr.mxu0 0.0
    %1839 = vmatpush1.msra.mxu0 0.0
    %1840 = vmatprep.subr.mxu0 0.0
    %1841 = vmatpush1.msra.mxu0 0.0
    %1842 = vmatprep.subr.mxu0 0.0
    %1843 = vmatpush1.msra.mxu0 0.0
    %1844 = vmatprep.subr.mxu0 0.0
    %1845 = vmatpush1.msra.mxu0 0.0
    %1846 = vmatprep.subr.mxu0 0.0
    %1847 = vmatpush1.msra.mxu0 0.0
    %1848 = vmatprep.subr.mxu0 0.0
    %1849 = vmatpush1.msra.mxu0 0.0
    %1850 = vmatprep.subr.mxu0 0.0
    %1851 = vmatpush1.msra.mxu0 0.0
    %1852 = vmatprep.subr.mxu0 0.0
    %1853 = vmatpush1.msra.mxu0 0.0
    %1854 = vmatprep.subr.mxu0 0.0
    %1855 = vmatpush1.msra.mxu0 0.0
    %1856 = vmatprep.subr.mxu0 0.0
    %1857 = vmatpush1.msra.mxu0 0.0
    %1858 = vmatprep.subr.mxu0 0.0
    %1859 = vmatpush1.msra.mxu0 0.0
    %1860 = vmatprep.subr.mxu0 0.0
    %1861 = vmatpush1.msra.mxu0 0.0
    %1862 = vmatprep.subr.mxu0 0.0
    %1863 = vmatpush1.msra.mxu0 0.0
    %1864 = vmatprep.subr.mxu0 0.0
    %1865 = vmatpush1.msra.mxu0 0.0
    %1866 = vmatprep.subr.mxu0 0.0
    %1867 = vmatpush1.msra.mxu0 0.0
    %1868 = vmatprep.subr.mxu0 0.0
    %1869 = vmatpush1.msra.mxu0 0.0
    %1870 = vmatprep.subr.mxu0 0.0
    %1871 = vmatpush1.msra.mxu0 0.0
    %1872 = vmatprep.subr.mxu0 0.0
    %1873 = vmatpush1.msra.mxu0 0.0
    %1874 = vmatprep.subr.mxu0 0.0
    %1875 = vmatpush1.msra.mxu0 0.0
    %1876 = vmatprep.subr.mxu0 0.0
    %1877 = vmatpush1.msra.mxu0 0.0
    %1878 = vmatprep.subr.mxu0 0.0
    %1879 = vmatpush1.msra.mxu0 0.0
    %1880 = vmatprep.subr.mxu0 0.0
    %1881 = vmatpush1.msra.mxu0 0.0
    %1882 = vmatprep.subr.mxu0 0.0
    %1883 = vmatpush1.msra.mxu0 0.0
    %1884 = vmatprep.subr.mxu0 0.0
    %1885 = vmatpush1.msra.mxu0 0.0
    %1886 = vmatprep.subr.mxu0 0.0
    %1887 = vmatpush1.msra.mxu0 0.0
    %1888 = vmatprep.subr.mxu0 0.0
    %1889 = vmatpush1.msra.mxu0 0.0
    %1890 = vmatprep.subr.mxu0 0.0
    %1891 = vmatpush1.msra.mxu0 0.0
    %1892 = vmatprep.subr.mxu0 0.0
    %1893 = vmatpush1.msra.mxu0 0.0
    %1894 = vmatprep.mubr.f32.mxu0 0.0
    %1895 = vmatmul.mubr.f32.gmra.mrb[0].mxu0 %v1825
    %v1896 = vpop.f32.mrb[0].mxu0
    %v1897 = vadd.f32 %v1822, %v1896
    %v1898 = vpop.f32.mrb[0].mxu0
    %1899 = vmatprep.mubr.f32.mxu0 0.0
    %1900 = vmatmul.mubr.f32.gmra.mrb[0].mxu0 %v1828
    %v1901 = vpop.f32.mrb[0].mxu0
    %v1902 = vadd.f32 %v1822, %v1901
    %v1903 = vpop.f32.mrb[0].mxu0
    %1904 = vdwg.mxu0
    %s1905 = scalar_lea.vmem %s15, 32
    %v1906 = vld [vmem:[%s1905] sm:$0xff]
    %v1907 = vld [vmem:[%s1905 + $0x8] sm:$0xff]
    %v1908 = vld [vmem:[%s1905 + $0x10] sm:$0xff]
    %v1909 = vld [vmem:[%s1905 + $0x18] sm:$0xff]
    %s1910 = scalar_lea.vmem [#allocation10], 1
    %v1911 = vld [vmem:[%s1910] sm:$0x1]
    %v1913 = vlaneseq
    %v1914 = vshrl.u32 %v1913, 7
    %v1915 = vsub.s32 0, %v1914
    %v1916 = vrot.slane %v1911, %v1915
    %1918 = vmatprep.subr.mxu0 0.0
    %1919 = vmatpush1.msra.mxu0 %v1906
    %1920 = vmatprep.subr.mxu0 0.0
    %1921 = vmatpush1.msra.mxu0 %v1907
    %1922 = vmatprep.subr.mxu0 0.0
    %1923 = vmatpush1.msra.mxu0 %v1908
    %1924 = vmatprep.subr.mxu0 0.0
    %1925 = vmatpush1.msra.mxu0 %v1909
    %1926 = vmatprep.subr.mxu0 0.0
    %1927 = vmatpush1.msra.mxu0 0.0
    %1928 = vmatprep.subr.mxu0 0.0
    %1929 = vmatpush1.msra.mxu0 0.0
    %1930 = vmatprep.subr.mxu0 0.0
    %1931 = vmatpush1.msra.mxu0 0.0
    %1932 = vmatprep.subr.mxu0 0.0
    %1933 = vmatpush1.msra.mxu0 0.0
    %1934 = vmatprep.subr.mxu0 0.0
    %1935 = vmatpush1.msra.mxu0 0.0
    %1936 = vmatprep.subr.mxu0 0.0
    %1937 = vmatpush1.msra.mxu0 0.0
    %1938 = vmatprep.subr.mxu0 0.0
    %1939 = vmatpush1.msra.mxu0 0.0
    %1940 = vmatprep.subr.mxu0 0.0
    %1941 = vmatpush1.msra.mxu0 0.0
    %1942 = vmatprep.subr.mxu0 0.0
    %1943 = vmatpush1.msra.mxu0 0.0
    %1944 = vmatprep.subr.mxu0 0.0
    %1945 = vmatpush1.msra.mxu0 0.0
    %1946 = vmatprep.subr.mxu0 0.0
    %1947 = vmatpush1.msra.mxu0 0.0
    %1948 = vmatprep.subr.mxu0 0.0
    %1949 = vmatpush1.msra.mxu0 0.0
    %1950 = vmatprep.subr.mxu0 0.0
    %1951 = vmatpush1.msra.mxu0 0.0
    %1952 = vmatprep.subr.mxu0 0.0
    %1953 = vmatpush1.msra.mxu0 0.0
    %1954 = vmatprep.subr.mxu0 0.0
    %1955 = vmatpush1.msra.mxu0 0.0
    %1956 = vmatprep.subr.mxu0 0.0
    %1957 = vmatpush1.msra.mxu0 0.0
    %1958 = vmatprep.subr.mxu0 0.0
    %1959 = vmatpush1.msra.mxu0 0.0
    %1960 = vmatprep.subr.mxu0 0.0
    %1961 = vmatpush1.msra.mxu0 0.0
    %1962 = vmatprep.subr.mxu0 0.0
    %1963 = vmatpush1.msra.mxu0 0.0
    %1964 = vmatprep.subr.mxu0 0.0
    %1965 = vmatpush1.msra.mxu0 0.0
    %1966 = vmatprep.subr.mxu0 0.0
    %1967 = vmatpush1.msra.mxu0 0.0
    %1968 = vmatprep.subr.mxu0 0.0
    %1969 = vmatpush1.msra.mxu0 0.0
    %1970 = vmatprep.subr.mxu0 0.0
    %1971 = vmatpush1.msra.mxu0 0.0
    %1972 = vmatprep.subr.mxu0 0.0
    %1973 = vmatpush1.msra.mxu0 0.0
    %1974 = vmatprep.subr.mxu0 0.0
    %1975 = vmatpush1.msra.mxu0 0.0
    %1976 = vmatprep.subr.mxu0 0.0
    %1977 = vmatpush1.msra.mxu0 0.0
    %1978 = vmatprep.subr.mxu0 0.0
    %1979 = vmatpush1.msra.mxu0 0.0
    %1980 = vmatprep.subr.mxu0 0.0
    %1981 = vmatpush1.msra.mxu0 0.0
    %1982 = vmatprep.mubr.f32.mxu0 0.0
    %1983 = vmatmul.mubr.f32.gmra.mrb[0].mxu0 %v1825
    %v1984 = vpop.f32.mrb[0].mxu0
    %v1985 = vadd.f32 %v1916, %v1984
    %v1986 = vpop.f32.mrb[0].mxu0
    %1987 = vmatprep.mubr.f32.mxu0 0.0
    %1988 = vmatmul.mubr.f32.gmra.mrb[0].mxu0 %v1828
    %v1989 = vpop.f32.mrb[0].mxu0
    %v1990 = vadd.f32 %v1916, %v1989
    %v1991 = vpop.f32.mrb[0].mxu0
    %1992 = vdwg.mxu0
    %s1993 = scalar_lea.vmem %s17, 32
    %v1994 = vld [vmem:[%s1993] sm:$0xff]
    %v1995 = vld [vmem:[%s1993 + $0x8] sm:$0xff]
    %v1996 = vld [vmem:[%s1993 + $0x10] sm:$0xff]
    %v1997 = vld [vmem:[%s1993 + $0x18] sm:$0xff]
    %s1998 = scalar_lea.vmem [#allocation11], 1
    %v1999 = vld [vmem:[%s1998] sm:$0x1]
    %v2001 = vlaneseq
    %v2002 = vshrl.u32 %v2001, 7
    %v2003 = vsub.s32 0, %v2002
    %v2004 = vrot.slane %v1999, %v2003
    %2006 = vmatprep.subr.mxu0 0.0
    %2007 = vmatpush1.msra.mxu0 %v1994
    %2008 = vmatprep.subr.mxu0 0.0
    %2009 = vmatpush1.msra.mxu0 %v1995
    %2010 = vmatprep.subr.mxu0 0.0
    %2011 = vmatpush1.msra.mxu0 %v1996
    %2012 = vmatprep.subr.mxu0 0.0
    %2013 = vmatpush1.msra.mxu0 %v1997
    %2014 = vmatprep.subr.mxu0 0.0
    %2015 = vmatpush1.msra.mxu0 0.0
    %2016 = vmatprep.subr.mxu0 0.0
    %2017 = vmatpush1.msra.mxu0 0.0
    %2018 = vmatprep.subr.mxu0 0.0
    %2019 = vmatpush1.msra.mxu0 0.0
    %2020 = vmatprep.subr.mxu0 0.0
    %2021 = vmatpush1.msra.mxu0 0.0
    %2022 = vmatprep.subr.mxu0 0.0
    %2023 = vmatpush1.msra.mxu0 0.0
    %2024 = vmatprep.subr.mxu0 0.0
    %2025 = vmatpush1.msra.mxu0 0.0
    %2026 = vmatprep.subr.mxu0 0.0
    %2027 = vmatpush1.msra.mxu0 0.0
    %2028 = vmatprep.subr.mxu0 0.0
    %2029 = vmatpush1.msra.mxu0 0.0
    %2030 = vmatprep.subr.mxu0 0.0
    %2031 = vmatpush1.msra.mxu0 0.0
    %2032 = vmatprep.subr.mxu0 0.0
    %2033 = vmatpush1.msra.mxu0 0.0
    %2034 = vmatprep.subr.mxu0 0.0
    %2035 = vmatpush1.msra.mxu0 0.0
    %2036 = vmatprep.subr.mxu0 0.0
    %2037 = vmatpush1.msra.mxu0 0.0
    %2038 = vmatprep.subr.mxu0 0.0
    %2039 = vmatpush1.msra.mxu0 0.0
    %2040 = vmatprep.subr.mxu0 0.0
    %2041 = vmatpush1.msra.mxu0 0.0
    %2042 = vmatprep.subr.mxu0 0.0
    %2043 = vmatpush1.msra.mxu0 0.0
    %2044 = vmatprep.subr.mxu0 0.0
    %2045 = vmatpush1.msra.mxu0 0.0
    %2046 = vmatprep.subr.mxu0 0.0
    %2047 = vmatpush1.msra.mxu0 0.0
    %2048 = vmatprep.subr.mxu0 0.0
    %2049 = vmatpush1.msra.mxu0 0.0
    %2050 = vmatprep.subr.mxu0 0.0
    %2051 = vmatpush1.msra.mxu0 0.0
    %2052 = vmatprep.subr.mxu0 0.0
    %2053 = vmatpush1.msra.mxu0 0.0
    %2054 = vmatprep.subr.mxu0 0.0
    %2055 = vmatpush1.msra.mxu0 0.0
    %2056 = vmatprep.subr.mxu0 0.0
    %2057 = vmatpush1.msra.mxu0 0.0
    %2058 = vmatprep.subr.mxu0 0.0
    %2059 = vmatpush1.msra.mxu0 0.0
    %2060 = vmatprep.subr.mxu0 0.0
    %2061 = vmatpush1.msra.mxu0 0.0
    %2062 = vmatprep.subr.mxu0 0.0
    %2063 = vmatpush1.msra.mxu0 0.0
    %2064 = vmatprep.subr.mxu0 0.0
    %2065 = vmatpush1.msra.mxu0 0.0
    %2066 = vmatprep.subr.mxu0 0.0
    %2067 = vmatpush1.msra.mxu0 0.0
    %2068 = vmatprep.subr.mxu0 0.0
    %2069 = vmatpush1.msra.mxu0 0.0
    %2070 = vmatprep.mubr.f32.mxu0 0.0
    %2071 = vmatmul.mubr.f32.gmra.mrb[0].mxu0 %v1825
    %v2072 = vpop.f32.mrb[0].mxu0
    %v2073 = vadd.f32 %v2004, %v2072
    %v2074 = vpop.f32.mrb[0].mxu0
    %2075 = vmatprep.mubr.f32.mxu0 0.0
    %2076 = vmatmul.mubr.f32.gmra.mrb[0].mxu0 %v1828
    %v2077 = vpop.f32.mrb[0].mxu0
    %v2078 = vadd.f32 %v2004, %v2077
    %v2079 = vpop.f32.mrb[0].mxu0
    %2080 = vdwg.mxu0
    %v2082 = vsel %vm544, %v1897, 0
    %v2085 = vsel %vm544, %v1902, 0
    %v2088 = vsel %vm544, %v1985, 0
    %v2091 = vsel %vm544, %v1990, 0
    %2093 = vmatprep.subr.mxu0 0.0
    %2094 = vmatpush1.xpose.msra.mxu0 %v2088
    %2095 = vmatprep.subr.mxu0 0.0
    %2096 = vmatpush1.xpose.msra.mxu0 %v2091
    %2097 = vmatprep.subr.mxu0 0.0
    %2098 = vmatpush1.xpose.msra.mxu0 0.0
    %2099 = vmatprep.subr.mxu0 0.0
    %2100 = vmatpush1.xpose.msra.mxu0 0.0
    %2101 = vmatprep.subr.mxu0 0.0
    %2102 = vmatpush1.xpose.msra.mxu0 0.0
    %2103 = vmatprep.subr.mxu0 0.0
    %2104 = vmatpush1.xpose.msra.mxu0 0.0
    %2105 = vmatprep.subr.mxu0 0.0
    %2106 = vmatpush1.xpose.msra.mxu0 0.0
    %2107 = vmatprep.subr.mxu0 0.0
    %2108 = vmatpush1.xpose.msra.mxu0 0.0
    %2109 = vmatprep.subr.mxu0 0.0
    %2110 = vmatpush1.xpose.msra.mxu0 0.0
    %2111 = vmatprep.subr.mxu0 0.0
    %2112 = vmatpush1.xpose.msra.mxu0 0.0
    %2113 = vmatprep.subr.mxu0 0.0
    %2114 = vmatpush1.xpose.msra.mxu0 0.0
    %2115 = vmatprep.subr.mxu0 0.0
    %2116 = vmatpush1.xpose.msra.mxu0 0.0
    %2117 = vmatprep.subr.mxu0 0.0
    %2118 = vmatpush1.xpose.msra.mxu0 0.0
    %2119 = vmatprep.subr.mxu0 0.0
    %2120 = vmatpush1.xpose.msra.mxu0 0.0
    %2121 = vmatprep.subr.mxu0 0.0
    %2122 = vmatpush1.xpose.msra.mxu0 0.0
    %2123 = vmatprep.subr.mxu0 0.0
    %2124 = vmatpush1.xpose.msra.mxu0 0.0
    %2125 = vmatprep.subr.mxu0 0.0
    %2126 = vmatpush1.xpose.msra.mxu0 0.0
    %2127 = vmatprep.subr.mxu0 0.0
    %2128 = vmatpush1.xpose.msra.mxu0 0.0
    %2129 = vmatprep.subr.mxu0 0.0
    %2130 = vmatpush1.xpose.msra.mxu0 0.0
    %2131 = vmatprep.subr.mxu0 0.0
    %2132 = vmatpush1.xpose.msra.mxu0 0.0
    %2133 = vmatprep.subr.mxu0 0.0
    %2134 = vmatpush1.xpose.msra.mxu0 0.0
    %2135 = vmatprep.subr.mxu0 0.0
    %2136 = vmatpush1.xpose.msra.mxu0 0.0
    %2137 = vmatprep.subr.mxu0 0.0
    %2138 = vmatpush1.xpose.msra.mxu0 0.0
    %2139 = vmatprep.subr.mxu0 0.0
    %2140 = vmatpush1.xpose.msra.mxu0 0.0
    %2141 = vmatprep.subr.mxu0 0.0
    %2142 = vmatpush1.xpose.msra.mxu0 0.0
    %2143 = vmatprep.subr.mxu0 0.0
    %2144 = vmatpush1.xpose.msra.mxu0 0.0
    %2145 = vmatprep.subr.mxu0 0.0
    %2146 = vmatpush1.xpose.msra.mxu0 0.0
    %2147 = vmatprep.subr.mxu0 0.0
    %2148 = vmatpush1.xpose.msra.mxu0 0.0
    %2149 = vmatprep.subr.mxu0 0.0
    %2150 = vmatpush1.xpose.msra.mxu0 0.0
    %2151 = vmatprep.subr.mxu0 0.0
    %2152 = vmatpush1.xpose.msra.mxu0 0.0
    %2153 = vmatprep.subr.mxu0 0.0
    %2154 = vmatpush1.xpose.msra.mxu0 0.0
    %2155 = vmatprep.subr.mxu0 0.0
    %2156 = vmatpush1.xpose.msra.mxu0 0.0
    %2157 = vmatprep.mubr.f32.mxu0 0.0
    %2158 = vmatmul.mubr.f32.gmra.mrb[0].mxu0 %v2082
    %v2159 = vpop.f32.mrb[0].mxu0
    %v2160 = vadd.f32 %v413, %v2159
    %v2161 = vpop.f32.mrb[0].mxu0
    %2162 = vmatprep.mubr.f32.mxu0 0.0
    %2163 = vmatmul.mubr.f32.gmra.mrb[0].mxu0 %v2085
    %v2164 = vpop.f32.mrb[0].mxu0
    %v2165 = vadd.f32 %v414, %v2164
    %v2166 = vpop.f32.mrb[0].mxu0
    %2167 = vdwg.mxu0
    %v2168 = vsel %vm885, %v2160, -inf
    %2169 = vmax.xlane.f32.xlu0 %v2168
    %v2170 = vpop.xlane.xlu0 %2169
    %v2171 = vsel %vm885, %v2165, -inf
    %2172 = vmax.xlane.f32.xlu0 %v2171
    %v2173 = vpop.xlane.xlu0 %2172
    %v2174 = vsub.f32 %v2160, %v2170
    %v2175 = vsub.f32 %v2165, %v2173
    %v2176 = vmul.f32 %v2174, 1.442695
    %v2177 = vpow.pop %v2176
    %v2178 = vmul.f32 %v2175, 1.442695
    %v2179 = vpow.pop %v2178
    %v2180 = vsel %vm885, %v2177, 0.0
    %2181 = vadd.xlane.f32.xlu0 %v2180
    %v2182 = vpop.xlane.xlu0 %2181
    %v2183 = vsel %vm885, %v2179, 0.0
    %2184 = vadd.xlane.f32.xlu0 %v2183
    %v2185 = vpop.xlane.xlu0 %2184
    %v2186 = vrcp.pop %v2182
    %v2187 = vrcp.pop %v2185
    %v2188 = vmul.f32 %v2177, %v2186
    %v2189 = vmul.f32 %v2179, %v2187
    %v2191 = vsel %vm885, %v2188, 0
    %v2194 = vsel %vm885, %v2189, 0
    %2196 = vmatprep.subr.mxu0 0.0
    %2197 = vmatpush1.msra.mxu0 %v2073
    %2198 = vmatprep.subr.mxu0 0.0
    %2199 = vmatpush1.msra.mxu0 %v2078
    %2200 = vmatprep.subr.mxu0 0.0
    %2201 = vmatpush1.msra.mxu0 0.0
    %2202 = vmatprep.subr.mxu0 0.0
    %2203 = vmatpush1.msra.mxu0 0.0
    %2204 = vmatprep.subr.mxu0 0.0
    %2205 = vmatpush1.msra.mxu0 0.0
    %2206 = vmatprep.subr.mxu0 0.0
    %2207 = vmatpush1.msra.mxu0 0.0
    %2208 = vmatprep.subr.mxu0 0.0
    %2209 = vmatpush1.msra.mxu0 0.0
    %2210 = vmatprep.subr.mxu0 0.0
    %2211 = vmatpush1.msra.mxu0 0.0
    %2212 = vmatprep.subr.mxu0 0.0
    %2213 = vmatpush1.msra.mxu0 0.0
    %2214 = vmatprep.subr.mxu0 0.0
    %2215 = vmatpush1.msra.mxu0 0.0
    %2216 = vmatprep.subr.mxu0 0.0
    %2217 = vmatpush1.msra.mxu0 0.0
    %2218 = vmatprep.subr.mxu0 0.0
    %2219 = vmatpush1.msra.mxu0 0.0
    %2220 = vmatprep.subr.mxu0 0.0
    %2221 = vmatpush1.msra.mxu0 0.0
    %2222 = vmatprep.subr.mxu0 0.0
    %2223 = vmatpush1.msra.mxu0 0.0
    %2224 = vmatprep.subr.mxu0 0.0
    %2225 = vmatpush1.msra.mxu0 0.0
    %2226 = vmatprep.subr.mxu0 0.0
    %2227 = vmatpush1.msra.mxu0 0.0
    %2228 = vmatprep.subr.mxu0 0.0
    %2229 = vmatpush1.msra.mxu0 0.0
    %2230 = vmatprep.subr.mxu0 0.0
    %2231 = vmatpush1.msra.mxu0 0.0
    %2232 = vmatprep.subr.mxu0 0.0
    %2233 = vmatpush1.msra.mxu0 0.0
    %2234 = vmatprep.subr.mxu0 0.0
    %2235 = vmatpush1.msra.mxu0 0.0
    %2236 = vmatprep.subr.mxu0 0.0
    %2237 = vmatpush1.msra.mxu0 0.0
    %2238 = vmatprep.subr.mxu0 0.0
    %2239 = vmatpush1.msra.mxu0 0.0
    %2240 = vmatprep.subr.mxu0 0.0
    %2241 = vmatpush1.msra.mxu0 0.0
    %2242 = vmatprep.subr.mxu0 0.0
    %2243 = vmatpush1.msra.mxu0 0.0
    %2244 = vmatprep.subr.mxu0 0.0
    %2245 = vmatpush1.msra.mxu0 0.0
    %2246 = vmatprep.subr.mxu0 0.0
    %2247 = vmatpush1.msra.mxu0 0.0
    %2248 = vmatprep.subr.mxu0 0.0
    %2249 = vmatpush1.msra.mxu0 0.0
    %2250 = vmatprep.subr.mxu0 0.0
    %2251 = vmatpush1.msra.mxu0 0.0
    %2252 = vmatprep.subr.mxu0 0.0
    %2253 = vmatpush1.msra.mxu0 0.0
    %2254 = vmatprep.subr.mxu0 0.0
    %2255 = vmatpush1.msra.mxu0 0.0
    %2256 = vmatprep.subr.mxu0 0.0
    %2257 = vmatpush1.msra.mxu0 0.0
    %2258 = vmatprep.subr.mxu0 0.0
    %2259 = vmatpush1.msra.mxu0 0.0
    %2260 = vmatprep.mubr.f32.mxu0 0.0
    %2261 = vmatmul.mubr.f32.gmra.mrb[0].mxu0 %v2191
    %v2262 = vpop.f32.mrb[0].mxu0
    %v2263 = vadd.f32 0.0, %v2262
    %v2264 = vpop.f32.mrb[0].mxu0
    %2265 = vmatprep.mubr.f32.mxu0 0.0
    %2266 = vmatmul.mubr.f32.gmra.mrb[0].mxu0 %v2194
    %v2267 = vpop.f32.mrb[0].mxu0
    %v2268 = vadd.f32 0.0, %v2267
    %v2269 = vpop.f32.mrb[0].mxu0
    %2270 = vdwg.mxu0
    %v2271 = vadd.f32 %v1809, %v2263
    %v2272 = vadd.f32 %v1810, %v2268
    %s2273 = scalar_lea.vmem [#allocation19], 1
    %v2274 = vld [vmem:[%s2273] sm:$0x1]
    %s2275 = scalar_lea.vmem [#allocation20], 1
    %v2276 = vld [vmem:[%s2275] sm:$0x1]
    %v2277 = vsel %vm544, %v2271, 0.0
    %2278 = vadd.xlane.f32.xlu0 %v2277
    %v2279 = vpop.xlane.xlu0 %2278
    %v2280 = vsel %vm544, %v2272, 0.0
    %2281 = vadd.xlane.f32.xlu0 %v2280
    %v2282 = vpop.xlane.xlu0 %2281
    %v2283 = vmul.f32 %v2279, %v999
    %v2284 = vmul.f32 %v2282, %v999
    %v2285 = vsub.f32 %v2271, %v2283
    %v2286 = vsub.f32 %v2272, %v2284
    %v2287 = vmul.f32 %v2285, %v2285
    %v2288 = vmul.f32 %v2286, %v2286
    %v2289 = vsel %vm544, %v2287, 0.0
    %2290 = vadd.xlane.f32.xlu0 %v2289
    %v2291 = vpop.xlane.xlu0 %2290
    %v2292 = vsel %vm544, %v2288, 0.0
    %2293 = vadd.xlane.f32.xlu0 %v2292
    %v2294 = vpop.xlane.xlu0 %2293
    %v2295 = vmul.f32 %v2291, %v999
    %v2296 = vmul.f32 %v2294, %v999
    %v2297 = vadd.f32 %v2295, 1e-05
    %v2298 = vadd.f32 %v2296, 1e-05
    %v2299 = vrsqrt.pop %v2297
    %v2300 = vrsqrt.pop %v2298
    %v2301 = vmul.f32 %v2285, %v2299
    %v2302 = vmul.f32 %v2286, %v2300
    %v2304 = vlaneseq
    %v2305 = vshrl.u32 %v2304, 7
    %v2306 = vsub.s32 0, %v2305
    %v2307 = vrot.slane %v2274, %v2306
    %v2309 = vmul.f32 %v2301, %v2307
    %v2310 = vmul.f32 %v2302, %v2307
    %v2312 = vlaneseq
    %v2313 = vshrl.u32 %v2312, 7
    %v2314 = vsub.s32 0, %v2313
    %v2315 = vrot.slane %v2276, %v2314
    %v2317 = vadd.f32 %v2309, %v2315
    %v2318 = vadd.f32 %v2310, %v2315
    %s2319 = scalar_lea.vmem %s25, 32
    %v2320 = vld [vmem:[%s2319] sm:$0xff]
    %v2321 = vld [vmem:[%s2319 + $0x8] sm:$0xff]
    %v2322 = vld [vmem:[%s2319 + $0x10] sm:$0xff]
    %v2323 = vld [vmem:[%s2319 + $0x18] sm:$0xff]
    %s2324 = scalar_lea.vmem [#allocation14], 1
    %v2325 = vld [vmem:[%s2324] sm:$0x1]
    %v2327 = vlaneseq
    %v2328 = vshrl.u32 %v2327, 7
    %v2329 = vsub.s32 0, %v2328
    %v2330 = vrot.slane %v2325, %v2329
    %v2333 = vsel %vm544, %v2317, 0
    %v2336 = vsel %vm544, %v2318, 0
    %2338 = vmatprep.subr.mxu0 0.0
    %2339 = vmatpush1.msra.mxu0 %v2320
    %2340 = vmatprep.subr.mxu0 0.0
    %2341 = vmatpush1.msra.mxu0 %v2321
    %2342 = vmatprep.subr.mxu0 0.0
    %2343 = vmatpush1.msra.mxu0 %v2322
    %2344 = vmatprep.subr.mxu0 0.0
    %2345 = vmatpush1.msra.mxu0 %v2323
    %2346 = vmatprep.subr.mxu0 0.0
    %2347 = vmatpush1.msra.mxu0 0.0
    %2348 = vmatprep.subr.mxu0 0.0
    %2349 = vmatpush1.msra.mxu0 0.0
    %2350 = vmatprep.subr.mxu0 0.0
    %2351 = vmatpush1.msra.mxu0 0.0
    %2352 = vmatprep.subr.mxu0 0.0
    %2353 = vmatpush1.msra.mxu0 0.0
    %2354 = vmatprep.subr.mxu0 0.0
    %2355 = vmatpush1.msra.mxu0 0.0
    %2356 = vmatprep.subr.mxu0 0.0
    %2357 = vmatpush1.msra.mxu0 0.0
    %2358 = vmatprep.subr.mxu0 0.0
    %2359 = vmatpush1.msra.mxu0 0.0
    %2360 = vmatprep.subr.mxu0 0.0
    %2361 = vmatpush1.msra.mxu0 0.0
    %2362 = vmatprep.subr.mxu0 0.0
    %2363 = vmatpush1.msra.mxu0 0.0
    %2364 = vmatprep.subr.mxu0 0.0
    %2365 = vmatpush1.msra.mxu0 0.0
    %2366 = vmatprep.subr.mxu0 0.0
    %2367 = vmatpush1.msra.mxu0 0.0
    %2368 = vmatprep.subr.mxu0 0.0
    %2369 = vmatpush1.msra.mxu0 0.0
    %2370 = vmatprep.subr.mxu0 0.0
    %2371 = vmatpush1.msra.mxu0 0.0
    %2372 = vmatprep.subr.mxu0 0.0
    %2373 = vmatpush1.msra.mxu0 0.0
    %2374 = vmatprep.subr.mxu0 0.0
    %2375 = vmatpush1.msra.mxu0 0.0
    %2376 = vmatprep.subr.mxu0 0.0
    %2377 = vmatpush1.msra.mxu0 0.0
    %2378 = vmatprep.subr.mxu0 0.0
    %2379 = vmatpush1.msra.mxu0 0.0
    %2380 = vmatprep.subr.mxu0 0.0
    %2381 = vmatpush1.msra.mxu0 0.0
    %2382 = vmatprep.subr.mxu0 0.0
    %2383 = vmatpush1.msra.mxu0 0.0
    %2384 = vmatprep.subr.mxu0 0.0
    %2385 = vmatpush1.msra.mxu0 0.0
    %2386 = vmatprep.subr.mxu0 0.0
    %2387 = vmatpush1.msra.mxu0 0.0
    %2388 = vmatprep.subr.mxu0 0.0
    %2389 = vmatpush1.msra.mxu0 0.0
    %2390 = vmatprep.subr.mxu0 0.0
    %2391 = vmatpush1.msra.mxu0 0.0
    %2392 = vmatprep.subr.mxu0 0.0
    %2393 = vmatpush1.msra.mxu0 0.0
    %2394 = vmatprep.subr.mxu0 0.0
    %2395 = vmatpush1.msra.mxu0 0.0
    %2396 = vmatprep.subr.mxu0 0.0
    %2397 = vmatpush1.msra.mxu0 0.0
    %2398 = vmatprep.subr.mxu0 0.0
    %2399 = vmatpush1.msra.mxu0 0.0
    %2400 = vmatprep.subr.mxu0 0.0
    %2401 = vmatpush1.msra.mxu0 0.0
    %2402 = vmatprep.mubr.f32.mxu0 0.0
    %2403 = vmatmul.mubr.f32.gmra.mrb[0].mxu0 %v2333
    %v2404 = vpop.f32.mrb[0].mxu0
    %v2405 = vadd.f32 %v2330, %v2404
    %v2406 = vpop.f32.mrb[0].mxu0
    %2407 = vmatprep.mubr.f32.mxu0 0.0
    %2408 = vmatmul.mubr.f32.gmra.mrb[0].mxu0 %v2336
    %v2409 = vpop.f32.mrb[0].mxu0
    %v2410 = vadd.f32 %v2330, %v2409
    %v2411 = vpop.f32.mrb[0].mxu0
    %2412 = vdwg.mxu0
    %s2413 = scalar_lea.vmem %s27, 32
    %v2414 = vld [vmem:[%s2413] sm:$0xff]
    %v2415 = vld [vmem:[%s2413 + $0x8] sm:$0xff]
    %v2416 = vld [vmem:[%s2413 + $0x10] sm:$0xff]
    %v2417 = vld [vmem:[%s2413 + $0x18] sm:$0xff]
    %s2418 = scalar_lea.vmem [#allocation16], 1
    %v2419 = vld [vmem:[%s2418] sm:$0x1]
    %v2421 = vlaneseq
    %v2422 = vshrl.u32 %v2421, 7
    %v2423 = vsub.s32 0, %v2422
    %v2424 = vrot.slane %v2419, %v2423
    %2426 = vmatprep.subr.mxu0 0.0
    %2427 = vmatpush1.msra.mxu0 %v2414
    %2428 = vmatprep.subr.mxu0 0.0
    %2429 = vmatpush1.msra.mxu0 %v2415
    %2430 = vmatprep.subr.mxu0 0.0
    %2431 = vmatpush1.msra.mxu0 %v2416
    %2432 = vmatprep.subr.mxu0 0.0
    %2433 = vmatpush1.msra.mxu0 %v2417
    %2434 = vmatprep.subr.mxu0 0.0
    %2435 = vmatpush1.msra.mxu0 0.0
    %2436 = vmatprep.subr.mxu0 0.0
    %2437 = vmatpush1.msra.mxu0 0.0
    %2438 = vmatprep.subr.mxu0 0.0
    %2439 = vmatpush1.msra.mxu0 0.0
    %2440 = vmatprep.subr.mxu0 0.0
    %2441 = vmatpush1.msra.mxu0 0.0
    %2442 = vmatprep.subr.mxu0 0.0
    %2443 = vmatpush1.msra.mxu0 0.0
    %2444 = vmatprep.subr.mxu0 0.0
    %2445 = vmatpush1.msra.mxu0 0.0
    %2446 = vmatprep.subr.mxu0 0.0
    %2447 = vmatpush1.msra.mxu0 0.0
    %2448 = vmatprep.subr.mxu0 0.0
    %2449 = vmatpush1.msra.mxu0 0.0
    %2450 = vmatprep.subr.mxu0 0.0
    %2451 = vmatpush1.msra.mxu0 0.0
    %2452 = vmatprep.subr.mxu0 0.0
    %2453 = vmatpush1.msra.mxu0 0.0
    %2454 = vmatprep.subr.mxu0 0.0
    %2455 = vmatpush1.msra.mxu0 0.0
    %2456 = vmatprep.subr.mxu0 0.0
    %2457 = vmatpush1.msra.mxu0 0.0
    %2458 = vmatprep.subr.mxu0 0.0
    %2459 = vmatpush1.msra.mxu0 0.0
    %2460 = vmatprep.subr.mxu0 0.0
    %2461 = vmatpush1.msra.mxu0 0.0
    %2462 = vmatprep.subr.mxu0 0.0
    %2463 = vmatpush1.msra.mxu0 0.0
    %2464 = vmatprep.subr.mxu0 0.0
    %2465 = vmatpush1.msra.mxu0 0.0
    %2466 = vmatprep.subr.mxu0 0.0
    %2467 = vmatpush1.msra.mxu0 0.0
    %2468 = vmatprep.subr.mxu0 0.0
    %2469 = vmatpush1.msra.mxu0 0.0
    %2470 = vmatprep.subr.mxu0 0.0
    %2471 = vmatpush1.msra.mxu0 0.0
    %2472 = vmatprep.subr.mxu0 0.0
    %2473 = vmatpush1.msra.mxu0 0.0
    %2474 = vmatprep.subr.mxu0 0.0
    %2475 = vmatpush1.msra.mxu0 0.0
    %2476 = vmatprep.subr.mxu0 0.0
    %2477 = vmatpush1.msra.mxu0 0.0
    %2478 = vmatprep.subr.mxu0 0.0
    %2479 = vmatpush1.msra.mxu0 0.0
    %2480 = vmatprep.subr.mxu0 0.0
    %2481 = vmatpush1.msra.mxu0 0.0
    %2482 = vmatprep.subr.mxu0 0.0
    %2483 = vmatpush1.msra.mxu0 0.0
    %2484 = vmatprep.subr.mxu0 0.0
    %2485 = vmatpush1.msra.mxu0 0.0
    %2486 = vmatprep.subr.mxu0 0.0
    %2487 = vmatpush1.msra.mxu0 0.0
    %2488 = vmatprep.subr.mxu0 0.0
    %2489 = vmatpush1.msra.mxu0 0.0
    %2490 = vmatprep.mubr.f32.mxu0 0.0
    %2491 = vmatmul.mubr.f32.gmra.mrb[0].mxu0 %v1140
    %v2492 = vpop.f32.mrb[0].mxu0
    %v2493 = vadd.f32 %v2424, %v2492
    %v2494 = vpop.f32.mrb[0].mxu0
    %2495 = vmatprep.mubr.f32.mxu0 0.0
    %2496 = vmatmul.mubr.f32.gmra.mrb[0].mxu0 %v1143
    %v2497 = vpop.f32.mrb[0].mxu0
    %v2498 = vadd.f32 %v2424, %v2497
    %v2499 = vpop.f32.mrb[0].mxu0
    %2500 = vmatprep.mubr.f32.mxu0 0.0
    %2501 = vmatmul.mubr.f32.gmra.mrb[0].mxu0 %v1146
    %v2502 = vpop.f32.mrb[0].mxu0
    %v2503 = vadd.f32 %v2424, %v2502
    %v2504 = vpop.f32.mrb[0].mxu0
    %2505 = vmatprep.mubr.f32.mxu0 0.0
    %2506 = vmatmul.mubr.f32.gmra.mrb[0].mxu0 %v1149
    %v2507 = vpop.f32.mrb[0].mxu0
    %v2508 = vadd.f32 %v2424, %v2507
    %v2509 = vpop.f32.mrb[0].mxu0
    %2510 = vdwg.mxu0
    %s2511 = scalar_lea.vmem [#allocation13], 32
    %v2512 = vld [vmem:[%s2511] sm:$0xff]
    %v2513 = vld [vmem:[%s2511 + $0x8] sm:$0xff]
    %v2514 = vld [vmem:[%s2511 + $0x10] sm:$0xff]
    %v2515 = vld [vmem:[%s2511 + $0x18] sm:$0xff]
    %s2516 = scalar_lea.vmem [#allocation17], 1
    %v2517 = vld [vmem:[%s2516] sm:$0x1]
    %v2519 = vlaneseq
    %v2520 = vshrl.u32 %v2519, 7
    %v2521 = vsub.s32 0, %v2520
    %v2522 = vrot.slane %v2517, %v2521
    %2524 = vmatprep.subr.mxu0 0.0
    %2525 = vmatpush1.msra.mxu0 %v2512
    %2526 = vmatprep.subr.mxu0 0.0
    %2527 = vmatpush1.msra.mxu0 %v2513
    %2528 = vmatprep.subr.mxu0 0.0
    %2529 = vmatpush1.msra.mxu0 %v2514
    %2530 = vmatprep.subr.mxu0 0.0
    %2531 = vmatpush1.msra.mxu0 %v2515
    %2532 = vmatprep.subr.mxu0 0.0
    %2533 = vmatpush1.msra.mxu0 0.0
    %2534 = vmatprep.subr.mxu0 0.0
    %2535 = vmatpush1.msra.mxu0 0.0
    %2536 = vmatprep.subr.mxu0 0.0
    %2537 = vmatpush1.msra.mxu0 0.0
    %2538 = vmatprep.subr.mxu0 0.0
    %2539 = vmatpush1.msra.mxu0 0.0
    %2540 = vmatprep.subr.mxu0 0.0
    %2541 = vmatpush1.msra.mxu0 0.0
    %2542 = vmatprep.subr.mxu0 0.0
    %2543 = vmatpush1.msra.mxu0 0.0
    %2544 = vmatprep.subr.mxu0 0.0
    %2545 = vmatpush1.msra.mxu0 0.0
    %2546 = vmatprep.subr.mxu0 0.0
    %2547 = vmatpush1.msra.mxu0 0.0
    %2548 = vmatprep.subr.mxu0 0.0
    %2549 = vmatpush1.msra.mxu0 0.0
    %2550 = vmatprep.subr.mxu0 0.0
    %2551 = vmatpush1.msra.mxu0 0.0
    %2552 = vmatprep.subr.mxu0 0.0
    %2553 = vmatpush1.msra.mxu0 0.0
    %2554 = vmatprep.subr.mxu0 0.0
    %2555 = vmatpush1.msra.mxu0 0.0
    %2556 = vmatprep.subr.mxu0 0.0
    %2557 = vmatpush1.msra.mxu0 0.0
    %2558 = vmatprep.subr.mxu0 0.0
    %2559 = vmatpush1.msra.mxu0 0.0
    %2560 = vmatprep.subr.mxu0 0.0
    %2561 = vmatpush1.msra.mxu0 0.0
    %2562 = vmatprep.subr.mxu0 0.0
    %2563 = vmatpush1.msra.mxu0 0.0
    %2564 = vmatprep.subr.mxu0 0.0
    %2565 = vmatpush1.msra.mxu0 0.0
    %2566 = vmatprep.subr.mxu0 0.0
    %2567 = vmatpush1.msra.mxu0 0.0
    %2568 = vmatprep.subr.mxu0 0.0
    %2569 = vmatpush1.msra.mxu0 0.0
    %2570 = vmatprep.subr.mxu0 0.0
    %2571 = vmatpush1.msra.mxu0 0.0
    %2572 = vmatprep.subr.mxu0 0.0
    %2573 = vmatpush1.msra.mxu0 0.0
    %2574 = vmatprep.subr.mxu0 0.0
    %2575 = vmatpush1.msra.mxu0 0.0
    %2576 = vmatprep.subr.mxu0 0.0
    %2577 = vmatpush1.msra.mxu0 0.0
    %2578 = vmatprep.subr.mxu0 0.0
    %2579 = vmatpush1.msra.mxu0 0.0
    %2580 = vmatprep.subr.mxu0 0.0
    %2581 = vmatpush1.msra.mxu0 0.0
    %2582 = vmatprep.subr.mxu0 0.0
    %2583 = vmatpush1.msra.mxu0 0.0
    %2584 = vmatprep.subr.mxu0 0.0
    %2585 = vmatpush1.msra.mxu0 0.0
    %2586 = vmatprep.subr.mxu0 0.0
    %2587 = vmatpush1.msra.mxu0 0.0
    %2588 = vmatprep.mubr.f32.mxu0 0.0
    %2589 = vmatmul.mubr.f32.gmra.mrb[0].mxu0 %v1140
    %v2590 = vpop.f32.mrb[0].mxu0
    %v2591 = vadd.f32 %v2522, %v2590
    %v2592 = vpop.f32.mrb[0].mxu0
    %2593 = vmatprep.mubr.f32.mxu0 0.0
    %2594 = vmatmul.mubr.f32.gmra.mrb[0].mxu0 %v1143
    %v2595 = vpop.f32.mrb[0].mxu0
    %v2596 = vadd.f32 %v2522, %v2595
    %v2597 = vpop.f32.mrb[0].mxu0
    %2598 = vmatprep.mubr.f32.mxu0 0.0
    %2599 = vmatmul.mubr.f32.gmra.mrb[0].mxu0 %v1146
    %v2600 = vpop.f32.mrb[0].mxu0
    %v2601 = vadd.f32 %v2522, %v2600
    %v2602 = vpop.f32.mrb[0].mxu0
    %2603 = vmatprep.mubr.f32.mxu0 0.0
    %2604 = vmatmul.mubr.f32.gmra.mrb[0].mxu0 %v1149
    %v2605 = vpop.f32.mrb[0].mxu0
    %v2606 = vadd.f32 %v2522, %v2605
    %v2607 = vpop.f32.mrb[0].mxu0
    %2608 = vdwg.mxu0
    %v2610 = vsel %vm544, %v2405, 0
    %v2613 = vsel %vm544, %v2410, 0
    %v2616 = vsel %vm544, %v2493, 0
    %v2619 = vsel %vm544, %v2498, 0
    %v2622 = vsel %vm544, %v2503, 0
    %v2625 = vsel %vm544, %v2508, 0
    %2627 = vmatprep.subr.mxu0 0.0
    %2628 = vmatpush1.xpose.msra.mxu0 %v2616
    %2629 = vmatprep.subr.mxu0 0.0
    %2630 = vmatpush1.xpose.msra.mxu0 %v2619
    %2631 = vmatprep.subr.mxu0 0.0
    %2632 = vmatpush1.xpose.msra.mxu0 %v2622
    %2633 = vmatprep.subr.mxu0 0.0
    %2634 = vmatpush1.xpose.msra.mxu0 %v2625
    %2635 = vmatprep.subr.mxu0 0.0
    %2636 = vmatpush1.xpose.msra.mxu0 0.0
    %2637 = vmatprep.subr.mxu0 0.0
    %2638 = vmatpush1.xpose.msra.mxu0 0.0
    %2639 = vmatprep.subr.mxu0 0.0
    %2640 = vmatpush1.xpose.msra.mxu0 0.0
    %2641 = vmatprep.subr.mxu0 0.0
    %2642 = vmatpush1.xpose.msra.mxu0 0.0
    %2643 = vmatprep.subr.mxu0 0.0
    %2644 = vmatpush1.xpose.msra.mxu0 0.0
    %2645 = vmatprep.subr.mxu0 0.0
    %2646 = vmatpush1.xpose.msra.mxu0 0.0
    %2647 = vmatprep.subr.mxu0 0.0
    %2648 = vmatpush1.xpose.msra.mxu0 0.0
    %2649 = vmatprep.subr.mxu0 0.0
    %2650 = vmatpush1.xpose.msra.mxu0 0.0
    %2651 = vmatprep.subr.mxu0 0.0
    %2652 = vmatpush1.xpose.msra.mxu0 0.0
    %2653 = vmatprep.subr.mxu0 0.0
    %2654 = vmatpush1.xpose.msra.mxu0 0.0
    %2655 = vmatprep.subr.mxu0 0.0
    %2656 = vmatpush1.xpose.msra.mxu0 0.0
    %2657 = vmatprep.subr.mxu0 0.0
    %2658 = vmatpush1.xpose.msra.mxu0 0.0
    %2659 = vmatprep.subr.mxu0 0.0
    %2660 = vmatpush1.xpose.msra.mxu0 0.0
    %2661 = vmatprep.subr.mxu0 0.0
    %2662 = vmatpush1.xpose.msra.mxu0 0.0
    %2663 = vmatprep.subr.mxu0 0.0
    %2664 = vmatpush1.xpose.msra.mxu0 0.0
    %2665 = vmatprep.subr.mxu0 0.0
    %2666 = vmatpush1.xpose.msra.mxu0 0.0
    %2667 = vmatprep.subr.mxu0 0.0
    %2668 = vmatpush1.xpose.msra.mxu0 0.0
    %2669 = vmatprep.subr.mxu0 0.0
    %2670 = vmatpush1.xpose.msra.mxu0 0.0
    %2671 = vmatprep.subr.mxu0 0.0
    %2672 = vmatpush1.xpose.msra.mxu0 0.0
    %2673 = vmatprep.subr.mxu0 0.0
    %2674 = vmatpush1.xpose.msra.mxu0 0.0
    %2675 = vmatprep.subr.mxu0 0.0
    %2676 = vmatpush1.xpose.msra.mxu0 0.0
    %2677 = vmatprep.subr.mxu0 0.0
    %2678 = vmatpush1.xpose.msra.mxu0 0.0
    %2679 = vmatprep.subr.mxu0 0.0
    %2680 = vmatpush1.xpose.msra.mxu0 0.0
    %2681 = vmatprep.subr.mxu0 0.0
    %2682 = vmatpush1.xpose.msra.mxu0 0.0
    %2683 = vmatprep.subr.mxu0 0.0
    %2684 = vmatpush1.xpose.msra.mxu0 0.0
    %2685 = vmatprep.subr.mxu0 0.0
    %2686 = vmatpush1.xpose.msra.mxu0 0.0
    %2687 = vmatprep.subr.mxu0 0.0
    %2688 = vmatpush1.xpose.msra.mxu0 0.0
    %2689 = vmatprep.subr.mxu0 0.0
    %2690 = vmatpush1.xpose.msra.mxu0 0.0
    %2691 = vmatprep.mubr.f32.mxu0 0.0
    %2692 = vmatmul.mubr.f32.gmra.mrb[0].mxu0 %v2610
    %v2693 = vpop.f32.mrb[0].mxu0
    %v2694 = vadd.f32 %v415, %v2693
    %v2695 = vpop.f32.mrb[0].mxu0
    %2696 = vmatprep.mubr.f32.mxu0 0.0
    %2697 = vmatmul.mubr.f32.gmra.mrb[0].mxu0 %v2613
    %v2698 = vpop.f32.mrb[0].mxu0
    %v2699 = vadd.f32 %v416, %v2698
    %v2700 = vpop.f32.mrb[0].mxu0
    %2701 = vdwg.mxu0
    %v2702 = vsel %vm544, %v2694, -inf
    %2703 = vmax.xlane.f32.xlu0 %v2702
    %v2704 = vpop.xlane.xlu0 %2703
    %v2705 = vsel %vm544, %v2699, -inf
    %2706 = vmax.xlane.f32.xlu0 %v2705
    %v2707 = vpop.xlane.xlu0 %2706
    %v2708 = vsub.f32 %v2694, %v2704
    %v2709 = vsub.f32 %v2699, %v2707
    %v2710 = vmul.f32 %v2708, 1.442695
    %v2711 = vpow.pop %v2710
    %v2712 = vmul.f32 %v2709, 1.442695
    %v2713 = vpow.pop %v2712
    %v2714 = vsel %vm544, %v2711, 0.0
    %2715 = vadd.xlane.f32.xlu0 %v2714
    %v2716 = vpop.xlane.xlu0 %2715
    %v2717 = vsel %vm544, %v2713, 0.0
    %2718 = vadd.xlane.f32.xlu0 %v2717
    %v2719 = vpop.xlane.xlu0 %2718
    %v2720 = vrcp.pop %v2716
    %v2721 = vrcp.pop %v2719
    %v2722 = vmul.f32 %v2711, %v2720
    %v2723 = vmul.f32 %v2713, %v2721
    %v2725 = vsel %vm544, %v2722, 0
    %v2728 = vsel %vm544, %v2723, 0
    %2730 = vmatprep.subr.mxu0 0.0
    %2731 = vmatpush1.msra.mxu0 %v2591
    %2732 = vmatprep.subr.mxu0 0.0
    %2733 = vmatpush1.msra.mxu0 %v2596
    %2734 = vmatprep.subr.mxu0 0.0
    %2735 = vmatpush1.msra.mxu0 %v2601
    %2736 = vmatprep.subr.mxu0 0.0
    %2737 = vmatpush1.msra.mxu0 %v2606
    %2738 = vmatprep.subr.mxu0 0.0
    %2739 = vmatpush1.msra.mxu0 0.0
    %2740 = vmatprep.subr.mxu0 0.0
    %2741 = vmatpush1.msra.mxu0 0.0
    %2742 = vmatprep.subr.mxu0 0.0
    %2743 = vmatpush1.msra.mxu0 0.0
    %2744 = vmatprep.subr.mxu0 0.0
    %2745 = vmatpush1.msra.mxu0 0.0
    %2746 = vmatprep.subr.mxu0 0.0
    %2747 = vmatpush1.msra.mxu0 0.0
    %2748 = vmatprep.subr.mxu0 0.0
    %2749 = vmatpush1.msra.mxu0 0.0
    %2750 = vmatprep.subr.mxu0 0.0
    %2751 = vmatpush1.msra.mxu0 0.0
    %2752 = vmatprep.subr.mxu0 0.0
    %2753 = vmatpush1.msra.mxu0 0.0
    %2754 = vmatprep.subr.mxu0 0.0
    %2755 = vmatpush1.msra.mxu0 0.0
    %2756 = vmatprep.subr.mxu0 0.0
    %2757 = vmatpush1.msra.mxu0 0.0
    %2758 = vmatprep.subr.mxu0 0.0
    %2759 = vmatpush1.msra.mxu0 0.0
    %2760 = vmatprep.subr.mxu0 0.0
    %2761 = vmatpush1.msra.mxu0 0.0
    %2762 = vmatprep.subr.mxu0 0.0
    %2763 = vmatpush1.msra.mxu0 0.0
    %2764 = vmatprep.subr.mxu0 0.0
    %2765 = vmatpush1.msra.mxu0 0.0
    %2766 = vmatprep.subr.mxu0 0.0
    %2767 = vmatpush1.msra.mxu0 0.0
    %2768 = vmatprep.subr.mxu0 0.0
    %2769 = vmatpush1.msra.mxu0 0.0
    %2770 = vmatprep.subr.mxu0 0.0
    %2771 = vmatpush1.msra.mxu0 0.0
    %2772 = vmatprep.subr.mxu0 0.0
    %2773 = vmatpush1.msra.mxu0 0.0
    %2774 = vmatprep.subr.mxu0 0.0
    %2775 = vmatpush1.msra.mxu0 0.0
    %2776 = vmatprep.subr.mxu0 0.0
    %2777 = vmatpush1.msra.mxu0 0.0
    %2778 = vmatprep.subr.mxu0 0.0
    %2779 = vmatpush1.msra.mxu0 0.0
    %2780 = vmatprep.subr.mxu0 0.0
    %2781 = vmatpush1.msra.mxu0 0.0
    %2782 = vmatprep.subr.mxu0 0.0
    %2783 = vmatpush1.msra.mxu0 0.0
    %2784 = vmatprep.subr.mxu0 0.0
    %2785 = vmatpush1.msra.mxu0 0.0
    %2786 = vmatprep.subr.mxu0 0.0
    %2787 = vmatpush1.msra.mxu0 0.0
    %2788 = vmatprep.subr.mxu0 0.0
    %2789 = vmatpush1.msra.mxu0 0.0
    %2790 = vmatprep.subr.mxu0 0.0
    %2791 = vmatpush1.msra.mxu0 0.0
    %2792 = vmatprep.subr.mxu0 0.0
    %2793 = vmatpush1.msra.mxu0 0.0
    %2794 = vmatprep.mubr.f32.mxu0 0.0
    %2795 = vmatmul.mubr.f32.gmra.mrb[0].mxu0 %v2725
    %v2796 = vpop.f32.mrb[0].mxu0
    %v2797 = vadd.f32 0.0, %v2796
    %v2798 = vpop.f32.mrb[0].mxu0
    %2799 = vmatprep.mubr.f32.mxu0 0.0
    %2800 = vmatmul.mubr.f32.gmra.mrb[0].mxu0 %v2728
    %v2801 = vpop.f32.mrb[0].mxu0
    %v2802 = vadd.f32 0.0, %v2801
    %v2803 = vpop.f32.mrb[0].mxu0
    %2804 = vdwg.mxu0
    %v2805 = vadd.f32 %v2317, %v2797
    %v2806 = vadd.f32 %v2318, %v2802
    %s2807 = scalar_lea.vmem [#allocation22], 1
    %v2808 = vld [vmem:[%s2807] sm:$0x1]
    %s2809 = scalar_lea.vmem [#allocation23], 1
    %v2810 = vld [vmem:[%s2809] sm:$0x1]
    %v2811 = vsel %vm544, %v2805, 0.0
    %2812 = vadd.xlane.f32.xlu0 %v2811
    %v2813 = vpop.xlane.xlu0 %2812
    %v2814 = vsel %vm544, %v2806, 0.0
    %2815 = vadd.xlane.f32.xlu0 %v2814
    %v2816 = vpop.xlane.xlu0 %2815
    %v2817 = vmul.f32 %v2813, %v999
    %v2818 = vmul.f32 %v2816, %v999
    %v2819 = vsub.f32 %v2805, %v2817
    %v2820 = vsub.f32 %v2806, %v2818
    %v2821 = vmul.f32 %v2819, %v2819
    %v2822 = vmul.f32 %v2820, %v2820
    %v2823 = vsel %vm544, %v2821, 0.0
    %2824 = vadd.xlane.f32.xlu0 %v2823
    %v2825 = vpop.xlane.xlu0 %2824
    %v2826 = vsel %vm544, %v2822, 0.0
    %2827 = vadd.xlane.f32.xlu0 %v2826
    %v2828 = vpop.xlane.xlu0 %2827
    %v2829 = vmul.f32 %v2825, %v999
    %v2830 = vmul.f32 %v2828, %v999
    %v2831 = vadd.f32 %v2829, 1e-05
    %v2832 = vadd.f32 %v2830, 1e-05
    %v2833 = vrsqrt.pop %v2831
    %v2834 = vrsqrt.pop %v2832
    %v2835 = vmul.f32 %v2819, %v2833
    %v2836 = vmul.f32 %v2820, %v2834
    %v2838 = vlaneseq
    %v2839 = vshrl.u32 %v2838, 7
    %v2840 = vsub.s32 0, %v2839
    %v2841 = vrot.slane %v2808, %v2840
    %v2843 = vmul.f32 %v2835, %v2841
    %v2844 = vmul.f32 %v2836, %v2841
    %v2846 = vlaneseq
    %v2847 = vshrl.u32 %v2846, 7
    %v2848 = vsub.s32 0, %v2847
    %v2849 = vrot.slane %v2810, %v2848
    %v2851 = vadd.f32 %v2843, %v2849
    %v2852 = vadd.f32 %v2844, %v2849
    %s2853 = scalar_lea.vmem %s49, 32
    %v2854 = vld [vmem:[%s2853] sm:$0xff]
    %v2855 = vld [vmem:[%s2853 + $0x8] sm:$0xff]
    %v2856 = vld [vmem:[%s2853 + $0x10] sm:$0xff]
    %v2857 = vld [vmem:[%s2853 + $0x18] sm:$0xff]
    %s2858 = scalar_lea.vmem [#allocation28], 1
    %v2859 = vld [vmem:[%s2858] sm:$0x1]
    %v2861 = vlaneseq
    %v2862 = vshrl.u32 %v2861, 7
    %v2863 = vsub.s32 0, %v2862
    %v2864 = vrot.slane %v2859, %v2863
    %v2867 = vsel %vm544, %v2851, 0
    %v2870 = vsel %vm544, %v2852, 0
    %2872 = vmatprep.subr.mxu0 0.0
    %2873 = vmatpush1.msra.mxu0 %v2854
    %2874 = vmatprep.subr.mxu0 0.0
    %2875 = vmatpush1.msra.mxu0 %v2855
    %2876 = vmatprep.subr.mxu0 0.0
    %2877 = vmatpush1.msra.mxu0 %v2856
    %2878 = vmatprep.subr.mxu0 0.0
    %2879 = vmatpush1.msra.mxu0 %v2857
    %2880 = vmatprep.subr.mxu0 0.0
    %2881 = vmatpush1.msra.mxu0 0.0
    %2882 = vmatprep.subr.mxu0 0.0
    %2883 = vmatpush1.msra.mxu0 0.0
    %2884 = vmatprep.subr.mxu0 0.0
    %2885 = vmatpush1.msra.mxu0 0.0
    %2886 = vmatprep.subr.mxu0 0.0
    %2887 = vmatpush1.msra.mxu0 0.0
    %2888 = vmatprep.subr.mxu0 0.0
    %2889 = vmatpush1.msra.mxu0 0.0
    %2890 = vmatprep.subr.mxu0 0.0
    %2891 = vmatpush1.msra.mxu0 0.0
    %2892 = vmatprep.subr.mxu0 0.0
    %2893 = vmatpush1.msra.mxu0 0.0
    %2894 = vmatprep.subr.mxu0 0.0
    %2895 = vmatpush1.msra.mxu0 0.0
    %2896 = vmatprep.subr.mxu0 0.0
    %2897 = vmatpush1.msra.mxu0 0.0
    %2898 = vmatprep.subr.mxu0 0.0
    %2899 = vmatpush1.msra.mxu0 0.0
    %2900 = vmatprep.subr.mxu0 0.0
    %2901 = vmatpush1.msra.mxu0 0.0
    %2902 = vmatprep.subr.mxu0 0.0
    %2903 = vmatpush1.msra.mxu0 0.0
    %2904 = vmatprep.subr.mxu0 0.0
    %2905 = vmatpush1.msra.mxu0 0.0
    %2906 = vmatprep.subr.mxu0 0.0
    %2907 = vmatpush1.msra.mxu0 0.0
    %2908 = vmatprep.subr.mxu0 0.0
    %2909 = vmatpush1.msra.mxu0 0.0
    %2910 = vmatprep.subr.mxu0 0.0
    %2911 = vmatpush1.msra.mxu0 0.0
    %2912 = vmatprep.subr.mxu0 0.0
    %2913 = vmatpush1.msra.mxu0 0.0
    %2914 = vmatprep.subr.mxu0 0.0
    %2915 = vmatpush1.msra.mxu0 0.0
    %2916 = vmatprep.subr.mxu0 0.0
    %2917 = vmatpush1.msra.mxu0 0.0
    %2918 = vmatprep.subr.mxu0 0.0
    %2919 = vmatpush1.msra.mxu0 0.0
    %2920 = vmatprep.subr.mxu0 0.0
    %2921 = vmatpush1.msra.mxu0 0.0
    %2922 = vmatprep.subr.mxu0 0.0
    %2923 = vmatpush1.msra.mxu0 0.0
    %2924 = vmatprep.subr.mxu0 0.0
    %2925 = vmatpush1.msra.mxu0 0.0
    %2926 = vmatprep.subr.mxu0 0.0
    %2927 = vmatpush1.msra.mxu0 0.0
    %2928 = vmatprep.subr.mxu0 0.0
    %2929 = vmatpush1.msra.mxu0 0.0
    %2930 = vmatprep.subr.mxu0 0.0
    %2931 = vmatpush1.msra.mxu0 0.0
    %2932 = vmatprep.subr.mxu0 0.0
    %2933 = vmatpush1.msra.mxu0 0.0
    %2934 = vmatprep.subr.mxu0 0.0
    %2935 = vmatpush1.msra.mxu0 0.0
    %2936 = vmatprep.mubr.f32.mxu0 0.0
    %2937 = vmatmul.mubr.f32.gmra.mrb[0].mxu0 %v2867
    %v2938 = vpop.f32.mrb[0].mxu0
    %v2939 = vadd.f32 %v2864, %v2938
    %v2940 = vpop.f32.mrb[0].mxu0
    %2941 = vmatprep.mubr.f32.mxu0 0.0
    %2942 = vmatmul.mubr.f32.gmra.mrb[0].mxu0 %v2870
    %v2943 = vpop.f32.mrb[0].mxu0
    %v2944 = vadd.f32 %v2864, %v2943
    %v2945 = vpop.f32.mrb[0].mxu0
    %2946 = vdwg.mxu0
    %v2947 = vmax.f32 %v2939, 0.0
    %v2948 = vmax.f32 %v2944, 0.0
    %s2949 = scalar_lea.vmem %s53, 64
    %v2950 = vld [vmem:[%s2949] sm:$0xff]
    %v2951 = vld [vmem:[%s2949 + $0x8] sm:$0xff]
    %v2952 = vld [vmem:[%s2949 + $0x10] sm:$0xff]
    %v2953 = vld [vmem:[%s2949 + $0x18] sm:$0xff]
    %v2954 = vld [vmem:[%s2949 + $0x20] sm:$0xff]
    %v2955 = vld [vmem:[%s2949 + $0x28] sm:$0xff]
    %v2956 = vld [vmem:[%s2949 + $0x30] sm:$0xff]
    %v2957 = vld [vmem:[%s2949 + $0x38] sm:$0xff]
    %s2958 = scalar_lea.vmem [#allocation29], 1
    %v2959 = vld [vmem:[%s2958] sm:$0x1]
    %v2961 = vlaneseq
    %v2962 = vshrl.u32 %v2961, 7
    %v2963 = vsub.s32 0, %v2962
    %v2964 = vrot.slane %v2959, %v2963
    %v2967 = vsel %vm1683, %v2947, 0
    %v2970 = vsel %vm1683, %v2948, 0
    %2972 = vmatprep.subr.mxu0 0.0
    %2973 = vmatpush1.msra.mxu0 %v2950
    %2974 = vmatprep.subr.mxu0 0.0
    %2975 = vmatpush1.msra.mxu0 %v2951
    %2976 = vmatprep.subr.mxu0 0.0
    %2977 = vmatpush1.msra.mxu0 %v2952
    %2978 = vmatprep.subr.mxu0 0.0
    %2979 = vmatpush1.msra.mxu0 %v2953
    %2980 = vmatprep.subr.mxu0 0.0
    %2981 = vmatpush1.msra.mxu0 %v2954
    %2982 = vmatprep.subr.mxu0 0.0
    %2983 = vmatpush1.msra.mxu0 %v2955
    %2984 = vmatprep.subr.mxu0 0.0
    %2985 = vmatpush1.msra.mxu0 %v2956
    %2986 = vmatprep.subr.mxu0 0.0
    %2987 = vmatpush1.msra.mxu0 %v2957
    %2988 = vmatprep.subr.mxu0 0.0
    %2989 = vmatpush1.msra.mxu0 0.0
    %2990 = vmatprep.subr.mxu0 0.0
    %2991 = vmatpush1.msra.mxu0 0.0
    %2992 = vmatprep.subr.mxu0 0.0
    %2993 = vmatpush1.msra.mxu0 0.0
    %2994 = vmatprep.subr.mxu0 0.0
    %2995 = vmatpush1.msra.mxu0 0.0
    %2996 = vmatprep.subr.mxu0 0.0
    %2997 = vmatpush1.msra.mxu0 0.0
    %2998 = vmatprep.subr.mxu0 0.0
    %2999 = vmatpush1.msra.mxu0 0.0
    %3000 = vmatprep.subr.mxu0 0.0
    %3001 = vmatpush1.msra.mxu0 0.0
    %3002 = vmatprep.subr.mxu0 0.0
    %3003 = vmatpush1.msra.mxu0 0.0
    %3004 = vmatprep.subr.mxu0 0.0
    %3005 = vmatpush1.msra.mxu0 0.0
    %3006 = vmatprep.subr.mxu0 0.0
    %3007 = vmatpush1.msra.mxu0 0.0
    %3008 = vmatprep.subr.mxu0 0.0
    %3009 = vmatpush1.msra.mxu0 0.0
    %3010 = vmatprep.subr.mxu0 0.0
    %3011 = vmatpush1.msra.mxu0 0.0
    %3012 = vmatprep.subr.mxu0 0.0
    %3013 = vmatpush1.msra.mxu0 0.0
    %3014 = vmatprep.subr.mxu0 0.0
    %3015 = vmatpush1.msra.mxu0 0.0
    %3016 = vmatprep.subr.mxu0 0.0
    %3017 = vmatpush1.msra.mxu0 0.0
    %3018 = vmatprep.subr.mxu0 0.0
    %3019 = vmatpush1.msra.mxu0 0.0
    %3020 = vmatprep.subr.mxu0 0.0
    %3021 = vmatpush1.msra.mxu0 0.0
    %3022 = vmatprep.subr.mxu0 0.0
    %3023 = vmatpush1.msra.mxu0 0.0
    %3024 = vmatprep.subr.mxu0 0.0
    %3025 = vmatpush1.msra.mxu0 0.0
    %3026 = vmatprep.subr.mxu0 0.0
    %3027 = vmatpush1.msra.mxu0 0.0
    %3028 = vmatprep.subr.mxu0 0.0
    %3029 = vmatpush1.msra.mxu0 0.0
    %3030 = vmatprep.subr.mxu0 0.0
    %3031 = vmatpush1.msra.mxu0 0.0
    %3032 = vmatprep.subr.mxu0 0.0
    %3033 = vmatpush1.msra.mxu0 0.0
    %3034 = vmatprep.subr.mxu0 0.0
    %3035 = vmatpush1.msra.mxu0 0.0
    %3036 = vmatprep.mubr.f32.mxu0 0.0
    %3037 = vmatmul.mubr.f32.gmra.mrb[0].mxu0 %v2967
    %v3038 = vpop.f32.mrb[0].mxu0
    %v3039 = vadd.f32 %v2964, %v3038
    %v3040 = vpop.f32.mrb[0].mxu0
    %3041 = vmatprep.mubr.f32.mxu0 0.0
    %3042 = vmatmul.mubr.f32.gmra.mrb[0].mxu0 %v2970
    %v3043 = vpop.f32.mrb[0].mxu0
    %v3044 = vadd.f32 %v2964, %v3043
    %v3045 = vpop.f32.mrb[0].mxu0
    %3046 = vdwg.mxu0
    %v3047 = vadd.f32 %v2851, %v3039
    %v3048 = vadd.f32 %v2852, %v3044
    %s3049 = scalar_lea.vmem [#allocation25], 1
    %v3050 = vld [vmem:[%s3049] sm:$0x1]
    %s3051 = scalar_lea.vmem [#allocation26], 1
    %v3052 = vld [vmem:[%s3051] sm:$0x1]
    %v3053 = vsel %vm544, %v3047, 0.0
    %3054 = vadd.xlane.f32.xlu0 %v3053
    %v3055 = vpop.xlane.xlu0 %3054
    %v3056 = vsel %vm544, %v3048, 0.0
    %3057 = vadd.xlane.f32.xlu0 %v3056
    %v3058 = vpop.xlane.xlu0 %3057
    %v3059 = vmul.f32 %v3055, %v999
    %v3060 = vmul.f32 %v3058, %v999
    %v3061 = vsub.f32 %v3047, %v3059
    %v3062 = vsub.f32 %v3048, %v3060
    %v3063 = vmul.f32 %v3061, %v3061
    %v3064 = vmul.f32 %v3062, %v3062
    %v3065 = vsel %vm544, %v3063, 0.0
    %3066 = vadd.xlane.f32.xlu0 %v3065
    %v3067 = vpop.xlane.xlu0 %3066
    %v3068 = vsel %vm544, %v3064, 0.0
    %3069 = vadd.xlane.f32.xlu0 %v3068
    %v3070 = vpop.xlane.xlu0 %3069
    %v3071 = vmul.f32 %v3067, %v999
    %v3072 = vmul.f32 %v3070, %v999
    %v3073 = vadd.f32 %v3071, 1e-05
    %v3074 = vadd.f32 %v3072, 1e-05
    %v3075 = vrsqrt.pop %v3073
    %v3076 = vrsqrt.pop %v3074
    %v3077 = vmul.f32 %v3061, %v3075
    %v3078 = vmul.f32 %v3062, %v3076
    %v3080 = vlaneseq
    %v3081 = vshrl.u32 %v3080, 7
    %v3082 = vsub.s32 0, %v3081
    %v3083 = vrot.slane %v3050, %v3082
    %v3085 = vmul.f32 %v3077, %v3083
    %v3086 = vmul.f32 %v3078, %v3083
    %v3088 = vlaneseq
    %v3089 = vshrl.u32 %v3088, 7
    %v3090 = vsub.s32 0, %v3089
    %v3091 = vrot.slane %v3052, %v3090
    %v3093 = vadd.f32 %v3085, %v3091
    %v3094 = vadd.f32 %v3086, %v3091
    %v3095 = vld [vmem:[#allocation31] sm:$0x1]
    %v3096 = vld [vmem:[#allocation32] sm:$0x1]
    %v3097 = vsel %vm544, %v3093, 0.0
    %3098 = vadd.xlane.f32.xlu0 %v3097
    %v3099 = vpop.xlane.xlu0 %3098
    %v3100 = vsel %vm544, %v3094, 0.0
    %3101 = vadd.xlane.f32.xlu0 %v3100
    %v3102 = vpop.xlane.xlu0 %3101
    %v3103 = vmul.f32 %v3099, %v999
    %v3104 = vmul.f32 %v3102, %v999
    %v3105 = vsub.f32 %v3093, %v3103
    %v3106 = vsub.f32 %v3094, %v3104
    %v3107 = vmul.f32 %v3105, %v3105
    %v3108 = vmul.f32 %v3106, %v3106
    %v3109 = vsel %vm544, %v3107, 0.0
    %3110 = vadd.xlane.f32.xlu0 %v3109
    %v3111 = vpop.xlane.xlu0 %3110
    %v3112 = vsel %vm544, %v3108, 0.0
    %3113 = vadd.xlane.f32.xlu0 %v3112
    %v3114 = vpop.xlane.xlu0 %3113
    %v3115 = vmul.f32 %v3111, %v999
    %v3116 = vmul.f32 %v3114, %v999
    %v3117 = vadd.f32 %v3115, 1e-05
    %v3118 = vadd.f32 %v3116, 1e-05
    %v3119 = vrsqrt.pop %v3117
    %v3120 = vrsqrt.pop %v3118
    %v3121 = vmul.f32 %v3105, %v3119
    %v3122 = vmul.f32 %v3106, %v3120
    %v3124 = vlaneseq
    %v3125 = vshrl.u32 %v3124, 7
    %v3126 = vsub.s32 0, %v3125
    %v3127 = vrot.slane %v3095, %v3126
    %v3129 = vmul.f32 %v3121, %v3127
    %v3130 = vmul.f32 %v3122, %v3127
    %v3132 = vlaneseq
    %v3133 = vshrl.u32 %v3132, 7
    %v3134 = vsub.s32 0, %v3133
    %v3135 = vrot.slane %v3096, %v3134
    %v3137 = vadd.f32 %v3129, %v3135
    %v3138 = vadd.f32 %v3130, %v3135
    %v3139 = vld [vmem:[%s61] sm:$0xff]
    %v3140 = vld [vmem:[%s61 + $0x8] sm:$0xff]
    %v3141 = vld [vmem:[%s61 + $0x10] sm:$0xff]
    %v3142 = vld [vmem:[%s61 + $0x18] sm:$0xff]
    %v3143 = vld [vmem:[#allocation34] sm:$0x1]
    %v3145 = vlaneseq
    %v3146 = vshrl.u32 %v3145, 7
    %v3147 = vsub.s32 0, %v3146
    %v3148 = vrot.slane %v3143, %v3147
    %v3151 = vsel %vm544, %v3137, 0
    %v3154 = vsel %vm544, %v3138, 0
    %3156 = vmatprep.subr.mxu0 0.0
    %3157 = vmatpush1.msra.mxu0 %v3139
    %3158 = vmatprep.subr.mxu0 0.0
    %3159 = vmatpush1.msra.mxu0 %v3140
    %3160 = vmatprep.subr.mxu0 0.0
    %3161 = vmatpush1.msra.mxu0 %v3141
    %3162 = vmatprep.subr.mxu0 0.0
    %3163 = vmatpush1.msra.mxu0 %v3142
    %3164 = vmatprep.subr.mxu0 0.0
    %3165 = vmatpush1.msra.mxu0 0.0
    %3166 = vmatprep.subr.mxu0 0.0
    %3167 = vmatpush1.msra.mxu0 0.0
    %3168 = vmatprep.subr.mxu0 0.0
    %3169 = vmatpush1.msra.mxu0 0.0
    %3170 = vmatprep.subr.mxu0 0.0
    %3171 = vmatpush1.msra.mxu0 0.0
    %3172 = vmatprep.subr.mxu0 0.0
    %3173 = vmatpush1.msra.mxu0 0.0
    %3174 = vmatprep.subr.mxu0 0.0
    %3175 = vmatpush1.msra.mxu0 0.0
    %3176 = vmatprep.subr.mxu0 0.0
    %3177 = vmatpush1.msra.mxu0 0.0
    %3178 = vmatprep.subr.mxu0 0.0
    %3179 = vmatpush1.msra.mxu0 0.0
    %3180 = vmatprep.subr.mxu0 0.0
    %3181 = vmatpush1.msra.mxu0 0.0
    %3182 = vmatprep.subr.mxu0 0.0
    %3183 = vmatpush1.msra.mxu0 0.0
    %3184 = vmatprep.subr.mxu0 0.0
    %3185 = vmatpush1.msra.mxu0 0.0
    %3186 = vmatprep.subr.mxu0 0.0
    %3187 = vmatpush1.msra.mxu0 0.0
    %3188 = vmatprep.subr.mxu0 0.0
    %3189 = vmatpush1.msra.mxu0 0.0
    %3190 = vmatprep.subr.mxu0 0.0
    %3191 = vmatpush1.msra.mxu0 0.0
    %3192 = vmatprep.subr.mxu0 0.0
    %3193 = vmatpush1.msra.mxu0 0.0
    %3194 = vmatprep.subr.mxu0 0.0
    %3195 = vmatpush1.msra.mxu0 0.0
    %3196 = vmatprep.subr.mxu0 0.0
    %3197 = vmatpush1.msra.mxu0 0.0
    %3198 = vmatprep.subr.mxu0 0.0
    %3199 = vmatpush1.msra.mxu0 0.0
    %3200 = vmatprep.subr.mxu0 0.0
    %3201 = vmatpush1.msra.mxu0 0.0
    %3202 = vmatprep.subr.mxu0 0.0
    %3203 = vmatpush1.msra.mxu0 0.0
    %3204 = vmatprep.subr.mxu0 0.0
    %3205 = vmatpush1.msra.mxu0 0.0
    %3206 = vmatprep.subr.mxu0 0.0
    %3207 = vmatpush1.msra.mxu0 0.0
    %3208 = vmatprep.subr.mxu0 0.0
    %3209 = vmatpush1.msra.mxu0 0.0
    %3210 = vmatprep.subr.mxu0 0.0
    %3211 = vmatpush1.msra.mxu0 0.0
    %3212 = vmatprep.subr.mxu0 0.0
    %3213 = vmatpush1.msra.mxu0 0.0
    %3214 = vmatprep.subr.mxu0 0.0
    %3215 = vmatpush1.msra.mxu0 0.0
    %3216 = vmatprep.subr.mxu0 0.0
    %3217 = vmatpush1.msra.mxu0 0.0
    %3218 = vmatprep.subr.mxu0 0.0
    %3219 = vmatpush1.msra.mxu0 0.0
    %3220 = vmatprep.mubr.f32.mxu0 0.0
    %3221 = vmatmul.mubr.f32.gmra.mrb[0].mxu0 %v3151
    %v3222 = vpop.f32.mrb[0].mxu0
    %v3223 = vadd.f32 %v3148, %v3222
    %v3224 = vpop.f32.mrb[0].mxu0
    %3225 = vmatprep.mubr.f32.mxu0 0.0
    %3226 = vmatmul.mubr.f32.gmra.mrb[0].mxu0 %v3154
    %v3227 = vpop.f32.mrb[0].mxu0
    %v3228 = vadd.f32 %v3148, %v3227
    %v3229 = vpop.f32.mrb[0].mxu0
    %3230 = vdwg.mxu0
    %3231 = vst [vmem:[#allocation35] sm:$0xff] %v3223
    %3232 = vst [vmem:[#allocation35 + $0x8] sm:$0xff] %v3228
    // Predicated region
    $region214: #{tpu_custom_call.1} parent=1 // pred_check
      _
    $region215: #{tpu_custom_call.1} parent=1 // pred_check_branch
      %3234 = sbr.rel (0) target = $region217
    $region216: #{tpu_custom_call.1} parent=1 // pred_region
      %s3236 = ssub.s32 256, 256
      %3237 = vsyncadd [#allocation4], %s3236
      %s3238 = sshll.u32 [#allocation35], 4
      %s3239 = int_to_ptr.vmem [resolvable:$true] %s3238
      %3244 = dma.vmem_to_hbm [thread:$0]  %s3239, 256, %s65, [#allocation4], 128, 128, 8
    $region217: #{tpu_custom_call.1} parent=1 // pred_fallthru
      _
    // Predicated region
    $region218: #{tpu_custom_call.1} parent=1 // pred_check
      _
    $region219: #{tpu_custom_call.1} parent=1 // pred_check_branch
      %3246 = sbr.rel (0) target = $region221
    $region220: #{tpu_custom_call.1} parent=1 // pred_region
      %3247 = dma.done [#allocation4], 256
    $region221: #{tpu_custom_call.1} parent=1 // pred_fallthru
      _
    %3248 = vsyncpa [#allocation3], 1
    %3249 = vsyncpa [#allocation6], 1
    %3250 = vsyncpa [#allocation9], 1
    %3251 = vsyncpa [#allocation12], 1
    %3252 = vsyncpa [#allocation15], 1
    %3253 = vsyncpa [#allocation18], 1
    %3254 = vsyncpa [#allocation21], 1
    %3255 = vsyncpa [#allocation24], 1
    %3256 = vsyncpa [#allocation27], 1
    %3257 = vsyncpa [#allocation30], 1
    %3258 = vsyncpa [#allocation33], 1
    %3259 = vsyncpa [#allocation4], 1

</llo_original>
